<compile_context>
chip_gen: v7x
topology: tpu7x:2x2x1
jax: 0.10.0
libtpu: 0.0.40
codegen_flags: <defaults>
</compile_context>

<pallas_src>
import jax
import jax.numpy as jnp
from jax.experimental import pallas as pl
from jax.experimental.pallas import tpu as pltpu

# ---------------- configuration (small, consistent with the module) -----------
B = 8      # batch
S = 16     # input_shape  (state part of x)
E = 8      # em_input_shape (embedding part of x)
D = 32     # base / em_base output dim (hidden_shapes[-1] == em_hidden_shapes[-1])
H = 32     # module_hidden (== D so all module linears are HxH)
G = 32     # gating_hidden
L = 4      # num_layers
M = 4      # num_modules
NG = 2     # num_gating_layers
O = 6      # output_shape

PW = 128   # padded lane width: M * H == 128, every activation is (B, PW)

# ---------------- slab indices --------------------------------------------------
(IDX_B0, IDX_B1, IDX_E0, IDX_E1, IDX_G0, IDX_G1, IDX_GW0,
 IDX_C1_0, IDX_GW1, IDX_C2_0, IDX_C2_1, IDX_GW2,
 IDX_CL_0, IDX_CL_1, IDX_CL_2, IDX_GWL,
 IDX_M0, IDX_M1, IDX_M2, IDX_M3, IDX_LAST,
 IDX_GONES, IDX_EK0, IDX_EK1, IDX_EK2, IDX_EK3,
 IDX_TK0, IDX_TK1, IDX_TK2, IDX_TK3) = range(30)
NW = 30

(BI_B0, BI_B1, BI_E0, BI_E1, BI_G0, BI_G1, BI_GW0,
 BI_C1, BI_GW1, BI_C2, BI_GW2, BI_CL, BI_GWL,
 BI_M0, BI_M1, BI_M2, BI_M3, BI_LAST) = range(18)
NB = 18
NBP = 24   # bias slab rows, padded to a multiple of 8 sublanes


# ---------------- the Pallas kernel --------------------------------------------
def softnet_kernel(x_ref, w_ref, b_ref, o_ref):
    f32 = jnp.float32
    b_all = b_ref[...]                                   # (NBP, 128) - tiny

    def relu(v):
        return jnp.maximum(v, 0.0)

    def mm(x, wi):
        return jnp.dot(x, w_ref[wi], preferred_element_type=f32)

    def lin(x, wi, bi):
        return mm(x, wi) + b_all[bi:bi + 1, :]

    def group_softmax(raw):
        # softmax over groups of M=4 lanes; subtracting the GLOBAL row max is
        # mathematically identical per group and keeps exp() overflow-safe.
        m = jnp.max(raw, axis=-1, keepdims=True)
        e = jnp.exp(raw - m)
        s = mm(e, IDX_GONES)                              # per-group sums (MXU)
        return e / s

    def route(w_pack, mod_pack):
        # routed[:, j*H+h] = sum_k w_pack[:, j*M+k] * mod_pack[:, k*H+h]
        # done with constant expansion (E_k) / tiling (T_k) matmuls on the MXU.
        acc = mm(w_pack, IDX_EK0) * mm(mod_pack, IDX_TK0)
        for k in range(1, M):
            acc = acc + mm(w_pack, IDX_EK0 + k) * mm(mod_pack, IDX_TK0 + k)
        return acc

    x = x_ref[...]                                        # (B, 128), lanes >=S+E are 0

    # --- base / em_base MLPs (last activation is null) ---
    out = lin(relu(lin(x, IDX_B0, BI_B0)), IDX_B1, BI_B1)     # (B, 128), lanes>=D are 0
    emb = lin(relu(lin(x, IDX_E0, BI_E0)), IDX_E1, BI_E1)

    # cond_ob
    emb = emb * out
    out = relu(out)

    # --- gating fcs: relu, fc0, relu, fc1 (no activation after last) ---
    emb = relu(emb)
    emb = relu(lin(emb, IDX_G0, BI_G0))
    emb = lin(emb, IDX_G1, BI_G1)

    # --- gating weight 0 ---
    w0 = group_softmax(lin(relu(emb), IDX_GW0, BI_GW0))

    # --- middle gating layers (num_layers - 2 == 2); concat replaced by
    #     summed per-chunk matmuls against statically split cond weights ---
    cond = relu(lin(w0, IDX_C1_0, BI_C1) * emb)
    w1 = group_softmax(lin(cond, IDX_GW1, BI_GW1))

    cond = relu((mm(w0, IDX_C2_0) + lin(w1, IDX_C2_1, BI_C2)) * emb)
    w2 = group_softmax(lin(cond, IDX_GW2, BI_GW2))

    # --- last gating weight ---
    cond = relu((mm(w0, IDX_CL_0) + mm(w1, IDX_CL_1)
                 + lin(w2, IDX_CL_2, BI_CL)) * emb)
    lw = group_softmax(lin(cond, IDX_GWL, BI_GWL))        # lanes 0..M-1 meaningful

    # --- module layer 0: one stacked (32 -> 128) matmul for all 4 modules ---
    mod = lin(out, IDX_M0, BI_M0)                         # packed (B, M*H)

    # --- remaining module layers: routing (MXU) + block-diag fused linear ---
    wts = (w0, w1, w2)
    for i in range(L - 1):
        mod = lin(relu(route(wts[i], mod)), IDX_M1 + i, BI_M1 + i)

    # --- combine with last_weight, final linear ---
    comb = relu(route(lw, mod))                           # lanes 0..H-1 = combined out
    o_ref[...] = lin(comb, IDX_LAST, BI_LAST)             # lanes 0..O-1 real, rest 0


# ---------------- wrapper -------------------------------------------------------
@jax.jit
def softnet_forward(x, w_slab, b_slab):
    # pad the input to a lane-dense (B, 128) tile; the padded lanes hit zero
    # weight rows so the split into state / embedding is done by the weights.
    xp = jnp.zeros((x.shape[0], PW), jnp.float32).at[:, :S + E].set(x)
    out_pad = pl.pallas_call(
        softnet_kernel,
        out_shape=jax.ShapeDtypeStruct((B, PW), jnp.float32),
        grid_spec=pltpu.PrefetchScalarGridSpec(
            num_scalar_prefetch=0,
            grid=(1,),                                  # whole (small) batch in one tile
            in_specs=[
                pl.BlockSpec((B, PW), lambda i: (0, 0)),
                pl.BlockSpec((NW, PW, PW), lambda i: (0, 0, 0)),
                pl.BlockSpec((NBP, PW), lambda i: (0, 0)),
            ],
            out_specs=pl.BlockSpec((B, PW), lambda i: (0, 0)),
        ),
        compiler_params=pltpu.CompilerParams(
            dimension_semantics=("arbitrary",)),
    )(xp, w_slab, b_slab)
    return out_pad[:, :O], None


# ---------------- host-side parameter packing -----------------------------------
def pack_params(params):
    (bW0, bb0, bW1, bb1, eW0, eb0, eW1, eb1,
     gW0, gb0, gW1, gb1, gwW0, gwb0,
     cW1, cb1, gwW1, gwb1, cW2, cb2, gwW2, gwb2,
     clW, clb, glW, glb, modW, modb, lastW, lastb) = params

    def padw(W, row_off=0):
        Z = jnp.zeros((PW, PW), jnp.float32)
        return Z.at[row_off:row_off + W.shape[0], :W.shape[1]].set(W)

    def padb(b):
        b = b.reshape(-1)
        return jnp.zeros((PW,), jnp.float32).at[:b.shape[0]].set(b)

    rows = jnp.arange(PW)[:, None]
    cols = jnp.arange(PW)[None, :]
    # block-diag (4x4 blocks) of ones: per-group sums for the group softmax
    gones = ((rows // M) == (cols // M)).astype(jnp.float32)
    # E_k: expand routing weight lane j*M+k to the 32 lanes of group j
    Es = [((rows < M * M) & (rows % M == k) & (cols // H == rows // M)
           ).astype(jnp.float32) for k in range(M)]
    # T_k: tile module-k's 32-lane block across all 4 groups
    Ts = [((rows // H == k) & (cols % H == rows % H)
           ).astype(jnp.float32) for k in range(M)]

    # module layer 0: stack the 4 (H,H) linears side by side -> (H, M*H)
    mod0W = jnp.concatenate([modW[0, j] for j in range(M)], axis=1)
    mod0b = jnp.concatenate([modb[0, j, 0] for j in range(M)], axis=0)
    # module layers 1..L-1: block-diagonal (M*H, M*H)
    blockWs, blockbs = [], []
    for i in range(1, L):
        Wb = jnp.zeros((PW, PW), jnp.float32)
        for j in range(M):
            Wb = Wb.at[j * H:(j + 1) * H, j * H:(j + 1) * H].set(modW[i, j])
        blockWs.append(Wb)
        blockbs.append(jnp.concatenate([modb[i, j, 0] for j in range(M)], axis=0))

    w_list = [
        padw(bW0), padw(bW1),
        padw(eW0, row_off=S), padw(eW1),        # em weights read x lanes S..S+E-1
        padw(gW0), padw(gW1),
        padw(gwW0),
        padw(cW1), padw(gwW1),
        padw(cW2[:M * M]), padw(cW2[M * M:]), padw(gwW2),
        padw(clW[:M * M]), padw(clW[M * M:2 * M * M]), padw(clW[2 * M * M:]),
        padw(glW),
        padw(mod0W),
        blockWs[0], blockWs[1], blockWs[2],
        padw(lastW),
        gones, Es[0], Es[1], Es[2], Es[3], Ts[0], Ts[1], Ts[2], Ts[3],
    ]
    assert len(w_list) == NW
    w_slab = jnp.stack(w_list)                  # (NW, 128, 128)

    b_list = [
        padb(bb0), padb(bb1), padb(eb0), padb(eb1),
        padb(gb0), padb(gb1), padb(gwb0),
        padb(cb1), padb(gwb1), padb(cb2), padb(gwb2),
        padb(clb), padb(glb),
        padb(mod0b), padb(blockbs[0]), padb(blockbs[1]), padb(blockbs[2]),
        padb(lastb),
    ]
    assert len(b_list) == NB
    b_slab = jnp.concatenate(
        [jnp.stack(b_list), jnp.zeros((NBP - NB, PW), jnp.float32)], axis=0)
    return w_slab, b_slab


# ---------------- deterministic parameter construction --------------------------
def make_params(key):
    kiter = iter(jax.random.split(key, 128))

    def dense(din, dout, scale=0.1):
        W = scale * jax.random.normal(next(kiter), (din, dout), jnp.float32)
        b = scale * jax.random.normal(next(kiter), (1, dout), jnp.float32)
        return W, b

    bW0, bb0 = dense(S, D); bW1, bb1 = dense(D, D)          # base
    eW0, eb0 = dense(E, D); eW1, eb1 = dense(D, D)          # em_base
    gW0, gb0 = dense(D, G); gW1, gb1 = dense(G, G)          # gating_fcs
    gwW0, gwb0 = dense(G, M * M)                            # gating_weight_fc_0
    cW1, cb1 = dense(1 * M * M, G); gwW1, gwb1 = dense(G, M * M)
    cW2, cb2 = dense(2 * M * M, G); gwW2, gwb2 = dense(G, M * M)
    clW, clb = dense((L - 1) * M * M, G)                    # gating_weight_cond_last
    glW, glb = dense(G, M)                                  # gating_weight_last

    modWs, modbs = [], []
    for _ in range(L):
        rowW, rowb = [], []
        for _ in range(M):
            W, b = dense(H, H)
            rowW.append(W); rowb.append(b)
        modWs.append(jnp.stack(rowW)); modbs.append(jnp.stack(rowb))
    modW = jnp.stack(modWs)          # (L, M, H, H)
    modb = jnp.stack(modbs)          # (L, M, 1, H)

    lastW, lastb = dense(H, O)

    return (bW0, bb0, bW1, bb1, eW0, eb0, eW1, eb1,
            gW0, gb0, gW1, gb1, gwW0, gwb0,
            cW1, cb1, gwW1, gwb1, cW2, cb2, gwW2, gwb2,
            clW, clb, glW, glb, modW, modb, lastW, lastb)


# ---------------- pure-JAX reference (for numerical check) ----------------------
def softnet_ref(x, params):
    (bW0, bb0, bW1, bb1, eW0, eb0, eW1, eb1,
     gW0, gb0, gW1, gb1, gwW0, gwb0,
     cW1, cb1, gwW1, gwb1, cW2, cb2, gwW2, gwb2,
     clW, clb, glW, glb, modW, modb, lastW, lastb) = params
    relu = lambda v: jnp.maximum(v, 0.0)
    lin = lambda v, W, b: v @ W + b
    state_in, emb_in = x[:, :S], x[:, S:]
    out = lin(relu(lin(state_in, bW0, bb0)), bW1, bb1)
    emb = lin(relu(lin(emb_in, eW0, eb0)), eW1, eb1)
    emb = emb * out
    out = relu(out)
    emb = relu(emb)
    emb = relu(lin(emb, gW0, gb0))
    emb = lin(emb, gW1, gb1)
    gsm = lambda raw: jax.nn.softmax(raw.reshape(B, M, M), axis=-1)
    w0 = gsm(lin(relu(emb), gwW0, gwb0))
    weights = [w0]
    flat = [w0.reshape(B, M * M)]
    for (cW, cb, gwW, gwb) in ((cW1, cb1, gwW1, gwb1), (cW2, cb2, gwW2, gwb2)):
        cond = jnp.concatenate(flat, axis=-1)
        cond = relu(lin(cond, cW, cb) * emb)
        w = gsm(lin(cond, gwW, gwb))
        weights.append(w)
        flat.append(w.reshape(B, M * M))
    cond = jnp.concatenate(flat, axis=-1)
    cond = relu(lin(cond, clW, clb) * emb)
    last_w = jax.nn.softmax(lin(cond, glW, glb), axis=-1)
    mod = jnp.stack([out @ modW[0, j] + modb[0, j, 0] for j in range(M)], axis=-2)
    for i in range(L - 1):
        new = []
        for j in range(M):
            mi = relu(jnp.sum(mod * weights[i][:, j, :, None], axis=-2))
            new.append(mi @ modW[i + 1, j] + modb[i + 1, j, 0])
        mod = jnp.stack(new, axis=-2)
    out = relu(jnp.sum(mod * last_w[:, :, None], axis=-2))
    return out @ lastW + lastb


# ---------------- main -----------------------------------------------------------
if __name__ == "__main__":
    key = jax.random.PRNGKey(0)
    kx, kp = jax.random.split(key)
    x = jax.random.normal(kx, (B, S + E), jnp.float32)
    params = make_params(kp)
    w_slab, b_slab = pack_params(params)

    out, state = softnet_forward(x, w_slab, b_slab)
    out = jax.block_until_ready(out)

    ref = softnet_ref(x, params)
    assert out.shape == (B, O)
    assert jnp.allclose(out, ref, rtol=1e-3, atol=1e-3), (
        f"mismatch: max abs diff {jnp.max(jnp.abs(out - ref))}")

    print("KERNEL_OK")
</pallas_src>

<mosaic_0001>
module attributes {stable_mosaic.version = 11 : i64} {
  func.func @softnet_kernel(%arg0: i32, %arg1: memref<8x128xf32, #tpu.memory_space<vmem>>, %arg2: memref<30x128x128xf32, #tpu.memory_space<vmem>>, %arg3: memref<24x128xf32, #tpu.memory_space<vmem>>, %arg4: memref<8x128xf32, #tpu.memory_space<vmem>>) attributes {dimension_semantics = [#tpu.dimension_semantics<arbitrary>], iteration_bounds = array<i64: 1>, scalar_prefetch = 0 : i64, scratch_operands = 0 : i64, tpu.core_type = #tpu.core_type<tc>, window_params = [{pipeline_mode = #tpu.pipeline_mode<synchronous>, transform_indices = @transform_0, window_bounds = array<i64: 8, 128>}, {pipeline_mode = #tpu.pipeline_mode<synchronous>, transform_indices = @transform_1, window_bounds = array<i64: 30, 128, 128>}, {pipeline_mode = #tpu.pipeline_mode<synchronous>, transform_indices = @transform_2, window_bounds = array<i64: 24, 128>}, {pipeline_mode = #tpu.pipeline_mode<synchronous>, transform_indices = @transform_3, window_bounds = array<i64: 8, 128>}]} {
    %c0 = arith.constant 0 : index
    %c0_0 = arith.constant 0 : index
    %0 = vector.load %arg3[%c0, %c0_0] : memref<24x128xf32, #tpu.memory_space<vmem>>, vector<24x128xf32>
    %c0_1 = arith.constant 0 : index
    %c0_2 = arith.constant 0 : index
    %1 = vector.load %arg1[%c0_1, %c0_2] : memref<8x128xf32, #tpu.memory_space<vmem>>, vector<8x128xf32>
    %c0_3 = arith.constant 0 : index
    %c0_4 = arith.constant 0 : index
    %c0_5 = arith.constant 0 : index
    %2 = vector.load %arg2[%c0_3, %c0_4, %c0_5] : memref<30x128x128xf32, #tpu.memory_space<vmem>>, vector<1x128x128xf32>
    %3 = vector.shape_cast %2 : vector<1x128x128xf32> to vector<128x128xf32>
    %cst = arith.constant dense<0.000000e+00> : vector<8x128xf32>
    %4 = tpu.matmul %1, %3, %cst {dimension_numbers = #tpu.dot_dimension_numbers<[1], [0], [0], [1], [0, 0, 1, 1], [], []>} : vector<8x128xf32>, vector<128x128xf32>, vector<8x128xf32> -> vector<8x128xf32>
    %5 = vector.extract_strided_slice %0 {offsets = [0, 0], sizes = [1, 128], strides = [1, 1]} : vector<24x128xf32> to vector<1x128xf32>
    %6 = vector.broadcast %5 : vector<1x128xf32> to vector<8x128xf32>
    %7 = arith.addf %4, %6 : vector<8x128xf32>
    %cst_6 = arith.constant 0.000000e+00 : f32
    %8 = vector.broadcast %cst_6 : f32 to vector<8x128xf32>
    %9 = arith.maximumf %7, %8 : vector<8x128xf32>
    %c1 = arith.constant 1 : index
    %c0_7 = arith.constant 0 : index
    %c0_8 = arith.constant 0 : index
    %10 = vector.load %arg2[%c1, %c0_7, %c0_8] : memref<30x128x128xf32, #tpu.memory_space<vmem>>, vector<1x128x128xf32>
    %11 = vector.shape_cast %10 : vector<1x128x128xf32> to vector<128x128xf32>
    %cst_9 = arith.constant dense<0.000000e+00> : vector<8x128xf32>
    %12 = tpu.matmul %9, %11, %cst_9 {dimension_numbers = #tpu.dot_dimension_numbers<[1], [0], [0], [1], [0, 0, 1, 1], [], []>} : vector<8x128xf32>, vector<128x128xf32>, vector<8x128xf32> -> vector<8x128xf32>
    %13 = vector.extract_strided_slice %0 {offsets = [1, 0], sizes = [1, 128], strides = [1, 1]} : vector<24x128xf32> to vector<1x128xf32>
    %14 = vector.broadcast %13 : vector<1x128xf32> to vector<8x128xf32>
    %15 = arith.addf %12, %14 : vector<8x128xf32>
    %c2 = arith.constant 2 : index
    %c0_10 = arith.constant 0 : index
    %c0_11 = arith.constant 0 : index
    %16 = vector.load %arg2[%c2, %c0_10, %c0_11] : memref<30x128x128xf32, #tpu.memory_space<vmem>>, vector<1x128x128xf32>
    %17 = vector.shape_cast %16 : vector<1x128x128xf32> to vector<128x128xf32>
    %cst_12 = arith.constant dense<0.000000e+00> : vector<8x128xf32>
    %18 = tpu.matmul %1, %17, %cst_12 {dimension_numbers = #tpu.dot_dimension_numbers<[1], [0], [0], [1], [0, 0, 1, 1], [], []>} : vector<8x128xf32>, vector<128x128xf32>, vector<8x128xf32> -> vector<8x128xf32>
    %19 = vector.extract_strided_slice %0 {offsets = [2, 0], sizes = [1, 128], strides = [1, 1]} : vector<24x128xf32> to vector<1x128xf32>
    %20 = vector.broadcast %19 : vector<1x128xf32> to vector<8x128xf32>
    %21 = arith.addf %18, %20 : vector<8x128xf32>
    %cst_13 = arith.constant 0.000000e+00 : f32
    %22 = vector.broadcast %cst_13 : f32 to vector<8x128xf32>
    %23 = arith.maximumf %21, %22 : vector<8x128xf32>
    %c3 = arith.constant 3 : index
    %c0_14 = arith.constant 0 : index
    %c0_15 = arith.constant 0 : index
    %24 = vector.load %arg2[%c3, %c0_14, %c0_15] : memref<30x128x128xf32, #tpu.memory_space<vmem>>, vector<1x128x128xf32>
    %25 = vector.shape_cast %24 : vector<1x128x128xf32> to vector<128x128xf32>
    %cst_16 = arith.constant dense<0.000000e+00> : vector<8x128xf32>
    %26 = tpu.matmul %23, %25, %cst_16 {dimension_numbers = #tpu.dot_dimension_numbers<[1], [0], [0], [1], [0, 0, 1, 1], [], []>} : vector<8x128xf32>, vector<128x128xf32>, vector<8x128xf32> -> vector<8x128xf32>
    %27 = vector.extract_strided_slice %0 {offsets = [3, 0], sizes = [1, 128], strides = [1, 1]} : vector<24x128xf32> to vector<1x128xf32>
    %28 = vector.broadcast %27 : vector<1x128xf32> to vector<8x128xf32>
    %29 = arith.addf %26, %28 : vector<8x128xf32>
    %30 = arith.mulf %29, %15 : vector<8x128xf32>
    %cst_17 = arith.constant 0.000000e+00 : f32
    %31 = vector.broadcast %cst_17 : f32 to vector<8x128xf32>
    %32 = arith.maximumf %15, %31 : vector<8x128xf32>
    %cst_18 = arith.constant 0.000000e+00 : f32
    %33 = vector.broadcast %cst_18 : f32 to vector<8x128xf32>
    %34 = arith.maximumf %30, %33 : vector<8x128xf32>
    %c4 = arith.constant 4 : index
    %c0_19 = arith.constant 0 : index
    %c0_20 = arith.constant 0 : index
    %35 = vector.load %arg2[%c4, %c0_19, %c0_20] : memref<30x128x128xf32, #tpu.memory_space<vmem>>, vector<1x128x128xf32>
    %36 = vector.shape_cast %35 : vector<1x128x128xf32> to vector<128x128xf32>
    %cst_21 = arith.constant dense<0.000000e+00> : vector<8x128xf32>
    %37 = tpu.matmul %34, %36, %cst_21 {dimension_numbers = #tpu.dot_dimension_numbers<[1], [0], [0], [1], [0, 0, 1, 1], [], []>} : vector<8x128xf32>, vector<128x128xf32>, vector<8x128xf32> -> vector<8x128xf32>
    %38 = vector.extract_strided_slice %0 {offsets = [4, 0], sizes = [1, 128], strides = [1, 1]} : vector<24x128xf32> to vector<1x128xf32>
    %39 = vector.broadcast %38 : vector<1x128xf32> to vector<8x128xf32>
    %40 = arith.addf %37, %39 : vector<8x128xf32>
    %cst_22 = arith.constant 0.000000e+00 : f32
    %41 = vector.broadcast %cst_22 : f32 to vector<8x128xf32>
    %42 = arith.maximumf %40, %41 : vector<8x128xf32>
    %c5 = arith.constant 5 : index
    %c0_23 = arith.constant 0 : index
    %c0_24 = arith.constant 0 : index
    %43 = vector.load %arg2[%c5, %c0_23, %c0_24] : memref<30x128x128xf32, #tpu.memory_space<vmem>>, vector<1x128x128xf32>
    %44 = vector.shape_cast %43 : vector<1x128x128xf32> to vector<128x128xf32>
    %cst_25 = arith.constant dense<0.000000e+00> : vector<8x128xf32>
    %45 = tpu.matmul %42, %44, %cst_25 {dimension_numbers = #tpu.dot_dimension_numbers<[1], [0], [0], [1], [0, 0, 1, 1], [], []>} : vector<8x128xf32>, vector<128x128xf32>, vector<8x128xf32> -> vector<8x128xf32>
    %46 = vector.extract_strided_slice %0 {offsets = [5, 0], sizes = [1, 128], strides = [1, 1]} : vector<24x128xf32> to vector<1x128xf32>
    %47 = vector.broadcast %46 : vector<1x128xf32> to vector<8x128xf32>
    %48 = arith.addf %45, %47 : vector<8x128xf32>
    %cst_26 = arith.constant 0.000000e+00 : f32
    %49 = vector.broadcast %cst_26 : f32 to vector<8x128xf32>
    %50 = arith.maximumf %48, %49 : vector<8x128xf32>
    %c6 = arith.constant 6 : index
    %c0_27 = arith.constant 0 : index
    %c0_28 = arith.constant 0 : index
    %51 = vector.load %arg2[%c6, %c0_27, %c0_28] : memref<30x128x128xf32, #tpu.memory_space<vmem>>, vector<1x128x128xf32>
    %52 = vector.shape_cast %51 : vector<1x128x128xf32> to vector<128x128xf32>
    %cst_29 = arith.constant dense<0.000000e+00> : vector<8x128xf32>
    %53 = tpu.matmul %50, %52, %cst_29 {dimension_numbers = #tpu.dot_dimension_numbers<[1], [0], [0], [1], [0, 0, 1, 1], [], []>} : vector<8x128xf32>, vector<128x128xf32>, vector<8x128xf32> -> vector<8x128xf32>
    %54 = vector.extract_strided_slice %0 {offsets = [6, 0], sizes = [1, 128], strides = [1, 1]} : vector<24x128xf32> to vector<1x128xf32>
    %55 = vector.broadcast %54 : vector<1x128xf32> to vector<8x128xf32>
    %56 = arith.addf %53, %55 : vector<8x128xf32>
    %cst_30 = arith.constant dense<0xFF800000> : vector<8xf32>
    %57 = vector.multi_reduction <maximumf>, %56, %cst_30 [1] : vector<8x128xf32> to vector<8xf32>
    %58 = vector.shape_cast %57 : vector<8xf32> to vector<8x1xf32>
    %59 = vector.broadcast %58 : vector<8x1xf32> to vector<8x128xf32>
    %60 = arith.subf %56, %59 : vector<8x128xf32>
    %61 = math.exp %60 : vector<8x128xf32>
    %c21 = arith.constant 21 : index
    %c0_31 = arith.constant 0 : index
    %c0_32 = arith.constant 0 : index
    %62 = vector.load %arg2[%c21, %c0_31, %c0_32] : memref<30x128x128xf32, #tpu.memory_space<vmem>>, vector<1x128x128xf32>
    %63 = vector.shape_cast %62 : vector<1x128x128xf32> to vector<128x128xf32>
    %cst_33 = arith.constant dense<0.000000e+00> : vector<8x128xf32>
    %64 = tpu.matmul %61, %63, %cst_33 {dimension_numbers = #tpu.dot_dimension_numbers<[1], [0], [0], [1], [0, 0, 1, 1], [], []>} : vector<8x128xf32>, vector<128x128xf32>, vector<8x128xf32> -> vector<8x128xf32>
    %65 = arith.divf %61, %64 : vector<8x128xf32>
    %c7 = arith.constant 7 : index
    %c0_34 = arith.constant 0 : index
    %c0_35 = arith.constant 0 : index
    %66 = vector.load %arg2[%c7, %c0_34, %c0_35] : memref<30x128x128xf32, #tpu.memory_space<vmem>>, vector<1x128x128xf32>
    %67 = vector.shape_cast %66 : vector<1x128x128xf32> to vector<128x128xf32>
    %cst_36 = arith.constant dense<0.000000e+00> : vector<8x128xf32>
    %68 = tpu.matmul %65, %67, %cst_36 {dimension_numbers = #tpu.dot_dimension_numbers<[1], [0], [0], [1], [0, 0, 1, 1], [], []>} : vector<8x128xf32>, vector<128x128xf32>, vector<8x128xf32> -> vector<8x128xf32>
    %69 = vector.extract_strided_slice %0 {offsets = [7, 0], sizes = [1, 128], strides = [1, 1]} : vector<24x128xf32> to vector<1x128xf32>
    %70 = vector.broadcast %69 : vector<1x128xf32> to vector<8x128xf32>
    %71 = arith.addf %68, %70 : vector<8x128xf32>
    %72 = arith.mulf %71, %48 : vector<8x128xf32>
    %cst_37 = arith.constant 0.000000e+00 : f32
    %73 = vector.broadcast %cst_37 : f32 to vector<8x128xf32>
    %74 = arith.maximumf %72, %73 : vector<8x128xf32>
    %c8 = arith.constant 8 : index
    %c0_38 = arith.constant 0 : index
    %c0_39 = arith.constant 0 : index
    %75 = vector.load %arg2[%c8, %c0_38, %c0_39] : memref<30x128x128xf32, #tpu.memory_space<vmem>>, vector<1x128x128xf32>
    %76 = vector.shape_cast %75 : vector<1x128x128xf32> to vector<128x128xf32>
    %cst_40 = arith.constant dense<0.000000e+00> : vector<8x128xf32>
    %77 = tpu.matmul %74, %76, %cst_40 {dimension_numbers = #tpu.dot_dimension_numbers<[1], [0], [0], [1], [0, 0, 1, 1], [], []>} : vector<8x128xf32>, vector<128x128xf32>, vector<8x128xf32> -> vector<8x128xf32>
    %78 = vector.extract_strided_slice %0 {offsets = [8, 0], sizes = [1, 128], strides = [1, 1]} : vector<24x128xf32> to vector<1x128xf32>
    %79 = vector.broadcast %78 : vector<1x128xf32> to vector<8x128xf32>
    %80 = arith.addf %77, %79 : vector<8x128xf32>
    %cst_41 = arith.constant dense<0xFF800000> : vector<8xf32>
    %81 = vector.multi_reduction <maximumf>, %80, %cst_41 [1] : vector<8x128xf32> to vector<8xf32>
    %82 = vector.shape_cast %81 : vector<8xf32> to vector<8x1xf32>
    %83 = vector.broadcast %82 : vector<8x1xf32> to vector<8x128xf32>
    %84 = arith.subf %80, %83 : vector<8x128xf32>
    %85 = math.exp %84 : vector<8x128xf32>
    %c21_42 = arith.constant 21 : index
    %c0_43 = arith.constant 0 : index
    %c0_44 = arith.constant 0 : index
    %86 = vector.load %arg2[%c21_42, %c0_43, %c0_44] : memref<30x128x128xf32, #tpu.memory_space<vmem>>, vector<1x128x128xf32>
    %87 = vector.shape_cast %86 : vector<1x128x128xf32> to vector<128x128xf32>
    %cst_45 = arith.constant dense<0.000000e+00> : vector<8x128xf32>
    %88 = tpu.matmul %85, %87, %cst_45 {dimension_numbers = #tpu.dot_dimension_numbers<[1], [0], [0], [1], [0, 0, 1, 1], [], []>} : vector<8x128xf32>, vector<128x128xf32>, vector<8x128xf32> -> vector<8x128xf32>
    %89 = arith.divf %85, %88 : vector<8x128xf32>
    %c9 = arith.constant 9 : index
    %c0_46 = arith.constant 0 : index
    %c0_47 = arith.constant 0 : index
    %90 = vector.load %arg2[%c9, %c0_46, %c0_47] : memref<30x128x128xf32, #tpu.memory_space<vmem>>, vector<1x128x128xf32>
    %91 = vector.shape_cast %90 : vector<1x128x128xf32> to vector<128x128xf32>
    %cst_48 = arith.constant dense<0.000000e+00> : vector<8x128xf32>
    %92 = tpu.matmul %65, %91, %cst_48 {dimension_numbers = #tpu.dot_dimension_numbers<[1], [0], [0], [1], [0, 0, 1, 1], [], []>} : vector<8x128xf32>, vector<128x128xf32>, vector<8x128xf32> -> vector<8x128xf32>
    %c10 = arith.constant 10 : index
    %c0_49 = arith.constant 0 : index
    %c0_50 = arith.constant 0 : index
    %93 = vector.load %arg2[%c10, %c0_49, %c0_50] : memref<30x128x128xf32, #tpu.memory_space<vmem>>, vector<1x128x128xf32>
    %94 = vector.shape_cast %93 : vector<1x128x128xf32> to vector<128x128xf32>
    %cst_51 = arith.constant dense<0.000000e+00> : vector<8x128xf32>
    %95 = tpu.matmul %89, %94, %cst_51 {dimension_numbers = #tpu.dot_dimension_numbers<[1], [0], [0], [1], [0, 0, 1, 1], [], []>} : vector<8x128xf32>, vector<128x128xf32>, vector<8x128xf32> -> vector<8x128xf32>
    %96 = vector.extract_strided_slice %0 {offsets = [9, 0], sizes = [1, 128], strides = [1, 1]} : vector<24x128xf32> to vector<1x128xf32>
    %97 = vector.broadcast %96 : vector<1x128xf32> to vector<8x128xf32>
    %98 = arith.addf %95, %97 : vector<8x128xf32>
    %99 = arith.addf %92, %98 : vector<8x128xf32>
    %100 = arith.mulf %99, %48 : vector<8x128xf32>
    %cst_52 = arith.constant 0.000000e+00 : f32
    %101 = vector.broadcast %cst_52 : f32 to vector<8x128xf32>
    %102 = arith.maximumf %100, %101 : vector<8x128xf32>
    %c11 = arith.constant 11 : index
    %c0_53 = arith.constant 0 : index
    %c0_54 = arith.constant 0 : index
    %103 = vector.load %arg2[%c11, %c0_53, %c0_54] : memref<30x128x128xf32, #tpu.memory_space<vmem>>, vector<1x128x128xf32>
    %104 = vector.shape_cast %103 : vector<1x128x128xf32> to vector<128x128xf32>
    %cst_55 = arith.constant dense<0.000000e+00> : vector<8x128xf32>
    %105 = tpu.matmul %102, %104, %cst_55 {dimension_numbers = #tpu.dot_dimension_numbers<[1], [0], [0], [1], [0, 0, 1, 1], [], []>} : vector<8x128xf32>, vector<128x128xf32>, vector<8x128xf32> -> vector<8x128xf32>
    %106 = vector.extract_strided_slice %0 {offsets = [10, 0], sizes = [1, 128], strides = [1, 1]} : vector<24x128xf32> to vector<1x128xf32>
    %107 = vector.broadcast %106 : vector<1x128xf32> to vector<8x128xf32>
    %108 = arith.addf %105, %107 : vector<8x128xf32>
    %cst_56 = arith.constant dense<0xFF800000> : vector<8xf32>
    %109 = vector.multi_reduction <maximumf>, %108, %cst_56 [1] : vector<8x128xf32> to vector<8xf32>
    %110 = vector.shape_cast %109 : vector<8xf32> to vector<8x1xf32>
    %111 = vector.broadcast %110 : vector<8x1xf32> to vector<8x128xf32>
    %112 = arith.subf %108, %111 : vector<8x128xf32>
    %113 = math.exp %112 : vector<8x128xf32>
    %c21_57 = arith.constant 21 : index
    %c0_58 = arith.constant 0 : index
    %c0_59 = arith.constant 0 : index
    %114 = vector.load %arg2[%c21_57, %c0_58, %c0_59] : memref<30x128x128xf32, #tpu.memory_space<vmem>>, vector<1x128x128xf32>
    %115 = vector.shape_cast %114 : vector<1x128x128xf32> to vector<128x128xf32>
    %cst_60 = arith.constant dense<0.000000e+00> : vector<8x128xf32>
    %116 = tpu.matmul %113, %115, %cst_60 {dimension_numbers = #tpu.dot_dimension_numbers<[1], [0], [0], [1], [0, 0, 1, 1], [], []>} : vector<8x128xf32>, vector<128x128xf32>, vector<8x128xf32> -> vector<8x128xf32>
    %117 = arith.divf %113, %116 : vector<8x128xf32>
    %c12 = arith.constant 12 : index
    %c0_61 = arith.constant 0 : index
    %c0_62 = arith.constant 0 : index
    %118 = vector.load %arg2[%c12, %c0_61, %c0_62] : memref<30x128x128xf32, #tpu.memory_space<vmem>>, vector<1x128x128xf32>
    %119 = vector.shape_cast %118 : vector<1x128x128xf32> to vector<128x128xf32>
    %cst_63 = arith.constant dense<0.000000e+00> : vector<8x128xf32>
    %120 = tpu.matmul %65, %119, %cst_63 {dimension_numbers = #tpu.dot_dimension_numbers<[1], [0], [0], [1], [0, 0, 1, 1], [], []>} : vector<8x128xf32>, vector<128x128xf32>, vector<8x128xf32> -> vector<8x128xf32>
    %c13 = arith.constant 13 : index
    %c0_64 = arith.constant 0 : index
    %c0_65 = arith.constant 0 : index
    %121 = vector.load %arg2[%c13, %c0_64, %c0_65] : memref<30x128x128xf32, #tpu.memory_space<vmem>>, vector<1x128x128xf32>
    %122 = vector.shape_cast %121 : vector<1x128x128xf32> to vector<128x128xf32>
    %cst_66 = arith.constant dense<0.000000e+00> : vector<8x128xf32>
    %123 = tpu.matmul %89, %122, %cst_66 {dimension_numbers = #tpu.dot_dimension_numbers<[1], [0], [0], [1], [0, 0, 1, 1], [], []>} : vector<8x128xf32>, vector<128x128xf32>, vector<8x128xf32> -> vector<8x128xf32>
    %124 = arith.addf %120, %123 : vector<8x128xf32>
    %c14 = arith.constant 14 : index
    %c0_67 = arith.constant 0 : index
    %c0_68 = arith.constant 0 : index
    %125 = vector.load %arg2[%c14, %c0_67, %c0_68] : memref<30x128x128xf32, #tpu.memory_space<vmem>>, vector<1x128x128xf32>
    %126 = vector.shape_cast %125 : vector<1x128x128xf32> to vector<128x128xf32>
    %cst_69 = arith.constant dense<0.000000e+00> : vector<8x128xf32>
    %127 = tpu.matmul %117, %126, %cst_69 {dimension_numbers = #tpu.dot_dimension_numbers<[1], [0], [0], [1], [0, 0, 1, 1], [], []>} : vector<8x128xf32>, vector<128x128xf32>, vector<8x128xf32> -> vector<8x128xf32>
    %128 = vector.extract_strided_slice %0 {offsets = [11, 0], sizes = [1, 128], strides = [1, 1]} : vector<24x128xf32> to vector<1x128xf32>
    %129 = vector.broadcast %128 : vector<1x128xf32> to vector<8x128xf32>
    %130 = arith.addf %127, %129 : vector<8x128xf32>
    %131 = arith.addf %124, %130 : vector<8x128xf32>
    %132 = arith.mulf %131, %48 : vector<8x128xf32>
    %cst_70 = arith.constant 0.000000e+00 : f32
    %133 = vector.broadcast %cst_70 : f32 to vector<8x128xf32>
    %134 = arith.maximumf %132, %133 : vector<8x128xf32>
    %c15 = arith.constant 15 : index
    %c0_71 = arith.constant 0 : index
    %c0_72 = arith.constant 0 : index
    %135 = vector.load %arg2[%c15, %c0_71, %c0_72] : memref<30x128x128xf32, #tpu.memory_space<vmem>>, vector<1x128x128xf32>
    %136 = vector.shape_cast %135 : vector<1x128x128xf32> to vector<128x128xf32>
    %cst_73 = arith.constant dense<0.000000e+00> : vector<8x128xf32>
    %137 = tpu.matmul %134, %136, %cst_73 {dimension_numbers = #tpu.dot_dimension_numbers<[1], [0], [0], [1], [0, 0, 1, 1], [], []>} : vector<8x128xf32>, vector<128x128xf32>, vector<8x128xf32> -> vector<8x128xf32>
    %138 = vector.extract_strided_slice %0 {offsets = [12, 0], sizes = [1, 128], strides = [1, 1]} : vector<24x128xf32> to vector<1x128xf32>
    %139 = vector.broadcast %138 : vector<1x128xf32> to vector<8x128xf32>
    %140 = arith.addf %137, %139 : vector<8x128xf32>
    %cst_74 = arith.constant dense<0xFF800000> : vector<8xf32>
    %141 = vector.multi_reduction <maximumf>, %140, %cst_74 [1] : vector<8x128xf32> to vector<8xf32>
    %142 = vector.shape_cast %141 : vector<8xf32> to vector<8x1xf32>
    %143 = vector.broadcast %142 : vector<8x1xf32> to vector<8x128xf32>
    %144 = arith.subf %140, %143 : vector<8x128xf32>
    %145 = math.exp %144 : vector<8x128xf32>
    %c21_75 = arith.constant 21 : index
    %c0_76 = arith.constant 0 : index
    %c0_77 = arith.constant 0 : index
    %146 = vector.load %arg2[%c21_75, %c0_76, %c0_77] : memref<30x128x128xf32, #tpu.memory_space<vmem>>, vector<1x128x128xf32>
    %147 = vector.shape_cast %146 : vector<1x128x128xf32> to vector<128x128xf32>
    %cst_78 = arith.constant dense<0.000000e+00> : vector<8x128xf32>
    %148 = tpu.matmul %145, %147, %cst_78 {dimension_numbers = #tpu.dot_dimension_numbers<[1], [0], [0], [1], [0, 0, 1, 1], [], []>} : vector<8x128xf32>, vector<128x128xf32>, vector<8x128xf32> -> vector<8x128xf32>
    %149 = arith.divf %145, %148 : vector<8x128xf32>
    %c16 = arith.constant 16 : index
    %c0_79 = arith.constant 0 : index
    %c0_80 = arith.constant 0 : index
    %150 = vector.load %arg2[%c16, %c0_79, %c0_80] : memref<30x128x128xf32, #tpu.memory_space<vmem>>, vector<1x128x128xf32>
    %151 = vector.shape_cast %150 : vector<1x128x128xf32> to vector<128x128xf32>
    %cst_81 = arith.constant dense<0.000000e+00> : vector<8x128xf32>
    %152 = tpu.matmul %32, %151, %cst_81 {dimension_numbers = #tpu.dot_dimension_numbers<[1], [0], [0], [1], [0, 0, 1, 1], [], []>} : vector<8x128xf32>, vector<128x128xf32>, vector<8x128xf32> -> vector<8x128xf32>
    %153 = vector.extract_strided_slice %0 {offsets = [13, 0], sizes = [1, 128], strides = [1, 1]} : vector<24x128xf32> to vector<1x128xf32>
    %154 = vector.broadcast %153 : vector<1x128xf32> to vector<8x128xf32>
    %155 = arith.addf %152, %154 : vector<8x128xf32>
    %c22 = arith.constant 22 : index
    %c0_82 = arith.constant 0 : index
    %c0_83 = arith.constant 0 : index
    %156 = vector.load %arg2[%c22, %c0_82, %c0_83] : memref<30x128x128xf32, #tpu.memory_space<vmem>>, vector<1x128x128xf32>
    %157 = vector.shape_cast %156 : vector<1x128x128xf32> to vector<128x128xf32>
    %cst_84 = arith.constant dense<0.000000e+00> : vector<8x128xf32>
    %158 = tpu.matmul %65, %157, %cst_84 {dimension_numbers = #tpu.dot_dimension_numbers<[1], [0], [0], [1], [0, 0, 1, 1], [], []>} : vector<8x128xf32>, vector<128x128xf32>, vector<8x128xf32> -> vector<8x128xf32>
    %c26 = arith.constant 26 : index
    %c0_85 = arith.constant 0 : index
    %c0_86 = arith.constant 0 : index
    %159 = vector.load %arg2[%c26, %c0_85, %c0_86] : memref<30x128x128xf32, #tpu.memory_space<vmem>>, vector<1x128x128xf32>
    %160 = vector.shape_cast %159 : vector<1x128x128xf32> to vector<128x128xf32>
    %cst_87 = arith.constant dense<0.000000e+00> : vector<8x128xf32>
    %161 = tpu.matmul %155, %160, %cst_87 {dimension_numbers = #tpu.dot_dimension_numbers<[1], [0], [0], [1], [0, 0, 1, 1], [], []>} : vector<8x128xf32>, vector<128x128xf32>, vector<8x128xf32> -> vector<8x128xf32>
    %162 = arith.mulf %158, %161 : vector<8x128xf32>
    %c23 = arith.constant 23 : index
    %c0_88 = arith.constant 0 : index
    %c0_89 = arith.constant 0 : index
    %163 = vector.load %arg2[%c23, %c0_88, %c0_89] : memref<30x128x128xf32, #tpu.memory_space<vmem>>, vector<1x128x128xf32>
    %164 = vector.shape_cast %163 : vector<1x128x128xf32> to vector<128x128xf32>
    %cst_90 = arith.constant dense<0.000000e+00> : vector<8x128xf32>
    %165 = tpu.matmul %65, %164, %cst_90 {dimension_numbers = #tpu.dot_dimension_numbers<[1], [0], [0], [1], [0, 0, 1, 1], [], []>} : vector<8x128xf32>, vector<128x128xf32>, vector<8x128xf32> -> vector<8x128xf32>
    %c27 = arith.constant 27 : index
    %c0_91 = arith.constant 0 : index
    %c0_92 = arith.constant 0 : index
    %166 = vector.load %arg2[%c27, %c0_91, %c0_92] : memref<30x128x128xf32, #tpu.memory_space<vmem>>, vector<1x128x128xf32>
    %167 = vector.shape_cast %166 : vector<1x128x128xf32> to vector<128x128xf32>
    %cst_93 = arith.constant dense<0.000000e+00> : vector<8x128xf32>
    %168 = tpu.matmul %155, %167, %cst_93 {dimension_numbers = #tpu.dot_dimension_numbers<[1], [0], [0], [1], [0, 0, 1, 1], [], []>} : vector<8x128xf32>, vector<128x128xf32>, vector<8x128xf32> -> vector<8x128xf32>
    %169 = arith.mulf %165, %168 : vector<8x128xf32>
    %170 = arith.addf %162, %169 : vector<8x128xf32>
    %c24 = arith.constant 24 : index
    %c0_94 = arith.constant 0 : index
    %c0_95 = arith.constant 0 : index
    %171 = vector.load %arg2[%c24, %c0_94, %c0_95] : memref<30x128x128xf32, #tpu.memory_space<vmem>>, vector<1x128x128xf32>
    %172 = vector.shape_cast %171 : vector<1x128x128xf32> to vector<128x128xf32>
    %cst_96 = arith.constant dense<0.000000e+00> : vector<8x128xf32>
    %173 = tpu.matmul %65, %172, %cst_96 {dimension_numbers = #tpu.dot_dimension_numbers<[1], [0], [0], [1], [0, 0, 1, 1], [], []>} : vector<8x128xf32>, vector<128x128xf32>, vector<8x128xf32> -> vector<8x128xf32>
    %c28 = arith.constant 28 : index
    %c0_97 = arith.constant 0 : index
    %c0_98 = arith.constant 0 : index
    %174 = vector.load %arg2[%c28, %c0_97, %c0_98] : memref<30x128x128xf32, #tpu.memory_space<vmem>>, vector<1x128x128xf32>
    %175 = vector.shape_cast %174 : vector<1x128x128xf32> to vector<128x128xf32>
    %cst_99 = arith.constant dense<0.000000e+00> : vector<8x128xf32>
    %176 = tpu.matmul %155, %175, %cst_99 {dimension_numbers = #tpu.dot_dimension_numbers<[1], [0], [0], [1], [0, 0, 1, 1], [], []>} : vector<8x128xf32>, vector<128x128xf32>, vector<8x128xf32> -> vector<8x128xf32>
    %177 = arith.mulf %173, %176 : vector<8x128xf32>
    %178 = arith.addf %170, %177 : vector<8x128xf32>
    %c25 = arith.constant 25 : index
    %c0_100 = arith.constant 0 : index
    %c0_101 = arith.constant 0 : index
    %179 = vector.load %arg2[%c25, %c0_100, %c0_101] : memref<30x128x128xf32, #tpu.memory_space<vmem>>, vector<1x128x128xf32>
    %180 = vector.shape_cast %179 : vector<1x128x128xf32> to vector<128x128xf32>
    %cst_102 = arith.constant dense<0.000000e+00> : vector<8x128xf32>
    %181 = tpu.matmul %65, %180, %cst_102 {dimension_numbers = #tpu.dot_dimension_numbers<[1], [0], [0], [1], [0, 0, 1, 1], [], []>} : vector<8x128xf32>, vector<128x128xf32>, vector<8x128xf32> -> vector<8x128xf32>
    %c29 = arith.constant 29 : index
    %c0_103 = arith.constant 0 : index
    %c0_104 = arith.constant 0 : index
    %182 = vector.load %arg2[%c29, %c0_103, %c0_104] : memref<30x128x128xf32, #tpu.memory_space<vmem>>, vector<1x128x128xf32>
    %183 = vector.shape_cast %182 : vector<1x128x128xf32> to vector<128x128xf32>
    %cst_105 = arith.constant dense<0.000000e+00> : vector<8x128xf32>
    %184 = tpu.matmul %155, %183, %cst_105 {dimension_numbers = #tpu.dot_dimension_numbers<[1], [0], [0], [1], [0, 0, 1, 1], [], []>} : vector<8x128xf32>, vector<128x128xf32>, vector<8x128xf32> -> vector<8x128xf32>
    %185 = arith.mulf %181, %184 : vector<8x128xf32>
    %186 = arith.addf %178, %185 : vector<8x128xf32>
    %cst_106 = arith.constant 0.000000e+00 : f32
    %187 = vector.broadcast %cst_106 : f32 to vector<8x128xf32>
    %188 = arith.maximumf %186, %187 : vector<8x128xf32>
    %c17 = arith.constant 17 : index
    %c0_107 = arith.constant 0 : index
    %c0_108 = arith.constant 0 : index
    %189 = vector.load %arg2[%c17, %c0_107, %c0_108] : memref<30x128x128xf32, #tpu.memory_space<vmem>>, vector<1x128x128xf32>
    %190 = vector.shape_cast %189 : vector<1x128x128xf32> to vector<128x128xf32>
    %cst_109 = arith.constant dense<0.000000e+00> : vector<8x128xf32>
    %191 = tpu.matmul %188, %190, %cst_109 {dimension_numbers = #tpu.dot_dimension_numbers<[1], [0], [0], [1], [0, 0, 1, 1], [], []>} : vector<8x128xf32>, vector<128x128xf32>, vector<8x128xf32> -> vector<8x128xf32>
    %192 = vector.extract_strided_slice %0 {offsets = [14, 0], sizes = [1, 128], strides = [1, 1]} : vector<24x128xf32> to vector<1x128xf32>
    %193 = vector.broadcast %192 : vector<1x128xf32> to vector<8x128xf32>
    %194 = arith.addf %191, %193 : vector<8x128xf32>
    %c22_110 = arith.constant 22 : index
    %c0_111 = arith.constant 0 : index
    %c0_112 = arith.constant 0 : index
    %195 = vector.load %arg2[%c22_110, %c0_111, %c0_112] : memref<30x128x128xf32, #tpu.memory_space<vmem>>, vector<1x128x128xf32>
    %196 = vector.shape_cast %195 : vector<1x128x128xf32> to vector<128x128xf32>
    %cst_113 = arith.constant dense<0.000000e+00> : vector<8x128xf32>
    %197 = tpu.matmul %89, %196, %cst_113 {dimension_numbers = #tpu.dot_dimension_numbers<[1], [0], [0], [1], [0, 0, 1, 1], [], []>} : vector<8x128xf32>, vector<128x128xf32>, vector<8x128xf32> -> vector<8x128xf32>
    %c26_114 = arith.constant 26 : index
    %c0_115 = arith.constant 0 : index
    %c0_116 = arith.constant 0 : index
    %198 = vector.load %arg2[%c26_114, %c0_115, %c0_116] : memref<30x128x128xf32, #tpu.memory_space<vmem>>, vector<1x128x128xf32>
    %199 = vector.shape_cast %198 : vector<1x128x128xf32> to vector<128x128xf32>
    %cst_117 = arith.constant dense<0.000000e+00> : vector<8x128xf32>
    %200 = tpu.matmul %194, %199, %cst_117 {dimension_numbers = #tpu.dot_dimension_numbers<[1], [0], [0], [1], [0, 0, 1, 1], [], []>} : vector<8x128xf32>, vector<128x128xf32>, vector<8x128xf32> -> vector<8x128xf32>
    %201 = arith.mulf %197, %200 : vector<8x128xf32>
    %c23_118 = arith.constant 23 : index
    %c0_119 = arith.constant 0 : index
    %c0_120 = arith.constant 0 : index
    %202 = vector.load %arg2[%c23_118, %c0_119, %c0_120] : memref<30x128x128xf32, #tpu.memory_space<vmem>>, vector<1x128x128xf32>
    %203 = vector.shape_cast %202 : vector<1x128x128xf32> to vector<128x128xf32>
    %cst_121 = arith.constant dense<0.000000e+00> : vector<8x128xf32>
    %204 = tpu.matmul %89, %203, %cst_121 {dimension_numbers = #tpu.dot_dimension_numbers<[1], [0], [0], [1], [0, 0, 1, 1], [], []>} : vector<8x128xf32>, vector<128x128xf32>, vector<8x128xf32> -> vector<8x128xf32>
    %c27_122 = arith.constant 27 : index
    %c0_123 = arith.constant 0 : index
    %c0_124 = arith.constant 0 : index
    %205 = vector.load %arg2[%c27_122, %c0_123, %c0_124] : memref<30x128x128xf32, #tpu.memory_space<vmem>>, vector<1x128x128xf32>
    %206 = vector.shape_cast %205 : vector<1x128x128xf32> to vector<128x128xf32>
    %cst_125 = arith.constant dense<0.000000e+00> : vector<8x128xf32>
    %207 = tpu.matmul %194, %206, %cst_125 {dimension_numbers = #tpu.dot_dimension_numbers<[1], [0], [0], [1], [0, 0, 1, 1], [], []>} : vector<8x128xf32>, vector<128x128xf32>, vector<8x128xf32> -> vector<8x128xf32>
    %208 = arith.mulf %204, %207 : vector<8x128xf32>
    %209 = arith.addf %201, %208 : vector<8x128xf32>
    %c24_126 = arith.constant 24 : index
    %c0_127 = arith.constant 0 : index
    %c0_128 = arith.constant 0 : index
    %210 = vector.load %arg2[%c24_126, %c0_127, %c0_128] : memref<30x128x128xf32, #tpu.memory_space<vmem>>, vector<1x128x128xf32>
    %211 = vector.shape_cast %210 : vector<1x128x128xf32> to vector<128x128xf32>
    %cst_129 = arith.constant dense<0.000000e+00> : vector<8x128xf32>
    %212 = tpu.matmul %89, %211, %cst_129 {dimension_numbers = #tpu.dot_dimension_numbers<[1], [0], [0], [1], [0, 0, 1, 1], [], []>} : vector<8x128xf32>, vector<128x128xf32>, vector<8x128xf32> -> vector<8x128xf32>
    %c28_130 = arith.constant 28 : index
    %c0_131 = arith.constant 0 : index
    %c0_132 = arith.constant 0 : index
    %213 = vector.load %arg2[%c28_130, %c0_131, %c0_132] : memref<30x128x128xf32, #tpu.memory_space<vmem>>, vector<1x128x128xf32>
    %214 = vector.shape_cast %213 : vector<1x128x128xf32> to vector<128x128xf32>
    %cst_133 = arith.constant dense<0.000000e+00> : vector<8x128xf32>
    %215 = tpu.matmul %194, %214, %cst_133 {dimension_numbers = #tpu.dot_dimension_numbers<[1], [0], [0], [1], [0, 0, 1, 1], [], []>} : vector<8x128xf32>, vector<128x128xf32>, vector<8x128xf32> -> vector<8x128xf32>
    %216 = arith.mulf %212, %215 : vector<8x128xf32>
    %217 = arith.addf %209, %216 : vector<8x128xf32>
    %c25_134 = arith.constant 25 : index
    %c0_135 = arith.constant 0 : index
    %c0_136 = arith.constant 0 : index
    %218 = vector.load %arg2[%c25_134, %c0_135, %c0_136] : memref<30x128x128xf32, #tpu.memory_space<vmem>>, vector<1x128x128xf32>
    %219 = vector.shape_cast %218 : vector<1x128x128xf32> to vector<128x128xf32>
    %cst_137 = arith.constant dense<0.000000e+00> : vector<8x128xf32>
    %220 = tpu.matmul %89, %219, %cst_137 {dimension_numbers = #tpu.dot_dimension_numbers<[1], [0], [0], [1], [0, 0, 1, 1], [], []>} : vector<8x128xf32>, vector<128x128xf32>, vector<8x128xf32> -> vector<8x128xf32>
    %c29_138 = arith.constant 29 : index
    %c0_139 = arith.constant 0 : index
    %c0_140 = arith.constant 0 : index
    %221 = vector.load %arg2[%c29_138, %c0_139, %c0_140] : memref<30x128x128xf32, #tpu.memory_space<vmem>>, vector<1x128x128xf32>
    %222 = vector.shape_cast %221 : vector<1x128x128xf32> to vector<128x128xf32>
    %cst_141 = arith.constant dense<0.000000e+00> : vector<8x128xf32>
    %223 = tpu.matmul %194, %222, %cst_141 {dimension_numbers = #tpu.dot_dimension_numbers<[1], [0], [0], [1], [0, 0, 1, 1], [], []>} : vector<8x128xf32>, vector<128x128xf32>, vector<8x128xf32> -> vector<8x128xf32>
    %224 = arith.mulf %220, %223 : vector<8x128xf32>
    %225 = arith.addf %217, %224 : vector<8x128xf32>
    %cst_142 = arith.constant 0.000000e+00 : f32
    %226 = vector.broadcast %cst_142 : f32 to vector<8x128xf32>
    %227 = arith.maximumf %225, %226 : vector<8x128xf32>
    %c18 = arith.constant 18 : index
    %c0_143 = arith.constant 0 : index
    %c0_144 = arith.constant 0 : index
    %228 = vector.load %arg2[%c18, %c0_143, %c0_144] : memref<30x128x128xf32, #tpu.memory_space<vmem>>, vector<1x128x128xf32>
    %229 = vector.shape_cast %228 : vector<1x128x128xf32> to vector<128x128xf32>
    %cst_145 = arith.constant dense<0.000000e+00> : vector<8x128xf32>
    %230 = tpu.matmul %227, %229, %cst_145 {dimension_numbers = #tpu.dot_dimension_numbers<[1], [0], [0], [1], [0, 0, 1, 1], [], []>} : vector<8x128xf32>, vector<128x128xf32>, vector<8x128xf32> -> vector<8x128xf32>
    %231 = vector.extract_strided_slice %0 {offsets = [15, 0], sizes = [1, 128], strides = [1, 1]} : vector<24x128xf32> to vector<1x128xf32>
    %232 = vector.broadcast %231 : vector<1x128xf32> to vector<8x128xf32>
    %233 = arith.addf %230, %232 : vector<8x128xf32>
    %c22_146 = arith.constant 22 : index
    %c0_147 = arith.constant 0 : index
    %c0_148 = arith.constant 0 : index
    %234 = vector.load %arg2[%c22_146, %c0_147, %c0_148] : memref<30x128x128xf32, #tpu.memory_space<vmem>>, vector<1x128x128xf32>
    %235 = vector.shape_cast %234 : vector<1x128x128xf32> to vector<128x128xf32>
    %cst_149 = arith.constant dense<0.000000e+00> : vector<8x128xf32>
    %236 = tpu.matmul %117, %235, %cst_149 {dimension_numbers = #tpu.dot_dimension_numbers<[1], [0], [0], [1], [0, 0, 1, 1], [], []>} : vector<8x128xf32>, vector<128x128xf32>, vector<8x128xf32> -> vector<8x128xf32>
    %c26_150 = arith.constant 26 : index
    %c0_151 = arith.constant 0 : index
    %c0_152 = arith.constant 0 : index
    %237 = vector.load %arg2[%c26_150, %c0_151, %c0_152] : memref<30x128x128xf32, #tpu.memory_space<vmem>>, vector<1x128x128xf32>
    %238 = vector.shape_cast %237 : vector<1x128x128xf32> to vector<128x128xf32>
    %cst_153 = arith.constant dense<0.000000e+00> : vector<8x128xf32>
    %239 = tpu.matmul %233, %238, %cst_153 {dimension_numbers = #tpu.dot_dimension_numbers<[1], [0], [0], [1], [0, 0, 1, 1], [], []>} : vector<8x128xf32>, vector<128x128xf32>, vector<8x128xf32> -> vector<8x128xf32>
    %240 = arith.mulf %236, %239 : vector<8x128xf32>
    %c23_154 = arith.constant 23 : index
    %c0_155 = arith.constant 0 : index
    %c0_156 = arith.constant 0 : index
    %241 = vector.load %arg2[%c23_154, %c0_155, %c0_156] : memref<30x128x128xf32, #tpu.memory_space<vmem>>, vector<1x128x128xf32>
    %242 = vector.shape_cast %241 : vector<1x128x128xf32> to vector<128x128xf32>
    %cst_157 = arith.constant dense<0.000000e+00> : vector<8x128xf32>
    %243 = tpu.matmul %117, %242, %cst_157 {dimension_numbers = #tpu.dot_dimension_numbers<[1], [0], [0], [1], [0, 0, 1, 1], [], []>} : vector<8x128xf32>, vector<128x128xf32>, vector<8x128xf32> -> vector<8x128xf32>
    %c27_158 = arith.constant 27 : index
    %c0_159 = arith.constant 0 : index
    %c0_160 = arith.constant 0 : index
    %244 = vector.load %arg2[%c27_158, %c0_159, %c0_160] : memref<30x128x128xf32, #tpu.memory_space<vmem>>, vector<1x128x128xf32>
    %245 = vector.shape_cast %244 : vector<1x128x128xf32> to vector<128x128xf32>
    %cst_161 = arith.constant dense<0.000000e+00> : vector<8x128xf32>
    %246 = tpu.matmul %233, %245, %cst_161 {dimension_numbers = #tpu.dot_dimension_numbers<[1], [0], [0], [1], [0, 0, 1, 1], [], []>} : vector<8x128xf32>, vector<128x128xf32>, vector<8x128xf32> -> vector<8x128xf32>
    %247 = arith.mulf %243, %246 : vector<8x128xf32>
    %248 = arith.addf %240, %247 : vector<8x128xf32>
    %c24_162 = arith.constant 24 : index
    %c0_163 = arith.constant 0 : index
    %c0_164 = arith.constant 0 : index
    %249 = vector.load %arg2[%c24_162, %c0_163, %c0_164] : memref<30x128x128xf32, #tpu.memory_space<vmem>>, vector<1x128x128xf32>
    %250 = vector.shape_cast %249 : vector<1x128x128xf32> to vector<128x128xf32>
    %cst_165 = arith.constant dense<0.000000e+00> : vector<8x128xf32>
    %251 = tpu.matmul %117, %250, %cst_165 {dimension_numbers = #tpu.dot_dimension_numbers<[1], [0], [0], [1], [0, 0, 1, 1], [], []>} : vector<8x128xf32>, vector<128x128xf32>, vector<8x128xf32> -> vector<8x128xf32>
    %c28_166 = arith.constant 28 : index
    %c0_167 = arith.constant 0 : index
    %c0_168 = arith.constant 0 : index
    %252 = vector.load %arg2[%c28_166, %c0_167, %c0_168] : memref<30x128x128xf32, #tpu.memory_space<vmem>>, vector<1x128x128xf32>
    %253 = vector.shape_cast %252 : vector<1x128x128xf32> to vector<128x128xf32>
    %cst_169 = arith.constant dense<0.000000e+00> : vector<8x128xf32>
    %254 = tpu.matmul %233, %253, %cst_169 {dimension_numbers = #tpu.dot_dimension_numbers<[1], [0], [0], [1], [0, 0, 1, 1], [], []>} : vector<8x128xf32>, vector<128x128xf32>, vector<8x128xf32> -> vector<8x128xf32>
    %255 = arith.mulf %251, %254 : vector<8x128xf32>
    %256 = arith.addf %248, %255 : vector<8x128xf32>
    %c25_170 = arith.constant 25 : index
    %c0_171 = arith.constant 0 : index
    %c0_172 = arith.constant 0 : index
    %257 = vector.load %arg2[%c25_170, %c0_171, %c0_172] : memref<30x128x128xf32, #tpu.memory_space<vmem>>, vector<1x128x128xf32>
    %258 = vector.shape_cast %257 : vector<1x128x128xf32> to vector<128x128xf32>
    %cst_173 = arith.constant dense<0.000000e+00> : vector<8x128xf32>
    %259 = tpu.matmul %117, %258, %cst_173 {dimension_numbers = #tpu.dot_dimension_numbers<[1], [0], [0], [1], [0, 0, 1, 1], [], []>} : vector<8x128xf32>, vector<128x128xf32>, vector<8x128xf32> -> vector<8x128xf32>
    %c29_174 = arith.constant 29 : index
    %c0_175 = arith.constant 0 : index
    %c0_176 = arith.constant 0 : index
    %260 = vector.load %arg2[%c29_174, %c0_175, %c0_176] : memref<30x128x128xf32, #tpu.memory_space<vmem>>, vector<1x128x128xf32>
    %261 = vector.shape_cast %260 : vector<1x128x128xf32> to vector<128x128xf32>
    %cst_177 = arith.constant dense<0.000000e+00> : vector<8x128xf32>
    %262 = tpu.matmul %233, %261, %cst_177 {dimension_numbers = #tpu.dot_dimension_numbers<[1], [0], [0], [1], [0, 0, 1, 1], [], []>} : vector<8x128xf32>, vector<128x128xf32>, vector<8x128xf32> -> vector<8x128xf32>
    %263 = arith.mulf %259, %262 : vector<8x128xf32>
    %264 = arith.addf %256, %263 : vector<8x128xf32>
    %cst_178 = arith.constant 0.000000e+00 : f32
    %265 = vector.broadcast %cst_178 : f32 to vector<8x128xf32>
    %266 = arith.maximumf %264, %265 : vector<8x128xf32>
    %c19 = arith.constant 19 : index
    %c0_179 = arith.constant 0 : index
    %c0_180 = arith.constant 0 : index
    %267 = vector.load %arg2[%c19, %c0_179, %c0_180] : memref<30x128x128xf32, #tpu.memory_space<vmem>>, vector<1x128x128xf32>
    %268 = vector.shape_cast %267 : vector<1x128x128xf32> to vector<128x128xf32>
    %cst_181 = arith.constant dense<0.000000e+00> : vector<8x128xf32>
    %269 = tpu.matmul %266, %268, %cst_181 {dimension_numbers = #tpu.dot_dimension_numbers<[1], [0], [0], [1], [0, 0, 1, 1], [], []>} : vector<8x128xf32>, vector<128x128xf32>, vector<8x128xf32> -> vector<8x128xf32>
    %270 = vector.extract_strided_slice %0 {offsets = [16, 0], sizes = [1, 128], strides = [1, 1]} : vector<24x128xf32> to vector<1x128xf32>
    %271 = vector.broadcast %270 : vector<1x128xf32> to vector<8x128xf32>
    %272 = arith.addf %269, %271 : vector<8x128xf32>
    %c22_182 = arith.constant 22 : index
    %c0_183 = arith.constant 0 : index
    %c0_184 = arith.constant 0 : index
    %273 = vector.load %arg2[%c22_182, %c0_183, %c0_184] : memref<30x128x128xf32, #tpu.memory_space<vmem>>, vector<1x128x128xf32>
    %274 = vector.shape_cast %273 : vector<1x128x128xf32> to vector<128x128xf32>
    %cst_185 = arith.constant dense<0.000000e+00> : vector<8x128xf32>
    %275 = tpu.matmul %149, %274, %cst_185 {dimension_numbers = #tpu.dot_dimension_numbers<[1], [0], [0], [1], [0, 0, 1, 1], [], []>} : vector<8x128xf32>, vector<128x128xf32>, vector<8x128xf32> -> vector<8x128xf32>
    %c26_186 = arith.constant 26 : index
    %c0_187 = arith.constant 0 : index
    %c0_188 = arith.constant 0 : index
    %276 = vector.load %arg2[%c26_186, %c0_187, %c0_188] : memref<30x128x128xf32, #tpu.memory_space<vmem>>, vector<1x128x128xf32>
    %277 = vector.shape_cast %276 : vector<1x128x128xf32> to vector<128x128xf32>
    %cst_189 = arith.constant dense<0.000000e+00> : vector<8x128xf32>
    %278 = tpu.matmul %272, %277, %cst_189 {dimension_numbers = #tpu.dot_dimension_numbers<[1], [0], [0], [1], [0, 0, 1, 1], [], []>} : vector<8x128xf32>, vector<128x128xf32>, vector<8x128xf32> -> vector<8x128xf32>
    %279 = arith.mulf %275, %278 : vector<8x128xf32>
    %c23_190 = arith.constant 23 : index
    %c0_191 = arith.constant 0 : index
    %c0_192 = arith.constant 0 : index
    %280 = vector.load %arg2[%c23_190, %c0_191, %c0_192] : memref<30x128x128xf32, #tpu.memory_space<vmem>>, vector<1x128x128xf32>
    %281 = vector.shape_cast %280 : vector<1x128x128xf32> to vector<128x128xf32>
    %cst_193 = arith.constant dense<0.000000e+00> : vector<8x128xf32>
    %282 = tpu.matmul %149, %281, %cst_193 {dimension_numbers = #tpu.dot_dimension_numbers<[1], [0], [0], [1], [0, 0, 1, 1], [], []>} : vector<8x128xf32>, vector<128x128xf32>, vector<8x128xf32> -> vector<8x128xf32>
    %c27_194 = arith.constant 27 : index
    %c0_195 = arith.constant 0 : index
    %c0_196 = arith.constant 0 : index
    %283 = vector.load %arg2[%c27_194, %c0_195, %c0_196] : memref<30x128x128xf32, #tpu.memory_space<vmem>>, vector<1x128x128xf32>
    %284 = vector.shape_cast %283 : vector<1x128x128xf32> to vector<128x128xf32>
    %cst_197 = arith.constant dense<0.000000e+00> : vector<8x128xf32>
    %285 = tpu.matmul %272, %284, %cst_197 {dimension_numbers = #tpu.dot_dimension_numbers<[1], [0], [0], [1], [0, 0, 1, 1], [], []>} : vector<8x128xf32>, vector<128x128xf32>, vector<8x128xf32> -> vector<8x128xf32>
    %286 = arith.mulf %282, %285 : vector<8x128xf32>
    %287 = arith.addf %279, %286 : vector<8x128xf32>
    %c24_198 = arith.constant 24 : index
    %c0_199 = arith.constant 0 : index
    %c0_200 = arith.constant 0 : index
    %288 = vector.load %arg2[%c24_198, %c0_199, %c0_200] : memref<30x128x128xf32, #tpu.memory_space<vmem>>, vector<1x128x128xf32>
    %289 = vector.shape_cast %288 : vector<1x128x128xf32> to vector<128x128xf32>
    %cst_201 = arith.constant dense<0.000000e+00> : vector<8x128xf32>
    %290 = tpu.matmul %149, %289, %cst_201 {dimension_numbers = #tpu.dot_dimension_numbers<[1], [0], [0], [1], [0, 0, 1, 1], [], []>} : vector<8x128xf32>, vector<128x128xf32>, vector<8x128xf32> -> vector<8x128xf32>
    %c28_202 = arith.constant 28 : index
    %c0_203 = arith.constant 0 : index
    %c0_204 = arith.constant 0 : index
    %291 = vector.load %arg2[%c28_202, %c0_203, %c0_204] : memref<30x128x128xf32, #tpu.memory_space<vmem>>, vector<1x128x128xf32>
    %292 = vector.shape_cast %291 : vector<1x128x128xf32> to vector<128x128xf32>
    %cst_205 = arith.constant dense<0.000000e+00> : vector<8x128xf32>
    %293 = tpu.matmul %272, %292, %cst_205 {dimension_numbers = #tpu.dot_dimension_numbers<[1], [0], [0], [1], [0, 0, 1, 1], [], []>} : vector<8x128xf32>, vector<128x128xf32>, vector<8x128xf32> -> vector<8x128xf32>
    %294 = arith.mulf %290, %293 : vector<8x128xf32>
    %295 = arith.addf %287, %294 : vector<8x128xf32>
    %c25_206 = arith.constant 25 : index
    %c0_207 = arith.constant 0 : index
    %c0_208 = arith.constant 0 : index
    %296 = vector.load %arg2[%c25_206, %c0_207, %c0_208] : memref<30x128x128xf32, #tpu.memory_space<vmem>>, vector<1x128x128xf32>
    %297 = vector.shape_cast %296 : vector<1x128x128xf32> to vector<128x128xf32>
    %cst_209 = arith.constant dense<0.000000e+00> : vector<8x128xf32>
    %298 = tpu.matmul %149, %297, %cst_209 {dimension_numbers = #tpu.dot_dimension_numbers<[1], [0], [0], [1], [0, 0, 1, 1], [], []>} : vector<8x128xf32>, vector<128x128xf32>, vector<8x128xf32> -> vector<8x128xf32>
    %c29_210 = arith.constant 29 : index
    %c0_211 = arith.constant 0 : index
    %c0_212 = arith.constant 0 : index
    %299 = vector.load %arg2[%c29_210, %c0_211, %c0_212] : memref<30x128x128xf32, #tpu.memory_space<vmem>>, vector<1x128x128xf32>
    %300 = vector.shape_cast %299 : vector<1x128x128xf32> to vector<128x128xf32>
    %cst_213 = arith.constant dense<0.000000e+00> : vector<8x128xf32>
    %301 = tpu.matmul %272, %300, %cst_213 {dimension_numbers = #tpu.dot_dimension_numbers<[1], [0], [0], [1], [0, 0, 1, 1], [], []>} : vector<8x128xf32>, vector<128x128xf32>, vector<8x128xf32> -> vector<8x128xf32>
    %302 = arith.mulf %298, %301 : vector<8x128xf32>
    %303 = arith.addf %295, %302 : vector<8x128xf32>
    %cst_214 = arith.constant 0.000000e+00 : f32
    %304 = vector.broadcast %cst_214 : f32 to vector<8x128xf32>
    %305 = arith.maximumf %303, %304 : vector<8x128xf32>
    %c20 = arith.constant 20 : index
    %c0_215 = arith.constant 0 : index
    %c0_216 = arith.constant 0 : index
    %306 = vector.load %arg2[%c20, %c0_215, %c0_216] : memref<30x128x128xf32, #tpu.memory_space<vmem>>, vector<1x128x128xf32>
    %307 = vector.shape_cast %306 : vector<1x128x128xf32> to vector<128x128xf32>
    %cst_217 = arith.constant dense<0.000000e+00> : vector<8x128xf32>
    %308 = tpu.matmul %305, %307, %cst_217 {dimension_numbers = #tpu.dot_dimension_numbers<[1], [0], [0], [1], [0, 0, 1, 1], [], []>} : vector<8x128xf32>, vector<128x128xf32>, vector<8x128xf32> -> vector<8x128xf32>
    %309 = vector.extract_strided_slice %0 {offsets = [17, 0], sizes = [1, 128], strides = [1, 1]} : vector<24x128xf32> to vector<1x128xf32>
    %310 = vector.broadcast %309 : vector<1x128xf32> to vector<8x128xf32>
    %311 = arith.addf %308, %310 : vector<8x128xf32>
    %c0_218 = arith.constant 0 : index
    %c0_219 = arith.constant 0 : index
    %312 = vector.load %arg4[%c0_218, %c0_219] : memref<8x128xf32, #tpu.memory_space<vmem>>, vector<8x128xf32>
    tpu.vector_store %arg4[%c0_218, %c0_219], %311 {strides = array<i32>} : memref<8x128xf32, #tpu.memory_space<vmem>>, vector<8x128xf32>,
    return
  }
  func.func @transform_0(%arg0: i32) -> (i32, i32) {
    %c0_i32 = arith.constant 0 : i32
    %c0_i32_0 = arith.constant 0 : i32
    %c0_i32_1 = arith.constant 0 : i32
    return %c0_i32, %c0_i32_0 : i32, i32
  }
  func.func @transform_1(%arg0: i32) -> (i32, i32, i32) {
    %c0_i32 = arith.constant 0 : i32
    %c0_i32_0 = arith.constant 0 : i32
    %c0_i32_1 = arith.constant 0 : i32
    %c0_i32_2 = arith.constant 0 : i32
    return %c0_i32, %c0_i32_0, %c0_i32_1 : i32, i32, i32
  }
  func.func @transform_2(%arg0: i32) -> (i32, i32) {
    %c0_i32 = arith.constant 0 : i32
    %c0_i32_0 = arith.constant 0 : i32
    %c0_i32_1 = arith.constant 0 : i32
    return %c0_i32, %c0_i32_0 : i32, i32
  }
  func.func @transform_3(%arg0: i32) -> (i32, i32) {
    %c0_i32 = arith.constant 0 : i32
    %c0_i32_0 = arith.constant 0 : i32
    %c0_i32_1 = arith.constant 0 : i32
    return %c0_i32, %c0_i32_0 : i32, i32
  }
}

</mosaic_0001>

<llo_original>
// kernel: softnet_forward.1
$region0: #{softnet_forward.1}
  #allocation0 [shape = 'u32[]', space=smem, size = 0x4, offset = 0x4, fixed_abs, tag = 'smem constant byte address 0x4 - core index']
  #allocation1 [shape = 'u32[144,128]{1,0:T(1,128)}', space=vmem, size = 0x12000, scoped, tag = 'internal scratch']
  %s0 = inlined_call_operand.vmem [shape: f32[8,128], index: 0, kind: input, shape index: {}]
  %s1 = inlined_call_operand.hbm [shape: f32[30,128,128], index: 1, kind: input, shape index: {}]
  %s2 = inlined_call_operand.hbm [shape: f32[24,128], index: 2, kind: input, shape index: {}]
  %s3 = inlined_call_operand.hbm [shape: f32[8,128], index: 3, kind: output, shape index: {}]
  %s4 = sld [smem:[#allocation0]]
  $region30: #{softnet_forward.1} parent=0
    _
  %s6 = ssub.s32 1, %s4
  %s7 = scalar_select 0, %s6, %s4
  $region1: #{softnet_forward.1} parent=0
    #allocation2 [shape = 'u8[1966080]{0}', space=vmem, size = 0x1e0000, scoped, tag = 'input window, operand 1, single buffered']
    #allocation3 [shape = 's32[1]{0}', space=sflag, size = 0x4, scoped, tag = 'scoped memory for softnet_forward.1']
    #allocation4 [shape = 's32[1]{0}', space=sflag, size = 0x4, scoped, tag = 'scoped memory for softnet_forward.1']
    #allocation5 [shape = 'u8[12288]{0}', space=vmem, size = 0x3000, scoped, tag = 'input window, operand 2, single buffered']
    #allocation6 [shape = 's32[1]{0}', space=sflag, size = 0x4, scoped, tag = 'scoped memory for softnet_forward.1']
    #allocation7 [shape = 'u8[4096]{0}', space=vmem, size = 0x1000, scoped, tag = 'output window, operand 0, single buffered']
    %8 = vsyncpa [#allocation3], 0
    %9 = vsyncpa [#allocation6], 0
    %10 = vsyncpa [#allocation4], 0
    // Predicated region
    $region2: #{softnet_forward.1} parent=1 // pred_check
      _
    $region3: #{softnet_forward.1} parent=1 // pred_check_branch
      %12 = sbr.rel (0) target = $region5
    $region4: #{softnet_forward.1} parent=1 // pred_region
      _
    $region5: #{softnet_forward.1} parent=1 // pred_fallthru
      _
    // Predicated region
    $region6: #{softnet_forward.1} parent=1 // pred_check
      _
    $region7: #{softnet_forward.1} parent=1 // pred_check_branch
      %14 = sbr.rel (0) target = $region9
    $region8: #{softnet_forward.1} parent=1 // pred_region
      %s16 = ssub.s32 61440, 61440
      %17 = vsyncadd [#allocation3], %s16
      %s18 = sshll.u32 [#allocation2], 4
      %s19 = int_to_ptr.vmem [resolvable:$true] %s18
      %24 = dma.hbm_to_vmem [thread:$0]  %s1, 61440, %s19, [#allocation3], 128, 128, 8
    $region9: #{softnet_forward.1} parent=1 // pred_fallthru
      _
    // Predicated region
    $region10: #{softnet_forward.1} parent=1 // pred_check
      _
    $region11: #{softnet_forward.1} parent=1 // pred_check_branch
      %26 = sbr.rel (0) target = $region13
    $region12: #{softnet_forward.1} parent=1 // pred_region
      %s28 = ssub.s32 384, 384
      %29 = vsyncadd [#allocation6], %s28
      %s30 = sshll.u32 [#allocation5], 4
      %s31 = int_to_ptr.vmem [resolvable:$true] %s30
      %36 = dma.hbm_to_vmem [thread:$0]  %s2, 384, %s31, [#allocation6], 128, 128, 8
    $region13: #{softnet_forward.1} parent=1 // pred_fallthru
      _
    // Predicated region
    $region14: #{softnet_forward.1} parent=1 // pred_check
      _
    $region15: #{softnet_forward.1} parent=1 // pred_check_branch
      %38 = sbr.rel (0) target = $region17
    $region16: #{softnet_forward.1} parent=1 // pred_region
      %39 = dma.done [#allocation3], 61440
    $region17: #{softnet_forward.1} parent=1 // pred_fallthru
      _
    // Predicated region
    $region18: #{softnet_forward.1} parent=1 // pred_check
      _
    $region19: #{softnet_forward.1} parent=1 // pred_check_branch
      %41 = sbr.rel (0) target = $region21
    $region20: #{softnet_forward.1} parent=1 // pred_region
      %42 = dma.done [#allocation6], 384
    $region21: #{softnet_forward.1} parent=1 // pred_fallthru
      _
    %v43 = vld [vmem:[#allocation5] sm:$0xff]
    %v44 = vld [vmem:[#allocation5 + $0x8] sm:$0xff]
    %v45 = vld [vmem:[#allocation5 + $0x10] sm:$0xff]
    %v46 = vld [vmem:[%s0] sm:$0xff]
    %v47 = vld [vmem:[#allocation2] sm:$0xff]
    %v48 = vld [vmem:[#allocation2 + $0x8] sm:$0xff]
    %v49 = vld [vmem:[#allocation2 + $0x10] sm:$0xff]
    %v50 = vld [vmem:[#allocation2 + $0x18] sm:$0xff]
    %v51 = vld [vmem:[#allocation2 + $0x20] sm:$0xff]
    %v52 = vld [vmem:[#allocation2 + $0x28] sm:$0xff]
    %v53 = vld [vmem:[#allocation2 + $0x30] sm:$0xff]
    %v54 = vld [vmem:[#allocation2 + $0x38] sm:$0xff]
    %v55 = vld [vmem:[#allocation2 + $0x40] sm:$0xff]
    %v56 = vld [vmem:[#allocation2 + $0x48] sm:$0xff]
    %v57 = vld [vmem:[#allocation2 + $0x50] sm:$0xff]
    %v58 = vld [vmem:[#allocation2 + $0x58] sm:$0xff]
    %v59 = vld [vmem:[#allocation2 + $0x60] sm:$0xff]
    %v60 = vld [vmem:[#allocation2 + $0x68] sm:$0xff]
    %v61 = vld [vmem:[#allocation2 + $0x70] sm:$0xff]
    %v62 = vld [vmem:[#allocation2 + $0x78] sm:$0xff]
    %v63 = vlaneseq
    %v64 = vshrl.u32 %v63, 7
    %v65 = vsub.s32 0, %v64
    %v66 = vrot.slane %v43, %v65
    %67 = vmatprep.subr.mxu0 0.0
    %68 = vmatpush1.msra.mxu0 %v47
    %69 = vmatprep.subr.mxu0 0.0
    %70 = vmatpush1.msra.mxu0 %v48
    %71 = vmatprep.subr.mxu0 0.0
    %72 = vmatpush1.msra.mxu0 %v49
    %73 = vmatprep.subr.mxu0 0.0
    %74 = vmatpush1.msra.mxu0 %v50
    %75 = vmatprep.subr.mxu0 0.0
    %76 = vmatpush1.msra.mxu0 %v51
    %77 = vmatprep.subr.mxu0 0.0
    %78 = vmatpush1.msra.mxu0 %v52
    %79 = vmatprep.subr.mxu0 0.0
    %80 = vmatpush1.msra.mxu0 %v53
    %81 = vmatprep.subr.mxu0 0.0
    %82 = vmatpush1.msra.mxu0 %v54
    %83 = vmatprep.subr.mxu0 0.0
    %84 = vmatpush1.msra.mxu0 %v55
    %85 = vmatprep.subr.mxu0 0.0
    %86 = vmatpush1.msra.mxu0 %v56
    %87 = vmatprep.subr.mxu0 0.0
    %88 = vmatpush1.msra.mxu0 %v57
    %89 = vmatprep.subr.mxu0 0.0
    %90 = vmatpush1.msra.mxu0 %v58
    %91 = vmatprep.subr.mxu0 0.0
    %92 = vmatpush1.msra.mxu0 %v59
    %93 = vmatprep.subr.mxu0 0.0
    %94 = vmatpush1.msra.mxu0 %v60
    %95 = vmatprep.subr.mxu0 0.0
    %96 = vmatpush1.msra.mxu0 %v61
    %97 = vmatprep.subr.mxu0 0.0
    %98 = vmatpush1.msra.mxu0 %v62
    %99 = vmatprep.subr.mxu0 0.0
    %100 = vmatpush1.msra.mxu0 0.0
    %101 = vmatprep.subr.mxu0 0.0
    %102 = vmatpush1.msra.mxu0 0.0
    %103 = vmatprep.subr.mxu0 0.0
    %104 = vmatpush1.msra.mxu0 0.0
    %105 = vmatprep.subr.mxu0 0.0
    %106 = vmatpush1.msra.mxu0 0.0
    %107 = vmatprep.subr.mxu0 0.0
    %108 = vmatpush1.msra.mxu0 0.0
    %109 = vmatprep.subr.mxu0 0.0
    %110 = vmatpush1.msra.mxu0 0.0
    %111 = vmatprep.subr.mxu0 0.0
    %112 = vmatpush1.msra.mxu0 0.0
    %113 = vmatprep.subr.mxu0 0.0
    %114 = vmatpush1.msra.mxu0 0.0
    %115 = vmatprep.subr.mxu0 0.0
    %116 = vmatpush1.msra.mxu0 0.0
    %117 = vmatprep.subr.mxu0 0.0
    %118 = vmatpush1.msra.mxu0 0.0
    %119 = vmatprep.subr.mxu0 0.0
    %120 = vmatpush1.msra.mxu0 0.0
    %121 = vmatprep.subr.mxu0 0.0
    %122 = vmatpush1.msra.mxu0 0.0
    %123 = vmatprep.subr.mxu0 0.0
    %124 = vmatpush1.msra.mxu0 0.0
    %125 = vmatprep.subr.mxu0 0.0
    %126 = vmatpush1.msra.mxu0 0.0
    %127 = vmatprep.subr.mxu0 0.0
    %128 = vmatpush1.msra.mxu0 0.0
    %129 = vmatprep.subr.mxu0 0.0
    %130 = vmatpush1.msra.mxu0 0.0
    %131 = vmatprep.mubr.f32.mxu0 0.0
    %132 = vmatmul.mubr.f32.gmra.mrb[0].mxu0 %v46
    %v133 = vpop.f32.mrb[0].mxu0
    %v134 = vadd.f32 %v66, %v133
    %v135 = vpop.f32.mrb[0].mxu0
    %136 = vdwg.mxu0
    %v137 = vmax.f32 %v134, 0.0
    %s138 = scalar_lea.vmem [#allocation2], 128
    %v139 = vld [vmem:[%s138] sm:$0xff]
    %v140 = vld [vmem:[%s138 + $0x8] sm:$0xff]
    %v141 = vld [vmem:[%s138 + $0x10] sm:$0xff]
    %v142 = vld [vmem:[%s138 + $0x18] sm:$0xff]
    %v143 = vld [vmem:[%s138 + $0x20] sm:$0xff]
    %v144 = vld [vmem:[%s138 + $0x28] sm:$0xff]
    %v145 = vld [vmem:[%s138 + $0x30] sm:$0xff]
    %v146 = vld [vmem:[%s138 + $0x38] sm:$0xff]
    %v147 = vld [vmem:[%s138 + $0x40] sm:$0xff]
    %v148 = vld [vmem:[%s138 + $0x48] sm:$0xff]
    %v149 = vld [vmem:[%s138 + $0x50] sm:$0xff]
    %v150 = vld [vmem:[%s138 + $0x58] sm:$0xff]
    %v151 = vld [vmem:[%s138 + $0x60] sm:$0xff]
    %v152 = vld [vmem:[%s138 + $0x68] sm:$0xff]
    %v153 = vld [vmem:[%s138 + $0x70] sm:$0xff]
    %v154 = vld [vmem:[%s138 + $0x78] sm:$0xff]
    %v155 = vlaneseq
    %v156 = vshrl.u32 %v155, 7
    %v157 = vsub.s32 1, %v156
    %v158 = vrot.slane %v43, %v157
    %159 = vmatprep.subr.mxu0 0.0
    %160 = vmatpush1.msra.mxu0 %v139
    %161 = vmatprep.subr.mxu0 0.0
    %162 = vmatpush1.msra.mxu0 %v140
    %163 = vmatprep.subr.mxu0 0.0
    %164 = vmatpush1.msra.mxu0 %v141
    %165 = vmatprep.subr.mxu0 0.0
    %166 = vmatpush1.msra.mxu0 %v142
    %167 = vmatprep.subr.mxu0 0.0
    %168 = vmatpush1.msra.mxu0 %v143
    %169 = vmatprep.subr.mxu0 0.0
    %170 = vmatpush1.msra.mxu0 %v144
    %171 = vmatprep.subr.mxu0 0.0
    %172 = vmatpush1.msra.mxu0 %v145
    %173 = vmatprep.subr.mxu0 0.0
    %174 = vmatpush1.msra.mxu0 %v146
    %175 = vmatprep.subr.mxu0 0.0
    %176 = vmatpush1.msra.mxu0 %v147
    %177 = vmatprep.subr.mxu0 0.0
    %178 = vmatpush1.msra.mxu0 %v148
    %179 = vmatprep.subr.mxu0 0.0
    %180 = vmatpush1.msra.mxu0 %v149
    %181 = vmatprep.subr.mxu0 0.0
    %182 = vmatpush1.msra.mxu0 %v150
    %183 = vmatprep.subr.mxu0 0.0
    %184 = vmatpush1.msra.mxu0 %v151
    %185 = vmatprep.subr.mxu0 0.0
    %186 = vmatpush1.msra.mxu0 %v152
    %187 = vmatprep.subr.mxu0 0.0
    %188 = vmatpush1.msra.mxu0 %v153
    %189 = vmatprep.subr.mxu0 0.0
    %190 = vmatpush1.msra.mxu0 %v154
    %191 = vmatprep.subr.mxu0 0.0
    %192 = vmatpush1.msra.mxu0 0.0
    %193 = vmatprep.subr.mxu0 0.0
    %194 = vmatpush1.msra.mxu0 0.0
    %195 = vmatprep.subr.mxu0 0.0
    %196 = vmatpush1.msra.mxu0 0.0
    %197 = vmatprep.subr.mxu0 0.0
    %198 = vmatpush1.msra.mxu0 0.0
    %199 = vmatprep.subr.mxu0 0.0
    %200 = vmatpush1.msra.mxu0 0.0
    %201 = vmatprep.subr.mxu0 0.0
    %202 = vmatpush1.msra.mxu0 0.0
    %203 = vmatprep.subr.mxu0 0.0
    %204 = vmatpush1.msra.mxu0 0.0
    %205 = vmatprep.subr.mxu0 0.0
    %206 = vmatpush1.msra.mxu0 0.0
    %207 = vmatprep.subr.mxu0 0.0
    %208 = vmatpush1.msra.mxu0 0.0
    %209 = vmatprep.subr.mxu0 0.0
    %210 = vmatpush1.msra.mxu0 0.0
    %211 = vmatprep.subr.mxu0 0.0
    %212 = vmatpush1.msra.mxu0 0.0
    %213 = vmatprep.subr.mxu0 0.0
    %214 = vmatpush1.msra.mxu0 0.0
    %215 = vmatprep.subr.mxu0 0.0
    %216 = vmatpush1.msra.mxu0 0.0
    %217 = vmatprep.subr.mxu0 0.0
    %218 = vmatpush1.msra.mxu0 0.0
    %219 = vmatprep.subr.mxu0 0.0
    %220 = vmatpush1.msra.mxu0 0.0
    %221 = vmatprep.subr.mxu0 0.0
    %222 = vmatpush1.msra.mxu0 0.0
    %223 = vmatprep.mubr.f32.mxu0 0.0
    %224 = vmatmul.mubr.f32.gmra.mrb[0].mxu0 %v137
    %v225 = vpop.f32.mrb[0].mxu0
    %v226 = vadd.f32 %v158, %v225
    %v227 = vpop.f32.mrb[0].mxu0
    %228 = vdwg.mxu0
    %s229 = scalar_lea.vmem [#allocation2], 256
    %v230 = vld [vmem:[%s229] sm:$0xff]
    %v231 = vld [vmem:[%s229 + $0x8] sm:$0xff]
    %v232 = vld [vmem:[%s229 + $0x10] sm:$0xff]
    %v233 = vld [vmem:[%s229 + $0x18] sm:$0xff]
    %v234 = vld [vmem:[%s229 + $0x20] sm:$0xff]
    %v235 = vld [vmem:[%s229 + $0x28] sm:$0xff]
    %v236 = vld [vmem:[%s229 + $0x30] sm:$0xff]
    %v237 = vld [vmem:[%s229 + $0x38] sm:$0xff]
    %v238 = vld [vmem:[%s229 + $0x40] sm:$0xff]
    %v239 = vld [vmem:[%s229 + $0x48] sm:$0xff]
    %v240 = vld [vmem:[%s229 + $0x50] sm:$0xff]
    %v241 = vld [vmem:[%s229 + $0x58] sm:$0xff]
    %v242 = vld [vmem:[%s229 + $0x60] sm:$0xff]
    %v243 = vld [vmem:[%s229 + $0x68] sm:$0xff]
    %v244 = vld [vmem:[%s229 + $0x70] sm:$0xff]
    %v245 = vld [vmem:[%s229 + $0x78] sm:$0xff]
    %v246 = vlaneseq
    %v247 = vshrl.u32 %v246, 7
    %v248 = vsub.s32 2, %v247
    %v249 = vrot.slane %v43, %v248
    %250 = vmatprep.subr.mxu0 0.0
    %251 = vmatpush1.msra.mxu0 %v230
    %252 = vmatprep.subr.mxu0 0.0
    %253 = vmatpush1.msra.mxu0 %v231
    %254 = vmatprep.subr.mxu0 0.0
    %255 = vmatpush1.msra.mxu0 %v232
    %256 = vmatprep.subr.mxu0 0.0
    %257 = vmatpush1.msra.mxu0 %v233
    %258 = vmatprep.subr.mxu0 0.0
    %259 = vmatpush1.msra.mxu0 %v234
    %260 = vmatprep.subr.mxu0 0.0
    %261 = vmatpush1.msra.mxu0 %v235
    %262 = vmatprep.subr.mxu0 0.0
    %263 = vmatpush1.msra.mxu0 %v236
    %264 = vmatprep.subr.mxu0 0.0
    %265 = vmatpush1.msra.mxu0 %v237
    %266 = vmatprep.subr.mxu0 0.0
    %267 = vmatpush1.msra.mxu0 %v238
    %268 = vmatprep.subr.mxu0 0.0
    %269 = vmatpush1.msra.mxu0 %v239
    %270 = vmatprep.subr.mxu0 0.0
    %271 = vmatpush1.msra.mxu0 %v240
    %272 = vmatprep.subr.mxu0 0.0
    %273 = vmatpush1.msra.mxu0 %v241
    %274 = vmatprep.subr.mxu0 0.0
    %275 = vmatpush1.msra.mxu0 %v242
    %276 = vmatprep.subr.mxu0 0.0
    %277 = vmatpush1.msra.mxu0 %v243
    %278 = vmatprep.subr.mxu0 0.0
    %279 = vmatpush1.msra.mxu0 %v244
    %280 = vmatprep.subr.mxu0 0.0
    %281 = vmatpush1.msra.mxu0 %v245
    %282 = vmatprep.subr.mxu0 0.0
    %283 = vmatpush1.msra.mxu0 0.0
    %284 = vmatprep.subr.mxu0 0.0
    %285 = vmatpush1.msra.mxu0 0.0
    %286 = vmatprep.subr.mxu0 0.0
    %287 = vmatpush1.msra.mxu0 0.0
    %288 = vmatprep.subr.mxu0 0.0
    %289 = vmatpush1.msra.mxu0 0.0
    %290 = vmatprep.subr.mxu0 0.0
    %291 = vmatpush1.msra.mxu0 0.0
    %292 = vmatprep.subr.mxu0 0.0
    %293 = vmatpush1.msra.mxu0 0.0
    %294 = vmatprep.subr.mxu0 0.0
    %295 = vmatpush1.msra.mxu0 0.0
    %296 = vmatprep.subr.mxu0 0.0
    %297 = vmatpush1.msra.mxu0 0.0
    %298 = vmatprep.subr.mxu0 0.0
    %299 = vmatpush1.msra.mxu0 0.0
    %300 = vmatprep.subr.mxu0 0.0
    %301 = vmatpush1.msra.mxu0 0.0
    %302 = vmatprep.subr.mxu0 0.0
    %303 = vmatpush1.msra.mxu0 0.0
    %304 = vmatprep.subr.mxu0 0.0
    %305 = vmatpush1.msra.mxu0 0.0
    %306 = vmatprep.subr.mxu0 0.0
    %307 = vmatpush1.msra.mxu0 0.0
    %308 = vmatprep.subr.mxu0 0.0
    %309 = vmatpush1.msra.mxu0 0.0
    %310 = vmatprep.subr.mxu0 0.0
    %311 = vmatpush1.msra.mxu0 0.0
    %312 = vmatprep.subr.mxu0 0.0
    %313 = vmatpush1.msra.mxu0 0.0
    %314 = vmatprep.mubr.f32.mxu0 0.0
    %315 = vmatmul.mubr.f32.gmra.mrb[0].mxu0 %v46
    %v316 = vpop.f32.mrb[0].mxu0
    %v317 = vadd.f32 %v249, %v316
    %v318 = vpop.f32.mrb[0].mxu0
    %319 = vdwg.mxu0
    %v320 = vmax.f32 %v317, 0.0
    %s321 = scalar_lea.vmem [#allocation2], 384
    %v322 = vld [vmem:[%s321] sm:$0xff]
    %v323 = vld [vmem:[%s321 + $0x8] sm:$0xff]
    %v324 = vld [vmem:[%s321 + $0x10] sm:$0xff]
    %v325 = vld [vmem:[%s321 + $0x18] sm:$0xff]
    %v326 = vld [vmem:[%s321 + $0x20] sm:$0xff]
    %v327 = vld [vmem:[%s321 + $0x28] sm:$0xff]
    %v328 = vld [vmem:[%s321 + $0x30] sm:$0xff]
    %v329 = vld [vmem:[%s321 + $0x38] sm:$0xff]
    %v330 = vld [vmem:[%s321 + $0x40] sm:$0xff]
    %v331 = vld [vmem:[%s321 + $0x48] sm:$0xff]
    %v332 = vld [vmem:[%s321 + $0x50] sm:$0xff]
    %v333 = vld [vmem:[%s321 + $0x58] sm:$0xff]
    %v334 = vld [vmem:[%s321 + $0x60] sm:$0xff]
    %v335 = vld [vmem:[%s321 + $0x68] sm:$0xff]
    %v336 = vld [vmem:[%s321 + $0x70] sm:$0xff]
    %v337 = vld [vmem:[%s321 + $0x78] sm:$0xff]
    %v338 = vlaneseq
    %v339 = vshrl.u32 %v338, 7
    %v340 = vsub.s32 3, %v339
    %v341 = vrot.slane %v43, %v340
    %342 = vmatprep.subr.mxu0 0.0
    %343 = vmatpush1.msra.mxu0 %v322
    %344 = vmatprep.subr.mxu0 0.0
    %345 = vmatpush1.msra.mxu0 %v323
    %346 = vmatprep.subr.mxu0 0.0
    %347 = vmatpush1.msra.mxu0 %v324
    %348 = vmatprep.subr.mxu0 0.0
    %349 = vmatpush1.msra.mxu0 %v325
    %350 = vmatprep.subr.mxu0 0.0
    %351 = vmatpush1.msra.mxu0 %v326
    %352 = vmatprep.subr.mxu0 0.0
    %353 = vmatpush1.msra.mxu0 %v327
    %354 = vmatprep.subr.mxu0 0.0
    %355 = vmatpush1.msra.mxu0 %v328
    %356 = vmatprep.subr.mxu0 0.0
    %357 = vmatpush1.msra.mxu0 %v329
    %358 = vmatprep.subr.mxu0 0.0
    %359 = vmatpush1.msra.mxu0 %v330
    %360 = vmatprep.subr.mxu0 0.0
    %361 = vmatpush1.msra.mxu0 %v331
    %362 = vmatprep.subr.mxu0 0.0
    %363 = vmatpush1.msra.mxu0 %v332
    %364 = vmatprep.subr.mxu0 0.0
    %365 = vmatpush1.msra.mxu0 %v333
    %366 = vmatprep.subr.mxu0 0.0
    %367 = vmatpush1.msra.mxu0 %v334
    %368 = vmatprep.subr.mxu0 0.0
    %369 = vmatpush1.msra.mxu0 %v335
    %370 = vmatprep.subr.mxu0 0.0
    %371 = vmatpush1.msra.mxu0 %v336
    %372 = vmatprep.subr.mxu0 0.0
    %373 = vmatpush1.msra.mxu0 %v337
    %374 = vmatprep.subr.mxu0 0.0
    %375 = vmatpush1.msra.mxu0 0.0
    %376 = vmatprep.subr.mxu0 0.0
    %377 = vmatpush1.msra.mxu0 0.0
    %378 = vmatprep.subr.mxu0 0.0
    %379 = vmatpush1.msra.mxu0 0.0
    %380 = vmatprep.subr.mxu0 0.0
    %381 = vmatpush1.msra.mxu0 0.0
    %382 = vmatprep.subr.mxu0 0.0
    %383 = vmatpush1.msra.mxu0 0.0
    %384 = vmatprep.subr.mxu0 0.0
    %385 = vmatpush1.msra.mxu0 0.0
    %386 = vmatprep.subr.mxu0 0.0
    %387 = vmatpush1.msra.mxu0 0.0
    %388 = vmatprep.subr.mxu0 0.0
    %389 = vmatpush1.msra.mxu0 0.0
    %390 = vmatprep.subr.mxu0 0.0
    %391 = vmatpush1.msra.mxu0 0.0
    %392 = vmatprep.subr.mxu0 0.0
    %393 = vmatpush1.msra.mxu0 0.0
    %394 = vmatprep.subr.mxu0 0.0
    %395 = vmatpush1.msra.mxu0 0.0
    %396 = vmatprep.subr.mxu0 0.0
    %397 = vmatpush1.msra.mxu0 0.0
    %398 = vmatprep.subr.mxu0 0.0
    %399 = vmatpush1.msra.mxu0 0.0
    %400 = vmatprep.subr.mxu0 0.0
    %401 = vmatpush1.msra.mxu0 0.0
    %402 = vmatprep.subr.mxu0 0.0
    %403 = vmatpush1.msra.mxu0 0.0
    %404 = vmatprep.subr.mxu0 0.0
    %405 = vmatpush1.msra.mxu0 0.0
    %406 = vmatprep.mubr.f32.mxu0 0.0
    %407 = vmatmul.mubr.f32.gmra.mrb[0].mxu0 %v320
    %v408 = vpop.f32.mrb[0].mxu0
    %v409 = vadd.f32 %v341, %v408
    %v410 = vpop.f32.mrb[0].mxu0
    %411 = vdwg.mxu0
    %v412 = vmul.f32 %v409, %v226
    %v413 = vmax.f32 %v226, 0.0
    %v414 = vmax.f32 %v412, 0.0
    %s415 = scalar_lea.vmem [#allocation2], 512
    %v416 = vld [vmem:[%s415] sm:$0xff]
    %v417 = vld [vmem:[%s415 + $0x8] sm:$0xff]
    %v418 = vld [vmem:[%s415 + $0x10] sm:$0xff]
    %v419 = vld [vmem:[%s415 + $0x18] sm:$0xff]
    %v420 = vld [vmem:[%s415 + $0x20] sm:$0xff]
    %v421 = vld [vmem:[%s415 + $0x28] sm:$0xff]
    %v422 = vld [vmem:[%s415 + $0x30] sm:$0xff]
    %v423 = vld [vmem:[%s415 + $0x38] sm:$0xff]
    %v424 = vld [vmem:[%s415 + $0x40] sm:$0xff]
    %v425 = vld [vmem:[%s415 + $0x48] sm:$0xff]
    %v426 = vld [vmem:[%s415 + $0x50] sm:$0xff]
    %v427 = vld [vmem:[%s415 + $0x58] sm:$0xff]
    %v428 = vld [vmem:[%s415 + $0x60] sm:$0xff]
    %v429 = vld [vmem:[%s415 + $0x68] sm:$0xff]
    %v430 = vld [vmem:[%s415 + $0x70] sm:$0xff]
    %v431 = vld [vmem:[%s415 + $0x78] sm:$0xff]
    %v432 = vlaneseq
    %v433 = vshrl.u32 %v432, 7
    %v434 = vsub.s32 4, %v433
    %v435 = vrot.slane %v43, %v434
    %436 = vmatprep.subr.mxu0 0.0
    %437 = vmatpush1.msra.mxu0 %v416
    %438 = vmatprep.subr.mxu0 0.0
    %439 = vmatpush1.msra.mxu0 %v417
    %440 = vmatprep.subr.mxu0 0.0
    %441 = vmatpush1.msra.mxu0 %v418
    %442 = vmatprep.subr.mxu0 0.0
    %443 = vmatpush1.msra.mxu0 %v419
    %444 = vmatprep.subr.mxu0 0.0
    %445 = vmatpush1.msra.mxu0 %v420
    %446 = vmatprep.subr.mxu0 0.0
    %447 = vmatpush1.msra.mxu0 %v421
    %448 = vmatprep.subr.mxu0 0.0
    %449 = vmatpush1.msra.mxu0 %v422
    %450 = vmatprep.subr.mxu0 0.0
    %451 = vmatpush1.msra.mxu0 %v423
    %452 = vmatprep.subr.mxu0 0.0
    %453 = vmatpush1.msra.mxu0 %v424
    %454 = vmatprep.subr.mxu0 0.0
    %455 = vmatpush1.msra.mxu0 %v425
    %456 = vmatprep.subr.mxu0 0.0
    %457 = vmatpush1.msra.mxu0 %v426
    %458 = vmatprep.subr.mxu0 0.0
    %459 = vmatpush1.msra.mxu0 %v427
    %460 = vmatprep.subr.mxu0 0.0
    %461 = vmatpush1.msra.mxu0 %v428
    %462 = vmatprep.subr.mxu0 0.0
    %463 = vmatpush1.msra.mxu0 %v429
    %464 = vmatprep.subr.mxu0 0.0
    %465 = vmatpush1.msra.mxu0 %v430
    %466 = vmatprep.subr.mxu0 0.0
    %467 = vmatpush1.msra.mxu0 %v431
    %468 = vmatprep.subr.mxu0 0.0
    %469 = vmatpush1.msra.mxu0 0.0
    %470 = vmatprep.subr.mxu0 0.0
    %471 = vmatpush1.msra.mxu0 0.0
    %472 = vmatprep.subr.mxu0 0.0
    %473 = vmatpush1.msra.mxu0 0.0
    %474 = vmatprep.subr.mxu0 0.0
    %475 = vmatpush1.msra.mxu0 0.0
    %476 = vmatprep.subr.mxu0 0.0
    %477 = vmatpush1.msra.mxu0 0.0
    %478 = vmatprep.subr.mxu0 0.0
    %479 = vmatpush1.msra.mxu0 0.0
    %480 = vmatprep.subr.mxu0 0.0
    %481 = vmatpush1.msra.mxu0 0.0
    %482 = vmatprep.subr.mxu0 0.0
    %483 = vmatpush1.msra.mxu0 0.0
    %484 = vmatprep.subr.mxu0 0.0
    %485 = vmatpush1.msra.mxu0 0.0
    %486 = vmatprep.subr.mxu0 0.0
    %487 = vmatpush1.msra.mxu0 0.0
    %488 = vmatprep.subr.mxu0 0.0
    %489 = vmatpush1.msra.mxu0 0.0
    %490 = vmatprep.subr.mxu0 0.0
    %491 = vmatpush1.msra.mxu0 0.0
    %492 = vmatprep.subr.mxu0 0.0
    %493 = vmatpush1.msra.mxu0 0.0
    %494 = vmatprep.subr.mxu0 0.0
    %495 = vmatpush1.msra.mxu0 0.0
    %496 = vmatprep.subr.mxu0 0.0
    %497 = vmatpush1.msra.mxu0 0.0
    %498 = vmatprep.subr.mxu0 0.0
    %499 = vmatpush1.msra.mxu0 0.0
    %500 = vmatprep.mubr.f32.mxu0 0.0
    %501 = vmatmul.mubr.f32.gmra.mrb[0].mxu0 %v414
    %v502 = vpop.f32.mrb[0].mxu0
    %v503 = vadd.f32 %v435, %v502
    %v504 = vpop.f32.mrb[0].mxu0
    %505 = vdwg.mxu0
    %v506 = vmax.f32 %v503, 0.0
    %s507 = scalar_lea.vmem [#allocation2], 640
    %v508 = vld [vmem:[%s507] sm:$0xff]
    %v509 = vld [vmem:[%s507 + $0x8] sm:$0xff]
    %v510 = vld [vmem:[%s507 + $0x10] sm:$0xff]
    %v511 = vld [vmem:[%s507 + $0x18] sm:$0xff]
    %v512 = vld [vmem:[%s507 + $0x20] sm:$0xff]
    %v513 = vld [vmem:[%s507 + $0x28] sm:$0xff]
    %v514 = vld [vmem:[%s507 + $0x30] sm:$0xff]
    %v515 = vld [vmem:[%s507 + $0x38] sm:$0xff]
    %v516 = vld [vmem:[%s507 + $0x40] sm:$0xff]
    %v517 = vld [vmem:[%s507 + $0x48] sm:$0xff]
    %v518 = vld [vmem:[%s507 + $0x50] sm:$0xff]
    %v519 = vld [vmem:[%s507 + $0x58] sm:$0xff]
    %v520 = vld [vmem:[%s507 + $0x60] sm:$0xff]
    %v521 = vld [vmem:[%s507 + $0x68] sm:$0xff]
    %v522 = vld [vmem:[%s507 + $0x70] sm:$0xff]
    %v523 = vld [vmem:[%s507 + $0x78] sm:$0xff]
    %v524 = vlaneseq
    %v525 = vshrl.u32 %v524, 7
    %v526 = vsub.s32 5, %v525
    %v527 = vrot.slane %v43, %v526
    %528 = vmatprep.subr.mxu0 0.0
    %529 = vmatpush1.msra.mxu0 %v508
    %530 = vmatprep.subr.mxu0 0.0
    %531 = vmatpush1.msra.mxu0 %v509
    %532 = vmatprep.subr.mxu0 0.0
    %533 = vmatpush1.msra.mxu0 %v510
    %534 = vmatprep.subr.mxu0 0.0
    %535 = vmatpush1.msra.mxu0 %v511
    %536 = vmatprep.subr.mxu0 0.0
    %537 = vmatpush1.msra.mxu0 %v512
    %538 = vmatprep.subr.mxu0 0.0
    %539 = vmatpush1.msra.mxu0 %v513
    %540 = vmatprep.subr.mxu0 0.0
    %541 = vmatpush1.msra.mxu0 %v514
    %542 = vmatprep.subr.mxu0 0.0
    %543 = vmatpush1.msra.mxu0 %v515
    %544 = vmatprep.subr.mxu0 0.0
    %545 = vmatpush1.msra.mxu0 %v516
    %546 = vmatprep.subr.mxu0 0.0
    %547 = vmatpush1.msra.mxu0 %v517
    %548 = vmatprep.subr.mxu0 0.0
    %549 = vmatpush1.msra.mxu0 %v518
    %550 = vmatprep.subr.mxu0 0.0
    %551 = vmatpush1.msra.mxu0 %v519
    %552 = vmatprep.subr.mxu0 0.0
    %553 = vmatpush1.msra.mxu0 %v520
    %554 = vmatprep.subr.mxu0 0.0
    %555 = vmatpush1.msra.mxu0 %v521
    %556 = vmatprep.subr.mxu0 0.0
    %557 = vmatpush1.msra.mxu0 %v522
    %558 = vmatprep.subr.mxu0 0.0
    %559 = vmatpush1.msra.mxu0 %v523
    %560 = vmatprep.subr.mxu0 0.0
    %561 = vmatpush1.msra.mxu0 0.0
    %562 = vmatprep.subr.mxu0 0.0
    %563 = vmatpush1.msra.mxu0 0.0
    %564 = vmatprep.subr.mxu0 0.0
    %565 = vmatpush1.msra.mxu0 0.0
    %566 = vmatprep.subr.mxu0 0.0
    %567 = vmatpush1.msra.mxu0 0.0
    %568 = vmatprep.subr.mxu0 0.0
    %569 = vmatpush1.msra.mxu0 0.0
    %570 = vmatprep.subr.mxu0 0.0
    %571 = vmatpush1.msra.mxu0 0.0
    %572 = vmatprep.subr.mxu0 0.0
    %573 = vmatpush1.msra.mxu0 0.0
    %574 = vmatprep.subr.mxu0 0.0
    %575 = vmatpush1.msra.mxu0 0.0
    %576 = vmatprep.subr.mxu0 0.0
    %577 = vmatpush1.msra.mxu0 0.0
    %578 = vmatprep.subr.mxu0 0.0
    %579 = vmatpush1.msra.mxu0 0.0
    %580 = vmatprep.subr.mxu0 0.0
    %581 = vmatpush1.msra.mxu0 0.0
    %582 = vmatprep.subr.mxu0 0.0
    %583 = vmatpush1.msra.mxu0 0.0
    %584 = vmatprep.subr.mxu0 0.0
    %585 = vmatpush1.msra.mxu0 0.0
    %586 = vmatprep.subr.mxu0 0.0
    %587 = vmatpush1.msra.mxu0 0.0
    %588 = vmatprep.subr.mxu0 0.0
    %589 = vmatpush1.msra.mxu0 0.0
    %590 = vmatprep.subr.mxu0 0.0
    %591 = vmatpush1.msra.mxu0 0.0
    %592 = vmatprep.mubr.f32.mxu0 0.0
    %593 = vmatmul.mubr.f32.gmra.mrb[0].mxu0 %v506
    %v594 = vpop.f32.mrb[0].mxu0
    %v595 = vadd.f32 %v527, %v594
    %v596 = vpop.f32.mrb[0].mxu0
    %597 = vdwg.mxu0
    %v598 = vmax.f32 %v595, 0.0
    %s599 = scalar_lea.vmem [#allocation2], 768
    %v600 = vld [vmem:[%s599] sm:$0xff]
    %v601 = vld [vmem:[%s599 + $0x8] sm:$0xff]
    %v602 = vld [vmem:[%s599 + $0x10] sm:$0xff]
    %v603 = vld [vmem:[%s599 + $0x18] sm:$0xff]
    %v604 = vld [vmem:[%s599 + $0x20] sm:$0xff]
    %v605 = vld [vmem:[%s599 + $0x28] sm:$0xff]
    %v606 = vld [vmem:[%s599 + $0x30] sm:$0xff]
    %v607 = vld [vmem:[%s599 + $0x38] sm:$0xff]
    %v608 = vld [vmem:[%s599 + $0x40] sm:$0xff]
    %v609 = vld [vmem:[%s599 + $0x48] sm:$0xff]
    %v610 = vld [vmem:[%s599 + $0x50] sm:$0xff]
    %v611 = vld [vmem:[%s599 + $0x58] sm:$0xff]
    %v612 = vld [vmem:[%s599 + $0x60] sm:$0xff]
    %v613 = vld [vmem:[%s599 + $0x68] sm:$0xff]
    %v614 = vld [vmem:[%s599 + $0x70] sm:$0xff]
    %v615 = vld [vmem:[%s599 + $0x78] sm:$0xff]
    %v616 = vlaneseq
    %v617 = vshrl.u32 %v616, 7
    %v618 = vsub.s32 6, %v617
    %v619 = vrot.slane %v43, %v618
    %620 = vmatprep.subr.mxu0 0.0
    %621 = vmatpush1.msra.mxu0 %v600
    %622 = vmatprep.subr.mxu0 0.0
    %623 = vmatpush1.msra.mxu0 %v601
    %624 = vmatprep.subr.mxu0 0.0
    %625 = vmatpush1.msra.mxu0 %v602
    %626 = vmatprep.subr.mxu0 0.0
    %627 = vmatpush1.msra.mxu0 %v603
    %628 = vmatprep.subr.mxu0 0.0
    %629 = vmatpush1.msra.mxu0 %v604
    %630 = vmatprep.subr.mxu0 0.0
    %631 = vmatpush1.msra.mxu0 %v605
    %632 = vmatprep.subr.mxu0 0.0
    %633 = vmatpush1.msra.mxu0 %v606
    %634 = vmatprep.subr.mxu0 0.0
    %635 = vmatpush1.msra.mxu0 %v607
    %636 = vmatprep.subr.mxu0 0.0
    %637 = vmatpush1.msra.mxu0 %v608
    %638 = vmatprep.subr.mxu0 0.0
    %639 = vmatpush1.msra.mxu0 %v609
    %640 = vmatprep.subr.mxu0 0.0
    %641 = vmatpush1.msra.mxu0 %v610
    %642 = vmatprep.subr.mxu0 0.0
    %643 = vmatpush1.msra.mxu0 %v611
    %644 = vmatprep.subr.mxu0 0.0
    %645 = vmatpush1.msra.mxu0 %v612
    %646 = vmatprep.subr.mxu0 0.0
    %647 = vmatpush1.msra.mxu0 %v613
    %648 = vmatprep.subr.mxu0 0.0
    %649 = vmatpush1.msra.mxu0 %v614
    %650 = vmatprep.subr.mxu0 0.0
    %651 = vmatpush1.msra.mxu0 %v615
    %652 = vmatprep.subr.mxu0 0.0
    %653 = vmatpush1.msra.mxu0 0.0
    %654 = vmatprep.subr.mxu0 0.0
    %655 = vmatpush1.msra.mxu0 0.0
    %656 = vmatprep.subr.mxu0 0.0
    %657 = vmatpush1.msra.mxu0 0.0
    %658 = vmatprep.subr.mxu0 0.0
    %659 = vmatpush1.msra.mxu0 0.0
    %660 = vmatprep.subr.mxu0 0.0
    %661 = vmatpush1.msra.mxu0 0.0
    %662 = vmatprep.subr.mxu0 0.0
    %663 = vmatpush1.msra.mxu0 0.0
    %664 = vmatprep.subr.mxu0 0.0
    %665 = vmatpush1.msra.mxu0 0.0
    %666 = vmatprep.subr.mxu0 0.0
    %667 = vmatpush1.msra.mxu0 0.0
    %668 = vmatprep.subr.mxu0 0.0
    %669 = vmatpush1.msra.mxu0 0.0
    %670 = vmatprep.subr.mxu0 0.0
    %671 = vmatpush1.msra.mxu0 0.0
    %672 = vmatprep.subr.mxu0 0.0
    %673 = vmatpush1.msra.mxu0 0.0
    %674 = vmatprep.subr.mxu0 0.0
    %675 = vmatpush1.msra.mxu0 0.0
    %676 = vmatprep.subr.mxu0 0.0
    %677 = vmatpush1.msra.mxu0 0.0
    %678 = vmatprep.subr.mxu0 0.0
    %679 = vmatpush1.msra.mxu0 0.0
    %680 = vmatprep.subr.mxu0 0.0
    %681 = vmatpush1.msra.mxu0 0.0
    %682 = vmatprep.subr.mxu0 0.0
    %683 = vmatpush1.msra.mxu0 0.0
    %684 = vmatprep.mubr.f32.mxu0 0.0
    %685 = vmatmul.mubr.f32.gmra.mrb[0].mxu0 %v598
    %v686 = vpop.f32.mrb[0].mxu0
    %v687 = vadd.f32 %v619, %v686
    %v688 = vpop.f32.mrb[0].mxu0
    %689 = vdwg.mxu0
    %690 = vmax.xlane.f32.xlu0 %v687
    %v691 = vpop.xlane.xlu0 %690
    %v692 = vsub.f32 %v687, %v691
    %v693 = vmul.f32 %v692, 1.442695
    %v694 = vpow.pop %v693
    %s695 = scalar_lea.vmem [#allocation2], 2688
    %v696 = vld [vmem:[%s695] sm:$0xff]
    %v697 = vld [vmem:[%s695 + $0x8] sm:$0xff]
    %v698 = vld [vmem:[%s695 + $0x10] sm:$0xff]
    %v699 = vld [vmem:[%s695 + $0x18] sm:$0xff]
    %v700 = vld [vmem:[%s695 + $0x20] sm:$0xff]
    %v701 = vld [vmem:[%s695 + $0x28] sm:$0xff]
    %v702 = vld [vmem:[%s695 + $0x30] sm:$0xff]
    %v703 = vld [vmem:[%s695 + $0x38] sm:$0xff]
    %v704 = vld [vmem:[%s695 + $0x40] sm:$0xff]
    %v705 = vld [vmem:[%s695 + $0x48] sm:$0xff]
    %v706 = vld [vmem:[%s695 + $0x50] sm:$0xff]
    %v707 = vld [vmem:[%s695 + $0x58] sm:$0xff]
    %v708 = vld [vmem:[%s695 + $0x60] sm:$0xff]
    %v709 = vld [vmem:[%s695 + $0x68] sm:$0xff]
    %v710 = vld [vmem:[%s695 + $0x70] sm:$0xff]
    %v711 = vld [vmem:[%s695 + $0x78] sm:$0xff]
    %712 = vmatprep.subr.mxu0 0.0
    %713 = vmatpush1.msra.mxu0 %v696
    %714 = vmatprep.subr.mxu0 0.0
    %715 = vmatpush1.msra.mxu0 %v697
    %716 = vmatprep.subr.mxu0 0.0
    %717 = vmatpush1.msra.mxu0 %v698
    %718 = vmatprep.subr.mxu0 0.0
    %719 = vmatpush1.msra.mxu0 %v699
    %720 = vmatprep.subr.mxu0 0.0
    %721 = vmatpush1.msra.mxu0 %v700
    %722 = vmatprep.subr.mxu0 0.0
    %723 = vmatpush1.msra.mxu0 %v701
    %724 = vmatprep.subr.mxu0 0.0
    %725 = vmatpush1.msra.mxu0 %v702
    %726 = vmatprep.subr.mxu0 0.0
    %727 = vmatpush1.msra.mxu0 %v703
    %728 = vmatprep.subr.mxu0 0.0
    %729 = vmatpush1.msra.mxu0 %v704
    %730 = vmatprep.subr.mxu0 0.0
    %731 = vmatpush1.msra.mxu0 %v705
    %732 = vmatprep.subr.mxu0 0.0
    %733 = vmatpush1.msra.mxu0 %v706
    %734 = vmatprep.subr.mxu0 0.0
    %735 = vmatpush1.msra.mxu0 %v707
    %736 = vmatprep.subr.mxu0 0.0
    %737 = vmatpush1.msra.mxu0 %v708
    %738 = vmatprep.subr.mxu0 0.0
    %739 = vmatpush1.msra.mxu0 %v709
    %740 = vmatprep.subr.mxu0 0.0
    %741 = vmatpush1.msra.mxu0 %v710
    %742 = vmatprep.subr.mxu0 0.0
    %743 = vmatpush1.msra.mxu0 %v711
    %744 = vmatprep.subr.mxu0 0.0
    %745 = vmatpush1.msra.mxu0 0.0
    %746 = vmatprep.subr.mxu0 0.0
    %747 = vmatpush1.msra.mxu0 0.0
    %748 = vmatprep.subr.mxu0 0.0
    %749 = vmatpush1.msra.mxu0 0.0
    %750 = vmatprep.subr.mxu0 0.0
    %751 = vmatpush1.msra.mxu0 0.0
    %752 = vmatprep.subr.mxu0 0.0
    %753 = vmatpush1.msra.mxu0 0.0
    %754 = vmatprep.subr.mxu0 0.0
    %755 = vmatpush1.msra.mxu0 0.0
    %756 = vmatprep.subr.mxu0 0.0
    %757 = vmatpush1.msra.mxu0 0.0
    %758 = vmatprep.subr.mxu0 0.0
    %759 = vmatpush1.msra.mxu0 0.0
    %760 = vmatprep.subr.mxu0 0.0
    %761 = vmatpush1.msra.mxu0 0.0
    %762 = vmatprep.subr.mxu0 0.0
    %763 = vmatpush1.msra.mxu0 0.0
    %764 = vmatprep.subr.mxu0 0.0
    %765 = vmatpush1.msra.mxu0 0.0
    %766 = vmatprep.subr.mxu0 0.0
    %767 = vmatpush1.msra.mxu0 0.0
    %768 = vmatprep.subr.mxu0 0.0
    %769 = vmatpush1.msra.mxu0 0.0
    %770 = vmatprep.subr.mxu0 0.0
    %771 = vmatpush1.msra.mxu0 0.0
    %772 = vmatprep.subr.mxu0 0.0
    %773 = vmatpush1.msra.mxu0 0.0
    %774 = vmatprep.subr.mxu0 0.0
    %775 = vmatpush1.msra.mxu0 0.0
    %776 = vmatprep.mubr.f32.mxu0 0.0
    %777 = vmatmul.mubr.f32.gmra.mrb[0].mxu0 %v694
    %v778 = vpop.f32.mrb[0].mxu0
    %v779 = vadd.f32 0.0, %v778
    %v780 = vpop.f32.mrb[0].mxu0
    %781 = vdwg.mxu0
    %v782 = vrcp.pop %v779
    %v783 = vmul.f32 %v694, %v782
    %s784 = scalar_lea.vmem [#allocation2], 896
    %v785 = vld [vmem:[%s784] sm:$0xff]
    %v786 = vld [vmem:[%s784 + $0x8] sm:$0xff]
    %v787 = vld [vmem:[%s784 + $0x10] sm:$0xff]
    %v788 = vld [vmem:[%s784 + $0x18] sm:$0xff]
    %v789 = vld [vmem:[%s784 + $0x20] sm:$0xff]
    %v790 = vld [vmem:[%s784 + $0x28] sm:$0xff]
    %v791 = vld [vmem:[%s784 + $0x30] sm:$0xff]
    %v792 = vld [vmem:[%s784 + $0x38] sm:$0xff]
    %v793 = vld [vmem:[%s784 + $0x40] sm:$0xff]
    %v794 = vld [vmem:[%s784 + $0x48] sm:$0xff]
    %v795 = vld [vmem:[%s784 + $0x50] sm:$0xff]
    %v796 = vld [vmem:[%s784 + $0x58] sm:$0xff]
    %v797 = vld [vmem:[%s784 + $0x60] sm:$0xff]
    %v798 = vld [vmem:[%s784 + $0x68] sm:$0xff]
    %v799 = vld [vmem:[%s784 + $0x70] sm:$0xff]
    %v800 = vld [vmem:[%s784 + $0x78] sm:$0xff]
    %v801 = vlaneseq
    %v802 = vshrl.u32 %v801, 7
    %v803 = vsub.s32 7, %v802
    %v804 = vrot.slane %v43, %v803
    %805 = vmatprep.subr.mxu0 0.0
    %806 = vmatpush1.msra.mxu0 %v785
    %807 = vmatprep.subr.mxu0 0.0
    %808 = vmatpush1.msra.mxu0 %v786
    %809 = vmatprep.subr.mxu0 0.0
    %810 = vmatpush1.msra.mxu0 %v787
    %811 = vmatprep.subr.mxu0 0.0
    %812 = vmatpush1.msra.mxu0 %v788
    %813 = vmatprep.subr.mxu0 0.0
    %814 = vmatpush1.msra.mxu0 %v789
    %815 = vmatprep.subr.mxu0 0.0
    %816 = vmatpush1.msra.mxu0 %v790
    %817 = vmatprep.subr.mxu0 0.0
    %818 = vmatpush1.msra.mxu0 %v791
    %819 = vmatprep.subr.mxu0 0.0
    %820 = vmatpush1.msra.mxu0 %v792
    %821 = vmatprep.subr.mxu0 0.0
    %822 = vmatpush1.msra.mxu0 %v793
    %823 = vmatprep.subr.mxu0 0.0
    %824 = vmatpush1.msra.mxu0 %v794
    %825 = vmatprep.subr.mxu0 0.0
    %826 = vmatpush1.msra.mxu0 %v795
    %827 = vmatprep.subr.mxu0 0.0
    %828 = vmatpush1.msra.mxu0 %v796
    %829 = vmatprep.subr.mxu0 0.0
    %830 = vmatpush1.msra.mxu0 %v797
    %831 = vmatprep.subr.mxu0 0.0
    %832 = vmatpush1.msra.mxu0 %v798
    %833 = vmatprep.subr.mxu0 0.0
    %834 = vmatpush1.msra.mxu0 %v799
    %835 = vmatprep.subr.mxu0 0.0
    %836 = vmatpush1.msra.mxu0 %v800
    %837 = vmatprep.subr.mxu0 0.0
    %838 = vmatpush1.msra.mxu0 0.0
    %839 = vmatprep.subr.mxu0 0.0
    %840 = vmatpush1.msra.mxu0 0.0
    %841 = vmatprep.subr.mxu0 0.0
    %842 = vmatpush1.msra.mxu0 0.0
    %843 = vmatprep.subr.mxu0 0.0
    %844 = vmatpush1.msra.mxu0 0.0
    %845 = vmatprep.subr.mxu0 0.0
    %846 = vmatpush1.msra.mxu0 0.0
    %847 = vmatprep.subr.mxu0 0.0
    %848 = vmatpush1.msra.mxu0 0.0
    %849 = vmatprep.subr.mxu0 0.0
    %850 = vmatpush1.msra.mxu0 0.0
    %851 = vmatprep.subr.mxu0 0.0
    %852 = vmatpush1.msra.mxu0 0.0
    %853 = vmatprep.subr.mxu0 0.0
    %854 = vmatpush1.msra.mxu0 0.0
    %855 = vmatprep.subr.mxu0 0.0
    %856 = vmatpush1.msra.mxu0 0.0
    %857 = vmatprep.subr.mxu0 0.0
    %858 = vmatpush1.msra.mxu0 0.0
    %859 = vmatprep.subr.mxu0 0.0
    %860 = vmatpush1.msra.mxu0 0.0
    %861 = vmatprep.subr.mxu0 0.0
    %862 = vmatpush1.msra.mxu0 0.0
    %863 = vmatprep.subr.mxu0 0.0
    %864 = vmatpush1.msra.mxu0 0.0
    %865 = vmatprep.subr.mxu0 0.0
    %866 = vmatpush1.msra.mxu0 0.0
    %867 = vmatprep.subr.mxu0 0.0
    %868 = vmatpush1.msra.mxu0 0.0
    %869 = vmatprep.mubr.f32.mxu0 0.0
    %870 = vmatmul.mubr.f32.gmra.mrb[0].mxu0 %v783
    %v871 = vpop.f32.mrb[0].mxu0
    %v872 = vadd.f32 %v804, %v871
    %v873 = vpop.f32.mrb[0].mxu0
    %874 = vdwg.mxu0
    %v875 = vmul.f32 %v872, %v595
    %v876 = vmax.f32 %v875, 0.0
    %s877 = scalar_lea.vmem [#allocation2], 1024
    %v878 = vld [vmem:[%s877] sm:$0xff]
    %v879 = vld [vmem:[%s877 + $0x8] sm:$0xff]
    %v880 = vld [vmem:[%s877 + $0x10] sm:$0xff]
    %v881 = vld [vmem:[%s877 + $0x18] sm:$0xff]
    %v882 = vld [vmem:[%s877 + $0x20] sm:$0xff]
    %v883 = vld [vmem:[%s877 + $0x28] sm:$0xff]
    %v884 = vld [vmem:[%s877 + $0x30] sm:$0xff]
    %v885 = vld [vmem:[%s877 + $0x38] sm:$0xff]
    %v886 = vld [vmem:[%s877 + $0x40] sm:$0xff]
    %v887 = vld [vmem:[%s877 + $0x48] sm:$0xff]
    %v888 = vld [vmem:[%s877 + $0x50] sm:$0xff]
    %v889 = vld [vmem:[%s877 + $0x58] sm:$0xff]
    %v890 = vld [vmem:[%s877 + $0x60] sm:$0xff]
    %v891 = vld [vmem:[%s877 + $0x68] sm:$0xff]
    %v892 = vld [vmem:[%s877 + $0x70] sm:$0xff]
    %v893 = vld [vmem:[%s877 + $0x78] sm:$0xff]
    %v894 = vlaneseq
    %v895 = vshrl.u32 %v894, 7
    %v896 = vsub.s32 0, %v895
    %v897 = vrot.slane %v44, %v896
    %898 = vmatprep.subr.mxu0 0.0
    %899 = vmatpush1.msra.mxu0 %v878
    %900 = vmatprep.subr.mxu0 0.0
    %901 = vmatpush1.msra.mxu0 %v879
    %902 = vmatprep.subr.mxu0 0.0
    %903 = vmatpush1.msra.mxu0 %v880
    %904 = vmatprep.subr.mxu0 0.0
    %905 = vmatpush1.msra.mxu0 %v881
    %906 = vmatprep.subr.mxu0 0.0
    %907 = vmatpush1.msra.mxu0 %v882
    %908 = vmatprep.subr.mxu0 0.0
    %909 = vmatpush1.msra.mxu0 %v883
    %910 = vmatprep.subr.mxu0 0.0
    %911 = vmatpush1.msra.mxu0 %v884
    %912 = vmatprep.subr.mxu0 0.0
    %913 = vmatpush1.msra.mxu0 %v885
    %914 = vmatprep.subr.mxu0 0.0
    %915 = vmatpush1.msra.mxu0 %v886
    %916 = vmatprep.subr.mxu0 0.0
    %917 = vmatpush1.msra.mxu0 %v887
    %918 = vmatprep.subr.mxu0 0.0
    %919 = vmatpush1.msra.mxu0 %v888
    %920 = vmatprep.subr.mxu0 0.0
    %921 = vmatpush1.msra.mxu0 %v889
    %922 = vmatprep.subr.mxu0 0.0
    %923 = vmatpush1.msra.mxu0 %v890
    %924 = vmatprep.subr.mxu0 0.0
    %925 = vmatpush1.msra.mxu0 %v891
    %926 = vmatprep.subr.mxu0 0.0
    %927 = vmatpush1.msra.mxu0 %v892
    %928 = vmatprep.subr.mxu0 0.0
    %929 = vmatpush1.msra.mxu0 %v893
    %930 = vmatprep.subr.mxu0 0.0
    %931 = vmatpush1.msra.mxu0 0.0
    %932 = vmatprep.subr.mxu0 0.0
    %933 = vmatpush1.msra.mxu0 0.0
    %934 = vmatprep.subr.mxu0 0.0
    %935 = vmatpush1.msra.mxu0 0.0
    %936 = vmatprep.subr.mxu0 0.0
    %937 = vmatpush1.msra.mxu0 0.0
    %938 = vmatprep.subr.mxu0 0.0
    %939 = vmatpush1.msra.mxu0 0.0
    %940 = vmatprep.subr.mxu0 0.0
    %941 = vmatpush1.msra.mxu0 0.0
    %942 = vmatprep.subr.mxu0 0.0
    %943 = vmatpush1.msra.mxu0 0.0
    %944 = vmatprep.subr.mxu0 0.0
    %945 = vmatpush1.msra.mxu0 0.0
    %946 = vmatprep.subr.mxu0 0.0
    %947 = vmatpush1.msra.mxu0 0.0
    %948 = vmatprep.subr.mxu0 0.0
    %949 = vmatpush1.msra.mxu0 0.0
    %950 = vmatprep.subr.mxu0 0.0
    %951 = vmatpush1.msra.mxu0 0.0
    %952 = vmatprep.subr.mxu0 0.0
    %953 = vmatpush1.msra.mxu0 0.0
    %954 = vmatprep.subr.mxu0 0.0
    %955 = vmatpush1.msra.mxu0 0.0
    %956 = vmatprep.subr.mxu0 0.0
    %957 = vmatpush1.msra.mxu0 0.0
    %958 = vmatprep.subr.mxu0 0.0
    %959 = vmatpush1.msra.mxu0 0.0
    %960 = vmatprep.subr.mxu0 0.0
    %961 = vmatpush1.msra.mxu0 0.0
    %962 = vmatprep.mubr.f32.mxu0 0.0
    %963 = vmatmul.mubr.f32.gmra.mrb[0].mxu0 %v876
    %v964 = vpop.f32.mrb[0].mxu0
    %v965 = vadd.f32 %v897, %v964
    %v966 = vpop.f32.mrb[0].mxu0
    %967 = vdwg.mxu0
    %968 = vmax.xlane.f32.xlu0 %v965
    %v969 = vpop.xlane.xlu0 %968
    %v970 = vsub.f32 %v965, %v969
    %v971 = vmul.f32 %v970, 1.442695
    %v972 = vpow.pop %v971
    %973 = vmatprep.subr.mxu0 0.0
    %974 = vmatpush1.msra.mxu0 %v696
    %975 = vmatprep.subr.mxu0 0.0
    %976 = vmatpush1.msra.mxu0 %v697
    %977 = vmatprep.subr.mxu0 0.0
    %978 = vmatpush1.msra.mxu0 %v698
    %979 = vmatprep.subr.mxu0 0.0
    %980 = vmatpush1.msra.mxu0 %v699
    %981 = vmatprep.subr.mxu0 0.0
    %982 = vmatpush1.msra.mxu0 %v700
    %983 = vmatprep.subr.mxu0 0.0
    %984 = vmatpush1.msra.mxu0 %v701
    %985 = vmatprep.subr.mxu0 0.0
    %986 = vmatpush1.msra.mxu0 %v702
    %987 = vmatprep.subr.mxu0 0.0
    %988 = vmatpush1.msra.mxu0 %v703
    %989 = vmatprep.subr.mxu0 0.0
    %990 = vmatpush1.msra.mxu0 %v704
    %991 = vmatprep.subr.mxu0 0.0
    %992 = vmatpush1.msra.mxu0 %v705
    %993 = vmatprep.subr.mxu0 0.0
    %994 = vmatpush1.msra.mxu0 %v706
    %995 = vmatprep.subr.mxu0 0.0
    %996 = vmatpush1.msra.mxu0 %v707
    %997 = vmatprep.subr.mxu0 0.0
    %998 = vmatpush1.msra.mxu0 %v708
    %999 = vmatprep.subr.mxu0 0.0
    %1000 = vmatpush1.msra.mxu0 %v709
    %1001 = vmatprep.subr.mxu0 0.0
    %1002 = vmatpush1.msra.mxu0 %v710
    %1003 = vmatprep.subr.mxu0 0.0
    %1004 = vmatpush1.msra.mxu0 %v711
    %1005 = vmatprep.subr.mxu0 0.0
    %1006 = vmatpush1.msra.mxu0 0.0
    %1007 = vmatprep.subr.mxu0 0.0
    %1008 = vmatpush1.msra.mxu0 0.0
    %1009 = vmatprep.subr.mxu0 0.0
    %1010 = vmatpush1.msra.mxu0 0.0
    %1011 = vmatprep.subr.mxu0 0.0
    %1012 = vmatpush1.msra.mxu0 0.0
    %1013 = vmatprep.subr.mxu0 0.0
    %1014 = vmatpush1.msra.mxu0 0.0
    %1015 = vmatprep.subr.mxu0 0.0
    %1016 = vmatpush1.msra.mxu0 0.0
    %1017 = vmatprep.subr.mxu0 0.0
    %1018 = vmatpush1.msra.mxu0 0.0
    %1019 = vmatprep.subr.mxu0 0.0
    %1020 = vmatpush1.msra.mxu0 0.0
    %1021 = vmatprep.subr.mxu0 0.0
    %1022 = vmatpush1.msra.mxu0 0.0
    %1023 = vmatprep.subr.mxu0 0.0
    %1024 = vmatpush1.msra.mxu0 0.0
    %1025 = vmatprep.subr.mxu0 0.0
    %1026 = vmatpush1.msra.mxu0 0.0
    %1027 = vmatprep.subr.mxu0 0.0
    %1028 = vmatpush1.msra.mxu0 0.0
    %1029 = vmatprep.subr.mxu0 0.0
    %1030 = vmatpush1.msra.mxu0 0.0
    %1031 = vmatprep.subr.mxu0 0.0
    %1032 = vmatpush1.msra.mxu0 0.0
    %1033 = vmatprep.subr.mxu0 0.0
    %1034 = vmatpush1.msra.mxu0 0.0
    %1035 = vmatprep.subr.mxu0 0.0
    %1036 = vmatpush1.msra.mxu0 0.0
    %1037 = vmatprep.mubr.f32.mxu0 0.0
    %1038 = vmatmul.mubr.f32.gmra.mrb[0].mxu0 %v972
    %v1039 = vpop.f32.mrb[0].mxu0
    %v1040 = vadd.f32 0.0, %v1039
    %v1041 = vpop.f32.mrb[0].mxu0
    %1042 = vdwg.mxu0
    %v1043 = vrcp.pop %v1040
    %v1044 = vmul.f32 %v972, %v1043
    %s1045 = scalar_lea.vmem [#allocation2], 1152
    %v1046 = vld [vmem:[%s1045] sm:$0xff]
    %v1047 = vld [vmem:[%s1045 + $0x8] sm:$0xff]
    %v1048 = vld [vmem:[%s1045 + $0x10] sm:$0xff]
    %v1049 = vld [vmem:[%s1045 + $0x18] sm:$0xff]
    %v1050 = vld [vmem:[%s1045 + $0x20] sm:$0xff]
    %v1051 = vld [vmem:[%s1045 + $0x28] sm:$0xff]
    %v1052 = vld [vmem:[%s1045 + $0x30] sm:$0xff]
    %v1053 = vld [vmem:[%s1045 + $0x38] sm:$0xff]
    %v1054 = vld [vmem:[%s1045 + $0x40] sm:$0xff]
    %v1055 = vld [vmem:[%s1045 + $0x48] sm:$0xff]
    %v1056 = vld [vmem:[%s1045 + $0x50] sm:$0xff]
    %v1057 = vld [vmem:[%s1045 + $0x58] sm:$0xff]
    %v1058 = vld [vmem:[%s1045 + $0x60] sm:$0xff]
    %v1059 = vld [vmem:[%s1045 + $0x68] sm:$0xff]
    %v1060 = vld [vmem:[%s1045 + $0x70] sm:$0xff]
    %v1061 = vld [vmem:[%s1045 + $0x78] sm:$0xff]
    %s1062 = scalar_lea.vmem [#allocation2], 1280
    %v1063 = vld [vmem:[%s1062] sm:$0xff]
    %v1064 = vld [vmem:[%s1062 + $0x8] sm:$0xff]
    %v1065 = vld [vmem:[%s1062 + $0x10] sm:$0xff]
    %v1066 = vld [vmem:[%s1062 + $0x18] sm:$0xff]
    %v1067 = vld [vmem:[%s1062 + $0x20] sm:$0xff]
    %v1068 = vld [vmem:[%s1062 + $0x28] sm:$0xff]
    %v1069 = vld [vmem:[%s1062 + $0x30] sm:$0xff]
    %v1070 = vld [vmem:[%s1062 + $0x38] sm:$0xff]
    %v1071 = vld [vmem:[%s1062 + $0x40] sm:$0xff]
    %v1072 = vld [vmem:[%s1062 + $0x48] sm:$0xff]
    %v1073 = vld [vmem:[%s1062 + $0x50] sm:$0xff]
    %v1074 = vld [vmem:[%s1062 + $0x58] sm:$0xff]
    %v1075 = vld [vmem:[%s1062 + $0x60] sm:$0xff]
    %v1076 = vld [vmem:[%s1062 + $0x68] sm:$0xff]
    %v1077 = vld [vmem:[%s1062 + $0x70] sm:$0xff]
    %v1078 = vld [vmem:[%s1062 + $0x78] sm:$0xff]
    %v1079 = vlaneseq
    %v1080 = vshrl.u32 %v1079, 7
    %v1081 = vsub.s32 1, %v1080
    %v1082 = vrot.slane %v44, %v1081
    %1083 = vmatprep.subr.mxu0 0.0
    %1084 = vmatpush1.msra.mxu0 %v1063
    %1085 = vmatprep.subr.mxu0 0.0
    %1086 = vmatpush1.msra.mxu0 %v1064
    %1087 = vmatprep.subr.mxu0 0.0
    %1088 = vmatpush1.msra.mxu0 %v1065
    %1089 = vmatprep.subr.mxu0 0.0
    %1090 = vmatpush1.msra.mxu0 %v1066
    %1091 = vmatprep.subr.mxu0 0.0
    %1092 = vmatpush1.msra.mxu0 %v1067
    %1093 = vmatprep.subr.mxu0 0.0
    %1094 = vmatpush1.msra.mxu0 %v1068
    %1095 = vmatprep.subr.mxu0 0.0
    %1096 = vmatpush1.msra.mxu0 %v1069
    %1097 = vmatprep.subr.mxu0 0.0
    %1098 = vmatpush1.msra.mxu0 %v1070
    %1099 = vmatprep.subr.mxu0 0.0
    %1100 = vmatpush1.msra.mxu0 %v1071
    %1101 = vmatprep.subr.mxu0 0.0
    %1102 = vmatpush1.msra.mxu0 %v1072
    %1103 = vmatprep.subr.mxu0 0.0
    %1104 = vmatpush1.msra.mxu0 %v1073
    %1105 = vmatprep.subr.mxu0 0.0
    %1106 = vmatpush1.msra.mxu0 %v1074
    %1107 = vmatprep.subr.mxu0 0.0
    %1108 = vmatpush1.msra.mxu0 %v1075
    %1109 = vmatprep.subr.mxu0 0.0
    %1110 = vmatpush1.msra.mxu0 %v1076
    %1111 = vmatprep.subr.mxu0 0.0
    %1112 = vmatpush1.msra.mxu0 %v1077
    %1113 = vmatprep.subr.mxu0 0.0
    %1114 = vmatpush1.msra.mxu0 %v1078
    %1115 = vmatprep.subr.mxu0 0.0
    %1116 = vmatpush1.msra.mxu0 0.0
    %1117 = vmatprep.subr.mxu0 0.0
    %1118 = vmatpush1.msra.mxu0 0.0
    %1119 = vmatprep.subr.mxu0 0.0
    %1120 = vmatpush1.msra.mxu0 0.0
    %1121 = vmatprep.subr.mxu0 0.0
    %1122 = vmatpush1.msra.mxu0 0.0
    %1123 = vmatprep.subr.mxu0 0.0
    %1124 = vmatpush1.msra.mxu0 0.0
    %1125 = vmatprep.subr.mxu0 0.0
    %1126 = vmatpush1.msra.mxu0 0.0
    %1127 = vmatprep.subr.mxu0 0.0
    %1128 = vmatpush1.msra.mxu0 0.0
    %1129 = vmatprep.subr.mxu0 0.0
    %1130 = vmatpush1.msra.mxu0 0.0
    %1131 = vmatprep.subr.mxu0 0.0
    %1132 = vmatpush1.msra.mxu0 0.0
    %1133 = vmatprep.subr.mxu0 0.0
    %1134 = vmatpush1.msra.mxu0 0.0
    %1135 = vmatprep.subr.mxu0 0.0
    %1136 = vmatpush1.msra.mxu0 0.0
    %1137 = vmatprep.subr.mxu0 0.0
    %1138 = vmatpush1.msra.mxu0 0.0
    %1139 = vmatprep.subr.mxu0 0.0
    %1140 = vmatpush1.msra.mxu0 0.0
    %1141 = vmatprep.subr.mxu0 0.0
    %1142 = vmatpush1.msra.mxu0 0.0
    %1143 = vmatprep.subr.mxu0 0.0
    %1144 = vmatpush1.msra.mxu0 0.0
    %1145 = vmatprep.subr.mxu0 0.0
    %1146 = vmatpush1.msra.mxu0 0.0
    %1147 = vmatprep.mubr.f32.mxu0 0.0
    %1148 = vmatmul.mubr.f32.gmra.mrb[0].mxu0 %v1044
    %v1149 = vpop.f32.mrb[0].mxu0
    %v1150 = vadd.f32 %v1082, %v1149
    %v1151 = vpop.f32.mrb[0].mxu0
    %1152 = vdwg.mxu0
    %1153 = vmatprep.subr.mxu0 0.0
    %1154 = vmatpush1.msra.mxu0 %v1046
    %1155 = vmatprep.subr.mxu0 0.0
    %1156 = vmatpush1.msra.mxu0 %v1047
    %1157 = vmatprep.subr.mxu0 0.0
    %1158 = vmatpush1.msra.mxu0 %v1048
    %1159 = vmatprep.subr.mxu0 0.0
    %1160 = vmatpush1.msra.mxu0 %v1049
    %1161 = vmatprep.subr.mxu0 0.0
    %1162 = vmatpush1.msra.mxu0 %v1050
    %1163 = vmatprep.subr.mxu0 0.0
    %1164 = vmatpush1.msra.mxu0 %v1051
    %1165 = vmatprep.subr.mxu0 0.0
    %1166 = vmatpush1.msra.mxu0 %v1052
    %1167 = vmatprep.subr.mxu0 0.0
    %1168 = vmatpush1.msra.mxu0 %v1053
    %1169 = vmatprep.subr.mxu0 0.0
    %1170 = vmatpush1.msra.mxu0 %v1054
    %1171 = vmatprep.subr.mxu0 0.0
    %1172 = vmatpush1.msra.mxu0 %v1055
    %1173 = vmatprep.subr.mxu0 0.0
    %1174 = vmatpush1.msra.mxu0 %v1056
    %1175 = vmatprep.subr.mxu0 0.0
    %1176 = vmatpush1.msra.mxu0 %v1057
    %1177 = vmatprep.subr.mxu0 0.0
    %1178 = vmatpush1.msra.mxu0 %v1058
    %1179 = vmatprep.subr.mxu0 0.0
    %1180 = vmatpush1.msra.mxu0 %v1059
    %1181 = vmatprep.subr.mxu0 0.0
    %1182 = vmatpush1.msra.mxu0 %v1060
    %1183 = vmatprep.subr.mxu0 0.0
    %1184 = vmatpush1.msra.mxu0 %v1061
    %1185 = vmatprep.subr.mxu0 0.0
    %1186 = vmatpush1.msra.mxu0 0.0
    %1187 = vmatprep.subr.mxu0 0.0
    %1188 = vmatpush1.msra.mxu0 0.0
    %1189 = vmatprep.subr.mxu0 0.0
    %1190 = vmatpush1.msra.mxu0 0.0
    %1191 = vmatprep.subr.mxu0 0.0
    %1192 = vmatpush1.msra.mxu0 0.0
    %1193 = vmatprep.subr.mxu0 0.0
    %1194 = vmatpush1.msra.mxu0 0.0
    %1195 = vmatprep.subr.mxu0 0.0
    %1196 = vmatpush1.msra.mxu0 0.0
    %1197 = vmatprep.subr.mxu0 0.0
    %1198 = vmatpush1.msra.mxu0 0.0
    %1199 = vmatprep.subr.mxu0 0.0
    %1200 = vmatpush1.msra.mxu0 0.0
    %1201 = vmatprep.subr.mxu0 0.0
    %1202 = vmatpush1.msra.mxu0 0.0
    %1203 = vmatprep.subr.mxu0 0.0
    %1204 = vmatpush1.msra.mxu0 0.0
    %1205 = vmatprep.subr.mxu0 0.0
    %1206 = vmatpush1.msra.mxu0 0.0
    %1207 = vmatprep.subr.mxu0 0.0
    %1208 = vmatpush1.msra.mxu0 0.0
    %1209 = vmatprep.subr.mxu0 0.0
    %1210 = vmatpush1.msra.mxu0 0.0
    %1211 = vmatprep.subr.mxu0 0.0
    %1212 = vmatpush1.msra.mxu0 0.0
    %1213 = vmatprep.subr.mxu0 0.0
    %1214 = vmatpush1.msra.mxu0 0.0
    %1215 = vmatprep.subr.mxu0 0.0
    %1216 = vmatpush1.msra.mxu0 0.0
    %1217 = vmatprep.mubr.f32.mxu0 0.0
    %1218 = vmatmul.mubr.f32.gmra.mrb[0].mxu0 %v783
    %v1219 = vpop.f32.mrb[0].mxu0
    %v1220 = vadd.f32 %v1150, %v1219
    %v1221 = vpop.f32.mrb[0].mxu0
    %1222 = vdwg.mxu0
    %v1223 = vmul.f32 %v1220, %v595
    %v1224 = vmax.f32 %v1223, 0.0
    %s1225 = scalar_lea.vmem [#allocation2], 1408
    %v1226 = vld [vmem:[%s1225] sm:$0xff]
    %v1227 = vld [vmem:[%s1225 + $0x8] sm:$0xff]
    %v1228 = vld [vmem:[%s1225 + $0x10] sm:$0xff]
    %v1229 = vld [vmem:[%s1225 + $0x18] sm:$0xff]
    %v1230 = vld [vmem:[%s1225 + $0x20] sm:$0xff]
    %v1231 = vld [vmem:[%s1225 + $0x28] sm:$0xff]
    %v1232 = vld [vmem:[%s1225 + $0x30] sm:$0xff]
    %v1233 = vld [vmem:[%s1225 + $0x38] sm:$0xff]
    %v1234 = vld [vmem:[%s1225 + $0x40] sm:$0xff]
    %v1235 = vld [vmem:[%s1225 + $0x48] sm:$0xff]
    %v1236 = vld [vmem:[%s1225 + $0x50] sm:$0xff]
    %v1237 = vld [vmem:[%s1225 + $0x58] sm:$0xff]
    %v1238 = vld [vmem:[%s1225 + $0x60] sm:$0xff]
    %v1239 = vld [vmem:[%s1225 + $0x68] sm:$0xff]
    %v1240 = vld [vmem:[%s1225 + $0x70] sm:$0xff]
    %v1241 = vld [vmem:[%s1225 + $0x78] sm:$0xff]
    %v1242 = vlaneseq
    %v1243 = vshrl.u32 %v1242, 7
    %v1244 = vsub.s32 2, %v1243
    %v1245 = vrot.slane %v44, %v1244
    %1246 = vmatprep.subr.mxu0 0.0
    %1247 = vmatpush1.msra.mxu0 %v1226
    %1248 = vmatprep.subr.mxu0 0.0
    %1249 = vmatpush1.msra.mxu0 %v1227
    %1250 = vmatprep.subr.mxu0 0.0
    %1251 = vmatpush1.msra.mxu0 %v1228
    %1252 = vmatprep.subr.mxu0 0.0
    %1253 = vmatpush1.msra.mxu0 %v1229
    %1254 = vmatprep.subr.mxu0 0.0
    %1255 = vmatpush1.msra.mxu0 %v1230
    %1256 = vmatprep.subr.mxu0 0.0
    %1257 = vmatpush1.msra.mxu0 %v1231
    %1258 = vmatprep.subr.mxu0 0.0
    %1259 = vmatpush1.msra.mxu0 %v1232
    %1260 = vmatprep.subr.mxu0 0.0
    %1261 = vmatpush1.msra.mxu0 %v1233
    %1262 = vmatprep.subr.mxu0 0.0
    %1263 = vmatpush1.msra.mxu0 %v1234
    %1264 = vmatprep.subr.mxu0 0.0
    %1265 = vmatpush1.msra.mxu0 %v1235
    %1266 = vmatprep.subr.mxu0 0.0
    %1267 = vmatpush1.msra.mxu0 %v1236
    %1268 = vmatprep.subr.mxu0 0.0
    %1269 = vmatpush1.msra.mxu0 %v1237
    %1270 = vmatprep.subr.mxu0 0.0
    %1271 = vmatpush1.msra.mxu0 %v1238
    %1272 = vmatprep.subr.mxu0 0.0
    %1273 = vmatpush1.msra.mxu0 %v1239
    %1274 = vmatprep.subr.mxu0 0.0
    %1275 = vmatpush1.msra.mxu0 %v1240
    %1276 = vmatprep.subr.mxu0 0.0
    %1277 = vmatpush1.msra.mxu0 %v1241
    %1278 = vmatprep.subr.mxu0 0.0
    %1279 = vmatpush1.msra.mxu0 0.0
    %1280 = vmatprep.subr.mxu0 0.0
    %1281 = vmatpush1.msra.mxu0 0.0
    %1282 = vmatprep.subr.mxu0 0.0
    %1283 = vmatpush1.msra.mxu0 0.0
    %1284 = vmatprep.subr.mxu0 0.0
    %1285 = vmatpush1.msra.mxu0 0.0
    %1286 = vmatprep.subr.mxu0 0.0
    %1287 = vmatpush1.msra.mxu0 0.0
    %1288 = vmatprep.subr.mxu0 0.0
    %1289 = vmatpush1.msra.mxu0 0.0
    %1290 = vmatprep.subr.mxu0 0.0
    %1291 = vmatpush1.msra.mxu0 0.0
    %1292 = vmatprep.subr.mxu0 0.0
    %1293 = vmatpush1.msra.mxu0 0.0
    %1294 = vmatprep.subr.mxu0 0.0
    %1295 = vmatpush1.msra.mxu0 0.0
    %1296 = vmatprep.subr.mxu0 0.0
    %1297 = vmatpush1.msra.mxu0 0.0
    %1298 = vmatprep.subr.mxu0 0.0
    %1299 = vmatpush1.msra.mxu0 0.0
    %1300 = vmatprep.subr.mxu0 0.0
    %1301 = vmatpush1.msra.mxu0 0.0
    %1302 = vmatprep.subr.mxu0 0.0
    %1303 = vmatpush1.msra.mxu0 0.0
    %1304 = vmatprep.subr.mxu0 0.0
    %1305 = vmatpush1.msra.mxu0 0.0
    %1306 = vmatprep.subr.mxu0 0.0
    %1307 = vmatpush1.msra.mxu0 0.0
    %1308 = vmatprep.subr.mxu0 0.0
    %1309 = vmatpush1.msra.mxu0 0.0
    %1310 = vmatprep.mubr.f32.mxu0 0.0
    %1311 = vmatmul.mubr.f32.gmra.mrb[0].mxu0 %v1224
    %v1312 = vpop.f32.mrb[0].mxu0
    %v1313 = vadd.f32 %v1245, %v1312
    %v1314 = vpop.f32.mrb[0].mxu0
    %1315 = vdwg.mxu0
    %1316 = vmax.xlane.f32.xlu0 %v1313
    %v1317 = vpop.xlane.xlu0 %1316
    %v1318 = vsub.f32 %v1313, %v1317
    %v1319 = vmul.f32 %v1318, 1.442695
    %v1320 = vpow.pop %v1319
    %1321 = vmatprep.subr.mxu0 0.0
    %1322 = vmatpush1.msra.mxu0 %v696
    %1323 = vmatprep.subr.mxu0 0.0
    %1324 = vmatpush1.msra.mxu0 %v697
    %1325 = vmatprep.subr.mxu0 0.0
    %1326 = vmatpush1.msra.mxu0 %v698
    %1327 = vmatprep.subr.mxu0 0.0
    %1328 = vmatpush1.msra.mxu0 %v699
    %1329 = vmatprep.subr.mxu0 0.0
    %1330 = vmatpush1.msra.mxu0 %v700
    %1331 = vmatprep.subr.mxu0 0.0
    %1332 = vmatpush1.msra.mxu0 %v701
    %1333 = vmatprep.subr.mxu0 0.0
    %1334 = vmatpush1.msra.mxu0 %v702
    %1335 = vmatprep.subr.mxu0 0.0
    %1336 = vmatpush1.msra.mxu0 %v703
    %1337 = vmatprep.subr.mxu0 0.0
    %1338 = vmatpush1.msra.mxu0 %v704
    %1339 = vmatprep.subr.mxu0 0.0
    %1340 = vmatpush1.msra.mxu0 %v705
    %1341 = vmatprep.subr.mxu0 0.0
    %1342 = vmatpush1.msra.mxu0 %v706
    %1343 = vmatprep.subr.mxu0 0.0
    %1344 = vmatpush1.msra.mxu0 %v707
    %1345 = vmatprep.subr.mxu0 0.0
    %1346 = vmatpush1.msra.mxu0 %v708
    %1347 = vmatprep.subr.mxu0 0.0
    %1348 = vmatpush1.msra.mxu0 %v709
    %1349 = vmatprep.subr.mxu0 0.0
    %1350 = vmatpush1.msra.mxu0 %v710
    %1351 = vmatprep.subr.mxu0 0.0
    %1352 = vmatpush1.msra.mxu0 %v711
    %1353 = vmatprep.subr.mxu0 0.0
    %1354 = vmatpush1.msra.mxu0 0.0
    %1355 = vmatprep.subr.mxu0 0.0
    %1356 = vmatpush1.msra.mxu0 0.0
    %1357 = vmatprep.subr.mxu0 0.0
    %1358 = vmatpush1.msra.mxu0 0.0
    %1359 = vmatprep.subr.mxu0 0.0
    %1360 = vmatpush1.msra.mxu0 0.0
    %1361 = vmatprep.subr.mxu0 0.0
    %1362 = vmatpush1.msra.mxu0 0.0
    %1363 = vmatprep.subr.mxu0 0.0
    %1364 = vmatpush1.msra.mxu0 0.0
    %1365 = vmatprep.subr.mxu0 0.0
    %1366 = vmatpush1.msra.mxu0 0.0
    %1367 = vmatprep.subr.mxu0 0.0
    %1368 = vmatpush1.msra.mxu0 0.0
    %1369 = vmatprep.subr.mxu0 0.0
    %1370 = vmatpush1.msra.mxu0 0.0
    %1371 = vmatprep.subr.mxu0 0.0
    %1372 = vmatpush1.msra.mxu0 0.0
    %1373 = vmatprep.subr.mxu0 0.0
    %1374 = vmatpush1.msra.mxu0 0.0
    %1375 = vmatprep.subr.mxu0 0.0
    %1376 = vmatpush1.msra.mxu0 0.0
    %1377 = vmatprep.subr.mxu0 0.0
    %1378 = vmatpush1.msra.mxu0 0.0
    %1379 = vmatprep.subr.mxu0 0.0
    %1380 = vmatpush1.msra.mxu0 0.0
    %1381 = vmatprep.subr.mxu0 0.0
    %1382 = vmatpush1.msra.mxu0 0.0
    %1383 = vmatprep.subr.mxu0 0.0
    %1384 = vmatpush1.msra.mxu0 0.0
    %1385 = vmatprep.mubr.f32.mxu0 0.0
    %1386 = vmatmul.mubr.f32.gmra.mrb[0].mxu0 %v1320
    %v1387 = vpop.f32.mrb[0].mxu0
    %v1388 = vadd.f32 0.0, %v1387
    %v1389 = vpop.f32.mrb[0].mxu0
    %1390 = vdwg.mxu0
    %v1391 = vrcp.pop %v1388
    %v1392 = vmul.f32 %v1320, %v1391
    %s1393 = scalar_lea.vmem [#allocation2], 1536
    %v1394 = vld [vmem:[%s1393] sm:$0xff]
    %v1395 = vld [vmem:[%s1393 + $0x8] sm:$0xff]
    %v1396 = vld [vmem:[%s1393 + $0x10] sm:$0xff]
    %v1397 = vld [vmem:[%s1393 + $0x18] sm:$0xff]
    %v1398 = vld [vmem:[%s1393 + $0x20] sm:$0xff]
    %v1399 = vld [vmem:[%s1393 + $0x28] sm:$0xff]
    %v1400 = vld [vmem:[%s1393 + $0x30] sm:$0xff]
    %v1401 = vld [vmem:[%s1393 + $0x38] sm:$0xff]
    %v1402 = vld [vmem:[%s1393 + $0x40] sm:$0xff]
    %v1403 = vld [vmem:[%s1393 + $0x48] sm:$0xff]
    %v1404 = vld [vmem:[%s1393 + $0x50] sm:$0xff]
    %v1405 = vld [vmem:[%s1393 + $0x58] sm:$0xff]
    %v1406 = vld [vmem:[%s1393 + $0x60] sm:$0xff]
    %v1407 = vld [vmem:[%s1393 + $0x68] sm:$0xff]
    %v1408 = vld [vmem:[%s1393 + $0x70] sm:$0xff]
    %v1409 = vld [vmem:[%s1393 + $0x78] sm:$0xff]
    %s1410 = scalar_lea.vmem [#allocation2], 1664
    %v1411 = vld [vmem:[%s1410] sm:$0xff]
    %v1412 = vld [vmem:[%s1410 + $0x8] sm:$0xff]
    %v1413 = vld [vmem:[%s1410 + $0x10] sm:$0xff]
    %v1414 = vld [vmem:[%s1410 + $0x18] sm:$0xff]
    %v1415 = vld [vmem:[%s1410 + $0x20] sm:$0xff]
    %v1416 = vld [vmem:[%s1410 + $0x28] sm:$0xff]
    %v1417 = vld [vmem:[%s1410 + $0x30] sm:$0xff]
    %v1418 = vld [vmem:[%s1410 + $0x38] sm:$0xff]
    %v1419 = vld [vmem:[%s1410 + $0x40] sm:$0xff]
    %v1420 = vld [vmem:[%s1410 + $0x48] sm:$0xff]
    %v1421 = vld [vmem:[%s1410 + $0x50] sm:$0xff]
    %v1422 = vld [vmem:[%s1410 + $0x58] sm:$0xff]
    %v1423 = vld [vmem:[%s1410 + $0x60] sm:$0xff]
    %v1424 = vld [vmem:[%s1410 + $0x68] sm:$0xff]
    %v1425 = vld [vmem:[%s1410 + $0x70] sm:$0xff]
    %v1426 = vld [vmem:[%s1410 + $0x78] sm:$0xff]
    %1427 = vmatprep.subr.mxu0 0.0
    %1428 = vmatpush1.msra.mxu0 %v1411
    %1429 = vmatprep.subr.mxu0 0.0
    %1430 = vmatpush1.msra.mxu0 %v1412
    %1431 = vmatprep.subr.mxu0 0.0
    %1432 = vmatpush1.msra.mxu0 %v1413
    %1433 = vmatprep.subr.mxu0 0.0
    %1434 = vmatpush1.msra.mxu0 %v1414
    %1435 = vmatprep.subr.mxu0 0.0
    %1436 = vmatpush1.msra.mxu0 %v1415
    %1437 = vmatprep.subr.mxu0 0.0
    %1438 = vmatpush1.msra.mxu0 %v1416
    %1439 = vmatprep.subr.mxu0 0.0
    %1440 = vmatpush1.msra.mxu0 %v1417
    %1441 = vmatprep.subr.mxu0 0.0
    %1442 = vmatpush1.msra.mxu0 %v1418
    %1443 = vmatprep.subr.mxu0 0.0
    %1444 = vmatpush1.msra.mxu0 %v1419
    %1445 = vmatprep.subr.mxu0 0.0
    %1446 = vmatpush1.msra.mxu0 %v1420
    %1447 = vmatprep.subr.mxu0 0.0
    %1448 = vmatpush1.msra.mxu0 %v1421
    %1449 = vmatprep.subr.mxu0 0.0
    %1450 = vmatpush1.msra.mxu0 %v1422
    %1451 = vmatprep.subr.mxu0 0.0
    %1452 = vmatpush1.msra.mxu0 %v1423
    %1453 = vmatprep.subr.mxu0 0.0
    %1454 = vmatpush1.msra.mxu0 %v1424
    %1455 = vmatprep.subr.mxu0 0.0
    %1456 = vmatpush1.msra.mxu0 %v1425
    %1457 = vmatprep.subr.mxu0 0.0
    %1458 = vmatpush1.msra.mxu0 %v1426
    %1459 = vmatprep.subr.mxu0 0.0
    %1460 = vmatpush1.msra.mxu0 0.0
    %1461 = vmatprep.subr.mxu0 0.0
    %1462 = vmatpush1.msra.mxu0 0.0
    %1463 = vmatprep.subr.mxu0 0.0
    %1464 = vmatpush1.msra.mxu0 0.0
    %1465 = vmatprep.subr.mxu0 0.0
    %1466 = vmatpush1.msra.mxu0 0.0
    %1467 = vmatprep.subr.mxu0 0.0
    %1468 = vmatpush1.msra.mxu0 0.0
    %1469 = vmatprep.subr.mxu0 0.0
    %1470 = vmatpush1.msra.mxu0 0.0
    %1471 = vmatprep.subr.mxu0 0.0
    %1472 = vmatpush1.msra.mxu0 0.0
    %1473 = vmatprep.subr.mxu0 0.0
    %1474 = vmatpush1.msra.mxu0 0.0
    %1475 = vmatprep.subr.mxu0 0.0
    %1476 = vmatpush1.msra.mxu0 0.0
    %1477 = vmatprep.subr.mxu0 0.0
    %1478 = vmatpush1.msra.mxu0 0.0
    %1479 = vmatprep.subr.mxu0 0.0
    %1480 = vmatpush1.msra.mxu0 0.0
    %1481 = vmatprep.subr.mxu0 0.0
    %1482 = vmatpush1.msra.mxu0 0.0
    %1483 = vmatprep.subr.mxu0 0.0
    %1484 = vmatpush1.msra.mxu0 0.0
    %1485 = vmatprep.subr.mxu0 0.0
    %1486 = vmatpush1.msra.mxu0 0.0
    %1487 = vmatprep.subr.mxu0 0.0
    %1488 = vmatpush1.msra.mxu0 0.0
    %1489 = vmatprep.subr.mxu0 0.0
    %1490 = vmatpush1.msra.mxu0 0.0
    %1491 = vmatprep.mubr.f32.mxu0 0.0
    %1492 = vmatmul.mubr.f32.gmra.mrb[0].mxu0 %v1044
    %v1493 = vpop.f32.mrb[0].mxu0
    %v1494 = vadd.f32 0.0, %v1493
    %v1495 = vpop.f32.mrb[0].mxu0
    %1496 = vdwg.mxu0
    %1497 = vmatprep.subr.mxu0 0.0
    %1498 = vmatpush1.msra.mxu0 %v1394
    %1499 = vmatprep.subr.mxu0 0.0
    %1500 = vmatpush1.msra.mxu0 %v1395
    %1501 = vmatprep.subr.mxu0 0.0
    %1502 = vmatpush1.msra.mxu0 %v1396
    %1503 = vmatprep.subr.mxu0 0.0
    %1504 = vmatpush1.msra.mxu0 %v1397
    %1505 = vmatprep.subr.mxu0 0.0
    %1506 = vmatpush1.msra.mxu0 %v1398
    %1507 = vmatprep.subr.mxu0 0.0
    %1508 = vmatpush1.msra.mxu0 %v1399
    %1509 = vmatprep.subr.mxu0 0.0
    %1510 = vmatpush1.msra.mxu0 %v1400
    %1511 = vmatprep.subr.mxu0 0.0
    %1512 = vmatpush1.msra.mxu0 %v1401
    %1513 = vmatprep.subr.mxu0 0.0
    %1514 = vmatpush1.msra.mxu0 %v1402
    %1515 = vmatprep.subr.mxu0 0.0
    %1516 = vmatpush1.msra.mxu0 %v1403
    %1517 = vmatprep.subr.mxu0 0.0
    %1518 = vmatpush1.msra.mxu0 %v1404
    %1519 = vmatprep.subr.mxu0 0.0
    %1520 = vmatpush1.msra.mxu0 %v1405
    %1521 = vmatprep.subr.mxu0 0.0
    %1522 = vmatpush1.msra.mxu0 %v1406
    %1523 = vmatprep.subr.mxu0 0.0
    %1524 = vmatpush1.msra.mxu0 %v1407
    %1525 = vmatprep.subr.mxu0 0.0
    %1526 = vmatpush1.msra.mxu0 %v1408
    %1527 = vmatprep.subr.mxu0 0.0
    %1528 = vmatpush1.msra.mxu0 %v1409
    %1529 = vmatprep.subr.mxu0 0.0
    %1530 = vmatpush1.msra.mxu0 0.0
    %1531 = vmatprep.subr.mxu0 0.0
    %1532 = vmatpush1.msra.mxu0 0.0
    %1533 = vmatprep.subr.mxu0 0.0
    %1534 = vmatpush1.msra.mxu0 0.0
    %1535 = vmatprep.subr.mxu0 0.0
    %1536 = vmatpush1.msra.mxu0 0.0
    %1537 = vmatprep.subr.mxu0 0.0
    %1538 = vmatpush1.msra.mxu0 0.0
    %1539 = vmatprep.subr.mxu0 0.0
    %1540 = vmatpush1.msra.mxu0 0.0
    %1541 = vmatprep.subr.mxu0 0.0
    %1542 = vmatpush1.msra.mxu0 0.0
    %1543 = vmatprep.subr.mxu0 0.0
    %1544 = vmatpush1.msra.mxu0 0.0
    %1545 = vmatprep.subr.mxu0 0.0
    %1546 = vmatpush1.msra.mxu0 0.0
    %1547 = vmatprep.subr.mxu0 0.0
    %1548 = vmatpush1.msra.mxu0 0.0
    %1549 = vmatprep.subr.mxu0 0.0
    %1550 = vmatpush1.msra.mxu0 0.0
    %1551 = vmatprep.subr.mxu0 0.0
    %1552 = vmatpush1.msra.mxu0 0.0
    %1553 = vmatprep.subr.mxu0 0.0
    %1554 = vmatpush1.msra.mxu0 0.0
    %1555 = vmatprep.subr.mxu0 0.0
    %1556 = vmatpush1.msra.mxu0 0.0
    %1557 = vmatprep.subr.mxu0 0.0
    %1558 = vmatpush1.msra.mxu0 0.0
    %1559 = vmatprep.subr.mxu0 0.0
    %1560 = vmatpush1.msra.mxu0 0.0
    %1561 = vmatprep.mubr.f32.mxu0 0.0
    %1562 = vmatmul.mubr.f32.gmra.mrb[0].mxu0 %v783
    %v1563 = vpop.f32.mrb[0].mxu0
    %v1564 = vadd.f32 %v1494, %v1563
    %v1565 = vpop.f32.mrb[0].mxu0
    %1566 = vdwg.mxu0
    %s1567 = scalar_lea.vmem [#allocation2], 1792
    %v1568 = vld [vmem:[%s1567] sm:$0xff]
    %v1569 = vld [vmem:[%s1567 + $0x8] sm:$0xff]
    %v1570 = vld [vmem:[%s1567 + $0x10] sm:$0xff]
    %v1571 = vld [vmem:[%s1567 + $0x18] sm:$0xff]
    %v1572 = vld [vmem:[%s1567 + $0x20] sm:$0xff]
    %v1573 = vld [vmem:[%s1567 + $0x28] sm:$0xff]
    %v1574 = vld [vmem:[%s1567 + $0x30] sm:$0xff]
    %v1575 = vld [vmem:[%s1567 + $0x38] sm:$0xff]
    %v1576 = vld [vmem:[%s1567 + $0x40] sm:$0xff]
    %v1577 = vld [vmem:[%s1567 + $0x48] sm:$0xff]
    %v1578 = vld [vmem:[%s1567 + $0x50] sm:$0xff]
    %v1579 = vld [vmem:[%s1567 + $0x58] sm:$0xff]
    %v1580 = vld [vmem:[%s1567 + $0x60] sm:$0xff]
    %v1581 = vld [vmem:[%s1567 + $0x68] sm:$0xff]
    %v1582 = vld [vmem:[%s1567 + $0x70] sm:$0xff]
    %v1583 = vld [vmem:[%s1567 + $0x78] sm:$0xff]
    %v1584 = vlaneseq
    %v1585 = vshrl.u32 %v1584, 7
    %v1586 = vsub.s32 3, %v1585
    %v1587 = vrot.slane %v44, %v1586
    %1588 = vmatprep.subr.mxu0 0.0
    %1589 = vmatpush1.msra.mxu0 %v1568
    %1590 = vmatprep.subr.mxu0 0.0
    %1591 = vmatpush1.msra.mxu0 %v1569
    %1592 = vmatprep.subr.mxu0 0.0
    %1593 = vmatpush1.msra.mxu0 %v1570
    %1594 = vmatprep.subr.mxu0 0.0
    %1595 = vmatpush1.msra.mxu0 %v1571
    %1596 = vmatprep.subr.mxu0 0.0
    %1597 = vmatpush1.msra.mxu0 %v1572
    %1598 = vmatprep.subr.mxu0 0.0
    %1599 = vmatpush1.msra.mxu0 %v1573
    %1600 = vmatprep.subr.mxu0 0.0
    %1601 = vmatpush1.msra.mxu0 %v1574
    %1602 = vmatprep.subr.mxu0 0.0
    %1603 = vmatpush1.msra.mxu0 %v1575
    %1604 = vmatprep.subr.mxu0 0.0
    %1605 = vmatpush1.msra.mxu0 %v1576
    %1606 = vmatprep.subr.mxu0 0.0
    %1607 = vmatpush1.msra.mxu0 %v1577
    %1608 = vmatprep.subr.mxu0 0.0
    %1609 = vmatpush1.msra.mxu0 %v1578
    %1610 = vmatprep.subr.mxu0 0.0
    %1611 = vmatpush1.msra.mxu0 %v1579
    %1612 = vmatprep.subr.mxu0 0.0
    %1613 = vmatpush1.msra.mxu0 %v1580
    %1614 = vmatprep.subr.mxu0 0.0
    %1615 = vmatpush1.msra.mxu0 %v1581
    %1616 = vmatprep.subr.mxu0 0.0
    %1617 = vmatpush1.msra.mxu0 %v1582
    %1618 = vmatprep.subr.mxu0 0.0
    %1619 = vmatpush1.msra.mxu0 %v1583
    %1620 = vmatprep.subr.mxu0 0.0
    %1621 = vmatpush1.msra.mxu0 0.0
    %1622 = vmatprep.subr.mxu0 0.0
    %1623 = vmatpush1.msra.mxu0 0.0
    %1624 = vmatprep.subr.mxu0 0.0
    %1625 = vmatpush1.msra.mxu0 0.0
    %1626 = vmatprep.subr.mxu0 0.0
    %1627 = vmatpush1.msra.mxu0 0.0
    %1628 = vmatprep.subr.mxu0 0.0
    %1629 = vmatpush1.msra.mxu0 0.0
    %1630 = vmatprep.subr.mxu0 0.0
    %1631 = vmatpush1.msra.mxu0 0.0
    %1632 = vmatprep.subr.mxu0 0.0
    %1633 = vmatpush1.msra.mxu0 0.0
    %1634 = vmatprep.subr.mxu0 0.0
    %1635 = vmatpush1.msra.mxu0 0.0
    %1636 = vmatprep.subr.mxu0 0.0
    %1637 = vmatpush1.msra.mxu0 0.0
    %1638 = vmatprep.subr.mxu0 0.0
    %1639 = vmatpush1.msra.mxu0 0.0
    %1640 = vmatprep.subr.mxu0 0.0
    %1641 = vmatpush1.msra.mxu0 0.0
    %1642 = vmatprep.subr.mxu0 0.0
    %1643 = vmatpush1.msra.mxu0 0.0
    %1644 = vmatprep.subr.mxu0 0.0
    %1645 = vmatpush1.msra.mxu0 0.0
    %1646 = vmatprep.subr.mxu0 0.0
    %1647 = vmatpush1.msra.mxu0 0.0
    %1648 = vmatprep.subr.mxu0 0.0
    %1649 = vmatpush1.msra.mxu0 0.0
    %1650 = vmatprep.subr.mxu0 0.0
    %1651 = vmatpush1.msra.mxu0 0.0
    %1652 = vmatprep.mubr.f32.mxu0 0.0
    %1653 = vmatmul.mubr.f32.gmra.mrb[0].mxu0 %v1392
    %v1654 = vpop.f32.mrb[0].mxu0
    %v1655 = vadd.f32 %v1587, %v1654
    %v1656 = vpop.f32.mrb[0].mxu0
    %1657 = vdwg.mxu0
    %v1658 = vadd.f32 %v1564, %v1655
    %v1659 = vmul.f32 %v1658, %v595
    %v1660 = vmax.f32 %v1659, 0.0
    %s1661 = scalar_lea.vmem [#allocation2], 1920
    %v1662 = vld [vmem:[%s1661] sm:$0xff]
    %v1663 = vld [vmem:[%s1661 + $0x8] sm:$0xff]
    %v1664 = vld [vmem:[%s1661 + $0x10] sm:$0xff]
    %v1665 = vld [vmem:[%s1661 + $0x18] sm:$0xff]
    %v1666 = vld [vmem:[%s1661 + $0x20] sm:$0xff]
    %v1667 = vld [vmem:[%s1661 + $0x28] sm:$0xff]
    %v1668 = vld [vmem:[%s1661 + $0x30] sm:$0xff]
    %v1669 = vld [vmem:[%s1661 + $0x38] sm:$0xff]
    %v1670 = vld [vmem:[%s1661 + $0x40] sm:$0xff]
    %v1671 = vld [vmem:[%s1661 + $0x48] sm:$0xff]
    %v1672 = vld [vmem:[%s1661 + $0x50] sm:$0xff]
    %v1673 = vld [vmem:[%s1661 + $0x58] sm:$0xff]
    %v1674 = vld [vmem:[%s1661 + $0x60] sm:$0xff]
    %v1675 = vld [vmem:[%s1661 + $0x68] sm:$0xff]
    %v1676 = vld [vmem:[%s1661 + $0x70] sm:$0xff]
    %v1677 = vld [vmem:[%s1661 + $0x78] sm:$0xff]
    %v1678 = vlaneseq
    %v1679 = vshrl.u32 %v1678, 7
    %v1680 = vsub.s32 4, %v1679
    %v1681 = vrot.slane %v44, %v1680
    %1682 = vmatprep.subr.mxu0 0.0
    %1683 = vmatpush1.msra.mxu0 %v1662
    %1684 = vmatprep.subr.mxu0 0.0
    %1685 = vmatpush1.msra.mxu0 %v1663
    %1686 = vmatprep.subr.mxu0 0.0
    %1687 = vmatpush1.msra.mxu0 %v1664
    %1688 = vmatprep.subr.mxu0 0.0
    %1689 = vmatpush1.msra.mxu0 %v1665
    %1690 = vmatprep.subr.mxu0 0.0
    %1691 = vmatpush1.msra.mxu0 %v1666
    %1692 = vmatprep.subr.mxu0 0.0
    %1693 = vmatpush1.msra.mxu0 %v1667
    %1694 = vmatprep.subr.mxu0 0.0
    %1695 = vmatpush1.msra.mxu0 %v1668
    %1696 = vmatprep.subr.mxu0 0.0
    %1697 = vmatpush1.msra.mxu0 %v1669
    %1698 = vmatprep.subr.mxu0 0.0
    %1699 = vmatpush1.msra.mxu0 %v1670
    %1700 = vmatprep.subr.mxu0 0.0
    %1701 = vmatpush1.msra.mxu0 %v1671
    %1702 = vmatprep.subr.mxu0 0.0
    %1703 = vmatpush1.msra.mxu0 %v1672
    %1704 = vmatprep.subr.mxu0 0.0
    %1705 = vmatpush1.msra.mxu0 %v1673
    %1706 = vmatprep.subr.mxu0 0.0
    %1707 = vmatpush1.msra.mxu0 %v1674
    %1708 = vmatprep.subr.mxu0 0.0
    %1709 = vmatpush1.msra.mxu0 %v1675
    %1710 = vmatprep.subr.mxu0 0.0
    %1711 = vmatpush1.msra.mxu0 %v1676
    %1712 = vmatprep.subr.mxu0 0.0
    %1713 = vmatpush1.msra.mxu0 %v1677
    %1714 = vmatprep.subr.mxu0 0.0
    %1715 = vmatpush1.msra.mxu0 0.0
    %1716 = vmatprep.subr.mxu0 0.0
    %1717 = vmatpush1.msra.mxu0 0.0
    %1718 = vmatprep.subr.mxu0 0.0
    %1719 = vmatpush1.msra.mxu0 0.0
    %1720 = vmatprep.subr.mxu0 0.0
    %1721 = vmatpush1.msra.mxu0 0.0
    %1722 = vmatprep.subr.mxu0 0.0
    %1723 = vmatpush1.msra.mxu0 0.0
    %1724 = vmatprep.subr.mxu0 0.0
    %1725 = vmatpush1.msra.mxu0 0.0
    %1726 = vmatprep.subr.mxu0 0.0
    %1727 = vmatpush1.msra.mxu0 0.0
    %1728 = vmatprep.subr.mxu0 0.0
    %1729 = vmatpush1.msra.mxu0 0.0
    %1730 = vmatprep.subr.mxu0 0.0
    %1731 = vmatpush1.msra.mxu0 0.0
    %1732 = vmatprep.subr.mxu0 0.0
    %1733 = vmatpush1.msra.mxu0 0.0
    %1734 = vmatprep.subr.mxu0 0.0
    %1735 = vmatpush1.msra.mxu0 0.0
    %1736 = vmatprep.subr.mxu0 0.0
    %1737 = vmatpush1.msra.mxu0 0.0
    %1738 = vmatprep.subr.mxu0 0.0
    %1739 = vmatpush1.msra.mxu0 0.0
    %1740 = vmatprep.subr.mxu0 0.0
    %1741 = vmatpush1.msra.mxu0 0.0
    %1742 = vmatprep.subr.mxu0 0.0
    %1743 = vmatpush1.msra.mxu0 0.0
    %1744 = vmatprep.subr.mxu0 0.0
    %1745 = vmatpush1.msra.mxu0 0.0
    %1746 = vmatprep.mubr.f32.mxu0 0.0
    %1747 = vmatmul.mubr.f32.gmra.mrb[0].mxu0 %v1660
    %v1748 = vpop.f32.mrb[0].mxu0
    %v1749 = vadd.f32 %v1681, %v1748
    %v1750 = vpop.f32.mrb[0].mxu0
    %1751 = vdwg.mxu0
    %1752 = vmax.xlane.f32.xlu0 %v1749
    %v1753 = vpop.xlane.xlu0 %1752
    %v1754 = vsub.f32 %v1749, %v1753
    %v1755 = vmul.f32 %v1754, 1.442695
    %v1756 = vpow.pop %v1755
    %1757 = vmatprep.subr.mxu0 0.0
    %1758 = vmatpush1.msra.mxu0 %v696
    %1759 = vmatprep.subr.mxu0 0.0
    %1760 = vmatpush1.msra.mxu0 %v697
    %1761 = vmatprep.subr.mxu0 0.0
    %1762 = vmatpush1.msra.mxu0 %v698
    %1763 = vmatprep.subr.mxu0 0.0
    %1764 = vmatpush1.msra.mxu0 %v699
    %1765 = vmatprep.subr.mxu0 0.0
    %1766 = vmatpush1.msra.mxu0 %v700
    %1767 = vmatprep.subr.mxu0 0.0
    %1768 = vmatpush1.msra.mxu0 %v701
    %1769 = vmatprep.subr.mxu0 0.0
    %1770 = vmatpush1.msra.mxu0 %v702
    %1771 = vmatprep.subr.mxu0 0.0
    %1772 = vmatpush1.msra.mxu0 %v703
    %1773 = vmatprep.subr.mxu0 0.0
    %1774 = vmatpush1.msra.mxu0 %v704
    %1775 = vmatprep.subr.mxu0 0.0
    %1776 = vmatpush1.msra.mxu0 %v705
    %1777 = vmatprep.subr.mxu0 0.0
    %1778 = vmatpush1.msra.mxu0 %v706
    %1779 = vmatprep.subr.mxu0 0.0
    %1780 = vmatpush1.msra.mxu0 %v707
    %1781 = vmatprep.subr.mxu0 0.0
    %1782 = vmatpush1.msra.mxu0 %v708
    %1783 = vmatprep.subr.mxu0 0.0
    %1784 = vmatpush1.msra.mxu0 %v709
    %1785 = vmatprep.subr.mxu0 0.0
    %1786 = vmatpush1.msra.mxu0 %v710
    %1787 = vmatprep.subr.mxu0 0.0
    %1788 = vmatpush1.msra.mxu0 %v711
    %1789 = vmatprep.subr.mxu0 0.0
    %1790 = vmatpush1.msra.mxu0 0.0
    %1791 = vmatprep.subr.mxu0 0.0
    %1792 = vmatpush1.msra.mxu0 0.0
    %1793 = vmatprep.subr.mxu0 0.0
    %1794 = vmatpush1.msra.mxu0 0.0
    %1795 = vmatprep.subr.mxu0 0.0
    %1796 = vmatpush1.msra.mxu0 0.0
    %1797 = vmatprep.subr.mxu0 0.0
    %1798 = vmatpush1.msra.mxu0 0.0
    %1799 = vmatprep.subr.mxu0 0.0
    %1800 = vmatpush1.msra.mxu0 0.0
    %1801 = vmatprep.subr.mxu0 0.0
    %1802 = vmatpush1.msra.mxu0 0.0
    %1803 = vmatprep.subr.mxu0 0.0
    %1804 = vmatpush1.msra.mxu0 0.0
    %1805 = vmatprep.subr.mxu0 0.0
    %1806 = vmatpush1.msra.mxu0 0.0
    %1807 = vmatprep.subr.mxu0 0.0
    %1808 = vmatpush1.msra.mxu0 0.0
    %1809 = vmatprep.subr.mxu0 0.0
    %1810 = vmatpush1.msra.mxu0 0.0
    %1811 = vmatprep.subr.mxu0 0.0
    %1812 = vmatpush1.msra.mxu0 0.0
    %1813 = vmatprep.subr.mxu0 0.0
    %1814 = vmatpush1.msra.mxu0 0.0
    %1815 = vmatprep.subr.mxu0 0.0
    %1816 = vmatpush1.msra.mxu0 0.0
    %1817 = vmatprep.subr.mxu0 0.0
    %1818 = vmatpush1.msra.mxu0 0.0
    %1819 = vmatprep.subr.mxu0 0.0
    %1820 = vmatpush1.msra.mxu0 0.0
    %1821 = vmatprep.mubr.f32.mxu0 0.0
    %1822 = vmatmul.mubr.f32.gmra.mrb[0].mxu0 %v1756
    %v1823 = vpop.f32.mrb[0].mxu0
    %v1824 = vadd.f32 0.0, %v1823
    %v1825 = vpop.f32.mrb[0].mxu0
    %1826 = vdwg.mxu0
    %v1827 = vrcp.pop %v1824
    %v1828 = vmul.f32 %v1756, %v1827
    %s1829 = scalar_lea.vmem [#allocation2], 2048
    %v1830 = vld [vmem:[%s1829] sm:$0xff]
    %v1831 = vld [vmem:[%s1829 + $0x8] sm:$0xff]
    %v1832 = vld [vmem:[%s1829 + $0x10] sm:$0xff]
    %v1833 = vld [vmem:[%s1829 + $0x18] sm:$0xff]
    %v1834 = vld [vmem:[%s1829 + $0x20] sm:$0xff]
    %v1835 = vld [vmem:[%s1829 + $0x28] sm:$0xff]
    %v1836 = vld [vmem:[%s1829 + $0x30] sm:$0xff]
    %v1837 = vld [vmem:[%s1829 + $0x38] sm:$0xff]
    %v1838 = vld [vmem:[%s1829 + $0x40] sm:$0xff]
    %v1839 = vld [vmem:[%s1829 + $0x48] sm:$0xff]
    %v1840 = vld [vmem:[%s1829 + $0x50] sm:$0xff]
    %v1841 = vld [vmem:[%s1829 + $0x58] sm:$0xff]
    %v1842 = vld [vmem:[%s1829 + $0x60] sm:$0xff]
    %v1843 = vld [vmem:[%s1829 + $0x68] sm:$0xff]
    %v1844 = vld [vmem:[%s1829 + $0x70] sm:$0xff]
    %v1845 = vld [vmem:[%s1829 + $0x78] sm:$0xff]
    %v1846 = vlaneseq
    %v1847 = vshrl.u32 %v1846, 7
    %v1848 = vsub.s32 5, %v1847
    %v1849 = vrot.slane %v44, %v1848
    %1850 = vmatprep.subr.mxu0 0.0
    %1851 = vmatpush1.msra.mxu0 %v1830
    %1852 = vmatprep.subr.mxu0 0.0
    %1853 = vmatpush1.msra.mxu0 %v1831
    %1854 = vmatprep.subr.mxu0 0.0
    %1855 = vmatpush1.msra.mxu0 %v1832
    %1856 = vmatprep.subr.mxu0 0.0
    %1857 = vmatpush1.msra.mxu0 %v1833
    %1858 = vmatprep.subr.mxu0 0.0
    %1859 = vmatpush1.msra.mxu0 %v1834
    %1860 = vmatprep.subr.mxu0 0.0
    %1861 = vmatpush1.msra.mxu0 %v1835
    %1862 = vmatprep.subr.mxu0 0.0
    %1863 = vmatpush1.msra.mxu0 %v1836
    %1864 = vmatprep.subr.mxu0 0.0
    %1865 = vmatpush1.msra.mxu0 %v1837
    %1866 = vmatprep.subr.mxu0 0.0
    %1867 = vmatpush1.msra.mxu0 %v1838
    %1868 = vmatprep.subr.mxu0 0.0
    %1869 = vmatpush1.msra.mxu0 %v1839
    %1870 = vmatprep.subr.mxu0 0.0
    %1871 = vmatpush1.msra.mxu0 %v1840
    %1872 = vmatprep.subr.mxu0 0.0
    %1873 = vmatpush1.msra.mxu0 %v1841
    %1874 = vmatprep.subr.mxu0 0.0
    %1875 = vmatpush1.msra.mxu0 %v1842
    %1876 = vmatprep.subr.mxu0 0.0
    %1877 = vmatpush1.msra.mxu0 %v1843
    %1878 = vmatprep.subr.mxu0 0.0
    %1879 = vmatpush1.msra.mxu0 %v1844
    %1880 = vmatprep.subr.mxu0 0.0
    %1881 = vmatpush1.msra.mxu0 %v1845
    %1882 = vmatprep.subr.mxu0 0.0
    %1883 = vmatpush1.msra.mxu0 0.0
    %1884 = vmatprep.subr.mxu0 0.0
    %1885 = vmatpush1.msra.mxu0 0.0
    %1886 = vmatprep.subr.mxu0 0.0
    %1887 = vmatpush1.msra.mxu0 0.0
    %1888 = vmatprep.subr.mxu0 0.0
    %1889 = vmatpush1.msra.mxu0 0.0
    %1890 = vmatprep.subr.mxu0 0.0
    %1891 = vmatpush1.msra.mxu0 0.0
    %1892 = vmatprep.subr.mxu0 0.0
    %1893 = vmatpush1.msra.mxu0 0.0
    %1894 = vmatprep.subr.mxu0 0.0
    %1895 = vmatpush1.msra.mxu0 0.0
    %1896 = vmatprep.subr.mxu0 0.0
    %1897 = vmatpush1.msra.mxu0 0.0
    %1898 = vmatprep.subr.mxu0 0.0
    %1899 = vmatpush1.msra.mxu0 0.0
    %1900 = vmatprep.subr.mxu0 0.0
    %1901 = vmatpush1.msra.mxu0 0.0
    %1902 = vmatprep.subr.mxu0 0.0
    %1903 = vmatpush1.msra.mxu0 0.0
    %1904 = vmatprep.subr.mxu0 0.0
    %1905 = vmatpush1.msra.mxu0 0.0
    %1906 = vmatprep.subr.mxu0 0.0
    %1907 = vmatpush1.msra.mxu0 0.0
    %1908 = vmatprep.subr.mxu0 0.0
    %1909 = vmatpush1.msra.mxu0 0.0
    %1910 = vmatprep.subr.mxu0 0.0
    %1911 = vmatpush1.msra.mxu0 0.0
    %1912 = vmatprep.subr.mxu0 0.0
    %1913 = vmatpush1.msra.mxu0 0.0
    %1914 = vmatprep.mubr.f32.mxu0 0.0
    %1915 = vmatmul.mubr.f32.gmra.mrb[0].mxu0 %v413
    %v1916 = vpop.f32.mrb[0].mxu0
    %v1917 = vadd.f32 %v1849, %v1916
    %v1918 = vpop.f32.mrb[0].mxu0
    %1919 = vdwg.mxu0
    %s1920 = scalar_lea.vmem [#allocation2], 2816
    %v1921 = vld [vmem:[%s1920] sm:$0xff]
    %v1922 = vld [vmem:[%s1920 + $0x8] sm:$0xff]
    %v1923 = vld [vmem:[%s1920 + $0x10] sm:$0xff]
    %v1924 = vld [vmem:[%s1920 + $0x18] sm:$0xff]
    %v1925 = vld [vmem:[%s1920 + $0x20] sm:$0xff]
    %v1926 = vld [vmem:[%s1920 + $0x28] sm:$0xff]
    %v1927 = vld [vmem:[%s1920 + $0x30] sm:$0xff]
    %v1928 = vld [vmem:[%s1920 + $0x38] sm:$0xff]
    %v1929 = vld [vmem:[%s1920 + $0x40] sm:$0xff]
    %v1930 = vld [vmem:[%s1920 + $0x48] sm:$0xff]
    %v1931 = vld [vmem:[%s1920 + $0x50] sm:$0xff]
    %v1932 = vld [vmem:[%s1920 + $0x58] sm:$0xff]
    %v1933 = vld [vmem:[%s1920 + $0x60] sm:$0xff]
    %v1934 = vld [vmem:[%s1920 + $0x68] sm:$0xff]
    %v1935 = vld [vmem:[%s1920 + $0x70] sm:$0xff]
    %v1936 = vld [vmem:[%s1920 + $0x78] sm:$0xff]
    %1937 = vmatprep.subr.mxu0 0.0
    %1938 = vmatpush1.msra.mxu0 %v1921
    %1939 = vmatprep.subr.mxu0 0.0
    %1940 = vmatpush1.msra.mxu0 %v1922
    %1941 = vmatprep.subr.mxu0 0.0
    %1942 = vmatpush1.msra.mxu0 %v1923
    %1943 = vmatprep.subr.mxu0 0.0
    %1944 = vmatpush1.msra.mxu0 %v1924
    %1945 = vmatprep.subr.mxu0 0.0
    %1946 = vmatpush1.msra.mxu0 %v1925
    %1947 = vmatprep.subr.mxu0 0.0
    %1948 = vmatpush1.msra.mxu0 %v1926
    %1949 = vmatprep.subr.mxu0 0.0
    %1950 = vmatpush1.msra.mxu0 %v1927
    %1951 = vmatprep.subr.mxu0 0.0
    %1952 = vmatpush1.msra.mxu0 %v1928
    %1953 = vmatprep.subr.mxu0 0.0
    %1954 = vmatpush1.msra.mxu0 %v1929
    %1955 = vmatprep.subr.mxu0 0.0
    %1956 = vmatpush1.msra.mxu0 %v1930
    %1957 = vmatprep.subr.mxu0 0.0
    %1958 = vmatpush1.msra.mxu0 %v1931
    %1959 = vmatprep.subr.mxu0 0.0
    %1960 = vmatpush1.msra.mxu0 %v1932
    %1961 = vmatprep.subr.mxu0 0.0
    %1962 = vmatpush1.msra.mxu0 %v1933
    %1963 = vmatprep.subr.mxu0 0.0
    %1964 = vmatpush1.msra.mxu0 %v1934
    %1965 = vmatprep.subr.mxu0 0.0
    %1966 = vmatpush1.msra.mxu0 %v1935
    %1967 = vmatprep.subr.mxu0 0.0
    %1968 = vmatpush1.msra.mxu0 %v1936
    %1969 = vmatprep.subr.mxu0 0.0
    %1970 = vmatpush1.msra.mxu0 0.0
    %1971 = vmatprep.subr.mxu0 0.0
    %1972 = vmatpush1.msra.mxu0 0.0
    %1973 = vmatprep.subr.mxu0 0.0
    %1974 = vmatpush1.msra.mxu0 0.0
    %1975 = vmatprep.subr.mxu0 0.0
    %1976 = vmatpush1.msra.mxu0 0.0
    %1977 = vmatprep.subr.mxu0 0.0
    %1978 = vmatpush1.msra.mxu0 0.0
    %1979 = vmatprep.subr.mxu0 0.0
    %1980 = vmatpush1.msra.mxu0 0.0
    %1981 = vmatprep.subr.mxu0 0.0
    %1982 = vmatpush1.msra.mxu0 0.0
    %1983 = vmatprep.subr.mxu0 0.0
    %1984 = vmatpush1.msra.mxu0 0.0
    %1985 = vmatprep.subr.mxu0 0.0
    %1986 = vmatpush1.msra.mxu0 0.0
    %1987 = vmatprep.subr.mxu0 0.0
    %1988 = vmatpush1.msra.mxu0 0.0
    %1989 = vmatprep.subr.mxu0 0.0
    %1990 = vmatpush1.msra.mxu0 0.0
    %1991 = vmatprep.subr.mxu0 0.0
    %1992 = vmatpush1.msra.mxu0 0.0
    %1993 = vmatprep.subr.mxu0 0.0
    %1994 = vmatpush1.msra.mxu0 0.0
    %1995 = vmatprep.subr.mxu0 0.0
    %1996 = vmatpush1.msra.mxu0 0.0
    %1997 = vmatprep.subr.mxu0 0.0
    %1998 = vmatpush1.msra.mxu0 0.0
    %1999 = vmatprep.subr.mxu0 0.0
    %2000 = vmatpush1.msra.mxu0 0.0
    %2001 = vmatprep.mubr.f32.mxu0 0.0
    %2002 = vmatmul.mubr.f32.gmra.mrb[0].mxu0 %v783
    %v2003 = vpop.f32.mrb[0].mxu0
    %v2004 = vadd.f32 0.0, %v2003
    %v2005 = vpop.f32.mrb[0].mxu0
    %2006 = vdwg.mxu0
    %s2007 = scalar_lea.vmem [#allocation2], 3328
    %v2008 = vld [vmem:[%s2007] sm:$0xff]
    %v2009 = vld [vmem:[%s2007 + $0x8] sm:$0xff]
    %v2010 = vld [vmem:[%s2007 + $0x10] sm:$0xff]
    %v2011 = vld [vmem:[%s2007 + $0x18] sm:$0xff]
    %v2012 = vld [vmem:[%s2007 + $0x20] sm:$0xff]
    %v2013 = vld [vmem:[%s2007 + $0x28] sm:$0xff]
    %v2014 = vld [vmem:[%s2007 + $0x30] sm:$0xff]
    %v2015 = vld [vmem:[%s2007 + $0x38] sm:$0xff]
    %v2016 = vld [vmem:[%s2007 + $0x40] sm:$0xff]
    %v2017 = vld [vmem:[%s2007 + $0x48] sm:$0xff]
    %v2018 = vld [vmem:[%s2007 + $0x50] sm:$0xff]
    %v2019 = vld [vmem:[%s2007 + $0x58] sm:$0xff]
    %v2020 = vld [vmem:[%s2007 + $0x60] sm:$0xff]
    %v2021 = vld [vmem:[%s2007 + $0x68] sm:$0xff]
    %v2022 = vld [vmem:[%s2007 + $0x70] sm:$0xff]
    %v2023 = vld [vmem:[%s2007 + $0x78] sm:$0xff]
    %2024 = vmatprep.subr.mxu0 0.0
    %2025 = vmatpush1.msra.mxu0 %v2008
    %2026 = vmatprep.subr.mxu0 0.0
    %2027 = vmatpush1.msra.mxu0 %v2009
    %2028 = vmatprep.subr.mxu0 0.0
    %2029 = vmatpush1.msra.mxu0 %v2010
    %2030 = vmatprep.subr.mxu0 0.0
    %2031 = vmatpush1.msra.mxu0 %v2011
    %2032 = vmatprep.subr.mxu0 0.0
    %2033 = vmatpush1.msra.mxu0 %v2012
    %2034 = vmatprep.subr.mxu0 0.0
    %2035 = vmatpush1.msra.mxu0 %v2013
    %2036 = vmatprep.subr.mxu0 0.0
    %2037 = vmatpush1.msra.mxu0 %v2014
    %2038 = vmatprep.subr.mxu0 0.0
    %2039 = vmatpush1.msra.mxu0 %v2015
    %2040 = vmatprep.subr.mxu0 0.0
    %2041 = vmatpush1.msra.mxu0 %v2016
    %2042 = vmatprep.subr.mxu0 0.0
    %2043 = vmatpush1.msra.mxu0 %v2017
    %2044 = vmatprep.subr.mxu0 0.0
    %2045 = vmatpush1.msra.mxu0 %v2018
    %2046 = vmatprep.subr.mxu0 0.0
    %2047 = vmatpush1.msra.mxu0 %v2019
    %2048 = vmatprep.subr.mxu0 0.0
    %2049 = vmatpush1.msra.mxu0 %v2020
    %2050 = vmatprep.subr.mxu0 0.0
    %2051 = vmatpush1.msra.mxu0 %v2021
    %2052 = vmatprep.subr.mxu0 0.0
    %2053 = vmatpush1.msra.mxu0 %v2022
    %2054 = vmatprep.subr.mxu0 0.0
    %2055 = vmatpush1.msra.mxu0 %v2023
    %2056 = vmatprep.subr.mxu0 0.0
    %2057 = vmatpush1.msra.mxu0 0.0
    %2058 = vmatprep.subr.mxu0 0.0
    %2059 = vmatpush1.msra.mxu0 0.0
    %2060 = vmatprep.subr.mxu0 0.0
    %2061 = vmatpush1.msra.mxu0 0.0
    %2062 = vmatprep.subr.mxu0 0.0
    %2063 = vmatpush1.msra.mxu0 0.0
    %2064 = vmatprep.subr.mxu0 0.0
    %2065 = vmatpush1.msra.mxu0 0.0
    %2066 = vmatprep.subr.mxu0 0.0
    %2067 = vmatpush1.msra.mxu0 0.0
    %2068 = vmatprep.subr.mxu0 0.0
    %2069 = vmatpush1.msra.mxu0 0.0
    %2070 = vmatprep.subr.mxu0 0.0
    %2071 = vmatpush1.msra.mxu0 0.0
    %2072 = vmatprep.subr.mxu0 0.0
    %2073 = vmatpush1.msra.mxu0 0.0
    %2074 = vmatprep.subr.mxu0 0.0
    %2075 = vmatpush1.msra.mxu0 0.0
    %2076 = vmatprep.subr.mxu0 0.0
    %2077 = vmatpush1.msra.mxu0 0.0
    %2078 = vmatprep.subr.mxu0 0.0
    %2079 = vmatpush1.msra.mxu0 0.0
    %2080 = vmatprep.subr.mxu0 0.0
    %2081 = vmatpush1.msra.mxu0 0.0
    %2082 = vmatprep.subr.mxu0 0.0
    %2083 = vmatpush1.msra.mxu0 0.0
    %2084 = vmatprep.subr.mxu0 0.0
    %2085 = vmatpush1.msra.mxu0 0.0
    %2086 = vmatprep.subr.mxu0 0.0
    %2087 = vmatpush1.msra.mxu0 0.0
    %2088 = vmatprep.mubr.f32.mxu0 0.0
    %2089 = vmatmul.mubr.f32.gmra.mrb[0].mxu0 %v1917
    %v2090 = vpop.f32.mrb[0].mxu0
    %v2091 = vadd.f32 0.0, %v2090
    %v2092 = vpop.f32.mrb[0].mxu0
    %2093 = vdwg.mxu0
    %v2094 = vmul.f32 %v2004, %v2091
    %s2095 = scalar_lea.vmem [#allocation2], 2944
    %v2096 = vld [vmem:[%s2095] sm:$0xff]
    %v2097 = vld [vmem:[%s2095 + $0x8] sm:$0xff]
    %v2098 = vld [vmem:[%s2095 + $0x10] sm:$0xff]
    %v2099 = vld [vmem:[%s2095 + $0x18] sm:$0xff]
    %v2100 = vld [vmem:[%s2095 + $0x20] sm:$0xff]
    %v2101 = vld [vmem:[%s2095 + $0x28] sm:$0xff]
    %v2102 = vld [vmem:[%s2095 + $0x30] sm:$0xff]
    %v2103 = vld [vmem:[%s2095 + $0x38] sm:$0xff]
    %v2104 = vld [vmem:[%s2095 + $0x40] sm:$0xff]
    %v2105 = vld [vmem:[%s2095 + $0x48] sm:$0xff]
    %v2106 = vld [vmem:[%s2095 + $0x50] sm:$0xff]
    %v2107 = vld [vmem:[%s2095 + $0x58] sm:$0xff]
    %v2108 = vld [vmem:[%s2095 + $0x60] sm:$0xff]
    %v2109 = vld [vmem:[%s2095 + $0x68] sm:$0xff]
    %v2110 = vld [vmem:[%s2095 + $0x70] sm:$0xff]
    %v2111 = vld [vmem:[%s2095 + $0x78] sm:$0xff]
    %2112 = vmatprep.subr.mxu0 0.0
    %2113 = vmatpush1.msra.mxu0 %v2096
    %2114 = vmatprep.subr.mxu0 0.0
    %2115 = vmatpush1.msra.mxu0 %v2097
    %2116 = vmatprep.subr.mxu0 0.0
    %2117 = vmatpush1.msra.mxu0 %v2098
    %2118 = vmatprep.subr.mxu0 0.0
    %2119 = vmatpush1.msra.mxu0 %v2099
    %2120 = vmatprep.subr.mxu0 0.0
    %2121 = vmatpush1.msra.mxu0 %v2100
    %2122 = vmatprep.subr.mxu0 0.0
    %2123 = vmatpush1.msra.mxu0 %v2101
    %2124 = vmatprep.subr.mxu0 0.0
    %2125 = vmatpush1.msra.mxu0 %v2102
    %2126 = vmatprep.subr.mxu0 0.0
    %2127 = vmatpush1.msra.mxu0 %v2103
    %2128 = vmatprep.subr.mxu0 0.0
    %2129 = vmatpush1.msra.mxu0 %v2104
    %2130 = vmatprep.subr.mxu0 0.0
    %2131 = vmatpush1.msra.mxu0 %v2105
    %2132 = vmatprep.subr.mxu0 0.0
    %2133 = vmatpush1.msra.mxu0 %v2106
    %2134 = vmatprep.subr.mxu0 0.0
    %2135 = vmatpush1.msra.mxu0 %v2107
    %2136 = vmatprep.subr.mxu0 0.0
    %2137 = vmatpush1.msra.mxu0 %v2108
    %2138 = vmatprep.subr.mxu0 0.0
    %2139 = vmatpush1.msra.mxu0 %v2109
    %2140 = vmatprep.subr.mxu0 0.0
    %2141 = vmatpush1.msra.mxu0 %v2110
    %2142 = vmatprep.subr.mxu0 0.0
    %2143 = vmatpush1.msra.mxu0 %v2111
    %2144 = vmatprep.subr.mxu0 0.0
    %2145 = vmatpush1.msra.mxu0 0.0
    %2146 = vmatprep.subr.mxu0 0.0
    %2147 = vmatpush1.msra.mxu0 0.0
    %2148 = vmatprep.subr.mxu0 0.0
    %2149 = vmatpush1.msra.mxu0 0.0
    %2150 = vmatprep.subr.mxu0 0.0
    %2151 = vmatpush1.msra.mxu0 0.0
    %2152 = vmatprep.subr.mxu0 0.0
    %2153 = vmatpush1.msra.mxu0 0.0
    %2154 = vmatprep.subr.mxu0 0.0
    %2155 = vmatpush1.msra.mxu0 0.0
    %2156 = vmatprep.subr.mxu0 0.0
    %2157 = vmatpush1.msra.mxu0 0.0
    %2158 = vmatprep.subr.mxu0 0.0
    %2159 = vmatpush1.msra.mxu0 0.0
    %2160 = vmatprep.subr.mxu0 0.0
    %2161 = vmatpush1.msra.mxu0 0.0
    %2162 = vmatprep.subr.mxu0 0.0
    %2163 = vmatpush1.msra.mxu0 0.0
    %2164 = vmatprep.subr.mxu0 0.0
    %2165 = vmatpush1.msra.mxu0 0.0
    %2166 = vmatprep.subr.mxu0 0.0
    %2167 = vmatpush1.msra.mxu0 0.0
    %2168 = vmatprep.subr.mxu0 0.0
    %2169 = vmatpush1.msra.mxu0 0.0
    %2170 = vmatprep.subr.mxu0 0.0
    %2171 = vmatpush1.msra.mxu0 0.0
    %2172 = vmatprep.subr.mxu0 0.0
    %2173 = vmatpush1.msra.mxu0 0.0
    %2174 = vmatprep.subr.mxu0 0.0
    %2175 = vmatpush1.msra.mxu0 0.0
    %2176 = vmatprep.mubr.f32.mxu0 0.0
    %2177 = vmatmul.mubr.f32.gmra.mrb[0].mxu0 %v783
    %v2178 = vpop.f32.mrb[0].mxu0
    %v2179 = vadd.f32 0.0, %v2178
    %v2180 = vpop.f32.mrb[0].mxu0
    %2181 = vdwg.mxu0
    %s2182 = scalar_lea.vmem [#allocation2], 3456
    %v2183 = vld [vmem:[%s2182] sm:$0xff]
    %v2184 = vld [vmem:[%s2182 + $0x8] sm:$0xff]
    %v2185 = vld [vmem:[%s2182 + $0x10] sm:$0xff]
    %v2186 = vld [vmem:[%s2182 + $0x18] sm:$0xff]
    %v2187 = vld [vmem:[%s2182 + $0x20] sm:$0xff]
    %v2188 = vld [vmem:[%s2182 + $0x28] sm:$0xff]
    %v2189 = vld [vmem:[%s2182 + $0x30] sm:$0xff]
    %v2190 = vld [vmem:[%s2182 + $0x38] sm:$0xff]
    %v2191 = vld [vmem:[%s2182 + $0x40] sm:$0xff]
    %v2192 = vld [vmem:[%s2182 + $0x48] sm:$0xff]
    %v2193 = vld [vmem:[%s2182 + $0x50] sm:$0xff]
    %v2194 = vld [vmem:[%s2182 + $0x58] sm:$0xff]
    %v2195 = vld [vmem:[%s2182 + $0x60] sm:$0xff]
    %v2196 = vld [vmem:[%s2182 + $0x68] sm:$0xff]
    %v2197 = vld [vmem:[%s2182 + $0x70] sm:$0xff]
    %v2198 = vld [vmem:[%s2182 + $0x78] sm:$0xff]
    %2199 = vmatprep.subr.mxu0 0.0
    %2200 = vmatpush1.msra.mxu0 %v2183
    %2201 = vmatprep.subr.mxu0 0.0
    %2202 = vmatpush1.msra.mxu0 %v2184
    %2203 = vmatprep.subr.mxu0 0.0
    %2204 = vmatpush1.msra.mxu0 %v2185
    %2205 = vmatprep.subr.mxu0 0.0
    %2206 = vmatpush1.msra.mxu0 %v2186
    %2207 = vmatprep.subr.mxu0 0.0
    %2208 = vmatpush1.msra.mxu0 %v2187
    %2209 = vmatprep.subr.mxu0 0.0
    %2210 = vmatpush1.msra.mxu0 %v2188
    %2211 = vmatprep.subr.mxu0 0.0
    %2212 = vmatpush1.msra.mxu0 %v2189
    %2213 = vmatprep.subr.mxu0 0.0
    %2214 = vmatpush1.msra.mxu0 %v2190
    %2215 = vmatprep.subr.mxu0 0.0
    %2216 = vmatpush1.msra.mxu0 %v2191
    %2217 = vmatprep.subr.mxu0 0.0
    %2218 = vmatpush1.msra.mxu0 %v2192
    %2219 = vmatprep.subr.mxu0 0.0
    %2220 = vmatpush1.msra.mxu0 %v2193
    %2221 = vmatprep.subr.mxu0 0.0
    %2222 = vmatpush1.msra.mxu0 %v2194
    %2223 = vmatprep.subr.mxu0 0.0
    %2224 = vmatpush1.msra.mxu0 %v2195
    %2225 = vmatprep.subr.mxu0 0.0
    %2226 = vmatpush1.msra.mxu0 %v2196
    %2227 = vmatprep.subr.mxu0 0.0
    %2228 = vmatpush1.msra.mxu0 %v2197
    %2229 = vmatprep.subr.mxu0 0.0
    %2230 = vmatpush1.msra.mxu0 %v2198
    %2231 = vmatprep.subr.mxu0 0.0
    %2232 = vmatpush1.msra.mxu0 0.0
    %2233 = vmatprep.subr.mxu0 0.0
    %2234 = vmatpush1.msra.mxu0 0.0
    %2235 = vmatprep.subr.mxu0 0.0
    %2236 = vmatpush1.msra.mxu0 0.0
    %2237 = vmatprep.subr.mxu0 0.0
    %2238 = vmatpush1.msra.mxu0 0.0
    %2239 = vmatprep.subr.mxu0 0.0
    %2240 = vmatpush1.msra.mxu0 0.0
    %2241 = vmatprep.subr.mxu0 0.0
    %2242 = vmatpush1.msra.mxu0 0.0
    %2243 = vmatprep.subr.mxu0 0.0
    %2244 = vmatpush1.msra.mxu0 0.0
    %2245 = vmatprep.subr.mxu0 0.0
    %2246 = vmatpush1.msra.mxu0 0.0
    %2247 = vmatprep.subr.mxu0 0.0
    %2248 = vmatpush1.msra.mxu0 0.0
    %2249 = vmatprep.subr.mxu0 0.0
    %2250 = vmatpush1.msra.mxu0 0.0
    %2251 = vmatprep.subr.mxu0 0.0
    %2252 = vmatpush1.msra.mxu0 0.0
    %2253 = vmatprep.subr.mxu0 0.0
    %2254 = vmatpush1.msra.mxu0 0.0
    %2255 = vmatprep.subr.mxu0 0.0
    %2256 = vmatpush1.msra.mxu0 0.0
    %2257 = vmatprep.subr.mxu0 0.0
    %2258 = vmatpush1.msra.mxu0 0.0
    %2259 = vmatprep.subr.mxu0 0.0
    %2260 = vmatpush1.msra.mxu0 0.0
    %2261 = vmatprep.subr.mxu0 0.0
    %2262 = vmatpush1.msra.mxu0 0.0
    %2263 = vmatprep.mubr.f32.mxu0 0.0
    %2264 = vmatmul.mubr.f32.gmra.mrb[0].mxu0 %v1917
    %v2265 = vpop.f32.mrb[0].mxu0
    %v2266 = vadd.f32 0.0, %v2265
    %v2267 = vpop.f32.mrb[0].mxu0
    %2268 = vdwg.mxu0
    %v2269 = vmul.f32 %v2179, %v2266
    %v2270 = vadd.f32 %v2094, %v2269
    %s2271 = scalar_lea.vmem [#allocation2], 3072
    %v2272 = vld [vmem:[%s2271] sm:$0xff]
    %v2273 = vld [vmem:[%s2271 + $0x8] sm:$0xff]
    %v2274 = vld [vmem:[%s2271 + $0x10] sm:$0xff]
    %v2275 = vld [vmem:[%s2271 + $0x18] sm:$0xff]
    %v2276 = vld [vmem:[%s2271 + $0x20] sm:$0xff]
    %v2277 = vld [vmem:[%s2271 + $0x28] sm:$0xff]
    %v2278 = vld [vmem:[%s2271 + $0x30] sm:$0xff]
    %v2279 = vld [vmem:[%s2271 + $0x38] sm:$0xff]
    %v2280 = vld [vmem:[%s2271 + $0x40] sm:$0xff]
    %v2281 = vld [vmem:[%s2271 + $0x48] sm:$0xff]
    %v2282 = vld [vmem:[%s2271 + $0x50] sm:$0xff]
    %v2283 = vld [vmem:[%s2271 + $0x58] sm:$0xff]
    %v2284 = vld [vmem:[%s2271 + $0x60] sm:$0xff]
    %v2285 = vld [vmem:[%s2271 + $0x68] sm:$0xff]
    %v2286 = vld [vmem:[%s2271 + $0x70] sm:$0xff]
    %v2287 = vld [vmem:[%s2271 + $0x78] sm:$0xff]
    %2288 = vmatprep.subr.mxu0 0.0
    %2289 = vmatpush1.msra.mxu0 %v2272
    %2290 = vmatprep.subr.mxu0 0.0
    %2291 = vmatpush1.msra.mxu0 %v2273
    %2292 = vmatprep.subr.mxu0 0.0
    %2293 = vmatpush1.msra.mxu0 %v2274
    %2294 = vmatprep.subr.mxu0 0.0
    %2295 = vmatpush1.msra.mxu0 %v2275
    %2296 = vmatprep.subr.mxu0 0.0
    %2297 = vmatpush1.msra.mxu0 %v2276
    %2298 = vmatprep.subr.mxu0 0.0
    %2299 = vmatpush1.msra.mxu0 %v2277
    %2300 = vmatprep.subr.mxu0 0.0
    %2301 = vmatpush1.msra.mxu0 %v2278
    %2302 = vmatprep.subr.mxu0 0.0
    %2303 = vmatpush1.msra.mxu0 %v2279
    %2304 = vmatprep.subr.mxu0 0.0
    %2305 = vmatpush1.msra.mxu0 %v2280
    %2306 = vmatprep.subr.mxu0 0.0
    %2307 = vmatpush1.msra.mxu0 %v2281
    %2308 = vmatprep.subr.mxu0 0.0
    %2309 = vmatpush1.msra.mxu0 %v2282
    %2310 = vmatprep.subr.mxu0 0.0
    %2311 = vmatpush1.msra.mxu0 %v2283
    %2312 = vmatprep.subr.mxu0 0.0
    %2313 = vmatpush1.msra.mxu0 %v2284
    %2314 = vmatprep.subr.mxu0 0.0
    %2315 = vmatpush1.msra.mxu0 %v2285
    %2316 = vmatprep.subr.mxu0 0.0
    %2317 = vmatpush1.msra.mxu0 %v2286
    %2318 = vmatprep.subr.mxu0 0.0
    %2319 = vmatpush1.msra.mxu0 %v2287
    %2320 = vmatprep.subr.mxu0 0.0
    %2321 = vmatpush1.msra.mxu0 0.0
    %2322 = vmatprep.subr.mxu0 0.0
    %2323 = vmatpush1.msra.mxu0 0.0
    %2324 = vmatprep.subr.mxu0 0.0
    %2325 = vmatpush1.msra.mxu0 0.0
    %2326 = vmatprep.subr.mxu0 0.0
    %2327 = vmatpush1.msra.mxu0 0.0
    %2328 = vmatprep.subr.mxu0 0.0
    %2329 = vmatpush1.msra.mxu0 0.0
    %2330 = vmatprep.subr.mxu0 0.0
    %2331 = vmatpush1.msra.mxu0 0.0
    %2332 = vmatprep.subr.mxu0 0.0
    %2333 = vmatpush1.msra.mxu0 0.0
    %2334 = vmatprep.subr.mxu0 0.0
    %2335 = vmatpush1.msra.mxu0 0.0
    %2336 = vmatprep.subr.mxu0 0.0
    %2337 = vmatpush1.msra.mxu0 0.0
    %2338 = vmatprep.subr.mxu0 0.0
    %2339 = vmatpush1.msra.mxu0 0.0
    %2340 = vmatprep.subr.mxu0 0.0
    %2341 = vmatpush1.msra.mxu0 0.0
    %2342 = vmatprep.subr.mxu0 0.0
    %2343 = vmatpush1.msra.mxu0 0.0
    %2344 = vmatprep.subr.mxu0 0.0
    %2345 = vmatpush1.msra.mxu0 0.0
    %2346 = vmatprep.subr.mxu0 0.0
    %2347 = vmatpush1.msra.mxu0 0.0
    %2348 = vmatprep.subr.mxu0 0.0
    %2349 = vmatpush1.msra.mxu0 0.0
    %2350 = vmatprep.subr.mxu0 0.0
    %2351 = vmatpush1.msra.mxu0 0.0
    %2352 = vmatprep.mubr.f32.mxu0 0.0
    %2353 = vmatmul.mubr.f32.gmra.mrb[0].mxu0 %v783
    %v2354 = vpop.f32.mrb[0].mxu0
    %v2355 = vadd.f32 0.0, %v2354
    %v2356 = vpop.f32.mrb[0].mxu0
    %2357 = vdwg.mxu0
    %s2358 = scalar_lea.vmem [#allocation2], 3584
    %v2359 = vld [vmem:[%s2358] sm:$0xff]
    %v2360 = vld [vmem:[%s2358 + $0x8] sm:$0xff]
    %v2361 = vld [vmem:[%s2358 + $0x10] sm:$0xff]
    %v2362 = vld [vmem:[%s2358 + $0x18] sm:$0xff]
    %v2363 = vld [vmem:[%s2358 + $0x20] sm:$0xff]
    %v2364 = vld [vmem:[%s2358 + $0x28] sm:$0xff]
    %v2365 = vld [vmem:[%s2358 + $0x30] sm:$0xff]
    %v2366 = vld [vmem:[%s2358 + $0x38] sm:$0xff]
    %v2367 = vld [vmem:[%s2358 + $0x40] sm:$0xff]
    %v2368 = vld [vmem:[%s2358 + $0x48] sm:$0xff]
    %v2369 = vld [vmem:[%s2358 + $0x50] sm:$0xff]
    %v2370 = vld [vmem:[%s2358 + $0x58] sm:$0xff]
    %v2371 = vld [vmem:[%s2358 + $0x60] sm:$0xff]
    %v2372 = vld [vmem:[%s2358 + $0x68] sm:$0xff]
    %v2373 = vld [vmem:[%s2358 + $0x70] sm:$0xff]
    %v2374 = vld [vmem:[%s2358 + $0x78] sm:$0xff]
    %2375 = vmatprep.subr.mxu0 0.0
    %2376 = vmatpush1.msra.mxu0 %v2359
    %2377 = vmatprep.subr.mxu0 0.0
    %2378 = vmatpush1.msra.mxu0 %v2360
    %2379 = vmatprep.subr.mxu0 0.0
    %2380 = vmatpush1.msra.mxu0 %v2361
    %2381 = vmatprep.subr.mxu0 0.0
    %2382 = vmatpush1.msra.mxu0 %v2362
    %2383 = vmatprep.subr.mxu0 0.0
    %2384 = vmatpush1.msra.mxu0 %v2363
    %2385 = vmatprep.subr.mxu0 0.0
    %2386 = vmatpush1.msra.mxu0 %v2364
    %2387 = vmatprep.subr.mxu0 0.0
    %2388 = vmatpush1.msra.mxu0 %v2365
    %2389 = vmatprep.subr.mxu0 0.0
    %2390 = vmatpush1.msra.mxu0 %v2366
    %2391 = vmatprep.subr.mxu0 0.0
    %2392 = vmatpush1.msra.mxu0 %v2367
    %2393 = vmatprep.subr.mxu0 0.0
    %2394 = vmatpush1.msra.mxu0 %v2368
    %2395 = vmatprep.subr.mxu0 0.0
    %2396 = vmatpush1.msra.mxu0 %v2369
    %2397 = vmatprep.subr.mxu0 0.0
    %2398 = vmatpush1.msra.mxu0 %v2370
    %2399 = vmatprep.subr.mxu0 0.0
    %2400 = vmatpush1.msra.mxu0 %v2371
    %2401 = vmatprep.subr.mxu0 0.0
    %2402 = vmatpush1.msra.mxu0 %v2372
    %2403 = vmatprep.subr.mxu0 0.0
    %2404 = vmatpush1.msra.mxu0 %v2373
    %2405 = vmatprep.subr.mxu0 0.0
    %2406 = vmatpush1.msra.mxu0 %v2374
    %2407 = vmatprep.subr.mxu0 0.0
    %2408 = vmatpush1.msra.mxu0 0.0
    %2409 = vmatprep.subr.mxu0 0.0
    %2410 = vmatpush1.msra.mxu0 0.0
    %2411 = vmatprep.subr.mxu0 0.0
    %2412 = vmatpush1.msra.mxu0 0.0
    %2413 = vmatprep.subr.mxu0 0.0
    %2414 = vmatpush1.msra.mxu0 0.0
    %2415 = vmatprep.subr.mxu0 0.0
    %2416 = vmatpush1.msra.mxu0 0.0
    %2417 = vmatprep.subr.mxu0 0.0
    %2418 = vmatpush1.msra.mxu0 0.0
    %2419 = vmatprep.subr.mxu0 0.0
    %2420 = vmatpush1.msra.mxu0 0.0
    %2421 = vmatprep.subr.mxu0 0.0
    %2422 = vmatpush1.msra.mxu0 0.0
    %2423 = vmatprep.subr.mxu0 0.0
    %2424 = vmatpush1.msra.mxu0 0.0
    %2425 = vmatprep.subr.mxu0 0.0
    %2426 = vmatpush1.msra.mxu0 0.0
    %2427 = vmatprep.subr.mxu0 0.0
    %2428 = vmatpush1.msra.mxu0 0.0
    %2429 = vmatprep.subr.mxu0 0.0
    %2430 = vmatpush1.msra.mxu0 0.0
    %2431 = vmatprep.subr.mxu0 0.0
    %2432 = vmatpush1.msra.mxu0 0.0
    %2433 = vmatprep.subr.mxu0 0.0
    %2434 = vmatpush1.msra.mxu0 0.0
    %2435 = vmatprep.subr.mxu0 0.0
    %2436 = vmatpush1.msra.mxu0 0.0
    %2437 = vmatprep.subr.mxu0 0.0
    %2438 = vmatpush1.msra.mxu0 0.0
    %2439 = vmatprep.mubr.f32.mxu0 0.0
    %2440 = vmatmul.mubr.f32.gmra.mrb[0].mxu0 %v1917
    %v2441 = vpop.f32.mrb[0].mxu0
    %v2442 = vadd.f32 0.0, %v2441
    %v2443 = vpop.f32.mrb[0].mxu0
    %2444 = vdwg.mxu0
    %v2445 = vmul.f32 %v2355, %v2442
    %v2446 = vadd.f32 %v2270, %v2445
    %s2447 = scalar_lea.vmem [#allocation2], 3200
    %v2448 = vld [vmem:[%s2447] sm:$0xff]
    %v2449 = vld [vmem:[%s2447 + $0x8] sm:$0xff]
    %v2450 = vld [vmem:[%s2447 + $0x10] sm:$0xff]
    %v2451 = vld [vmem:[%s2447 + $0x18] sm:$0xff]
    %v2452 = vld [vmem:[%s2447 + $0x20] sm:$0xff]
    %v2453 = vld [vmem:[%s2447 + $0x28] sm:$0xff]
    %v2454 = vld [vmem:[%s2447 + $0x30] sm:$0xff]
    %v2455 = vld [vmem:[%s2447 + $0x38] sm:$0xff]
    %v2456 = vld [vmem:[%s2447 + $0x40] sm:$0xff]
    %v2457 = vld [vmem:[%s2447 + $0x48] sm:$0xff]
    %v2458 = vld [vmem:[%s2447 + $0x50] sm:$0xff]
    %v2459 = vld [vmem:[%s2447 + $0x58] sm:$0xff]
    %v2460 = vld [vmem:[%s2447 + $0x60] sm:$0xff]
    %v2461 = vld [vmem:[%s2447 + $0x68] sm:$0xff]
    %v2462 = vld [vmem:[%s2447 + $0x70] sm:$0xff]
    %v2463 = vld [vmem:[%s2447 + $0x78] sm:$0xff]
    %2464 = vmatprep.subr.mxu0 0.0
    %2465 = vmatpush1.msra.mxu0 %v2448
    %2466 = vmatprep.subr.mxu0 0.0
    %2467 = vmatpush1.msra.mxu0 %v2449
    %2468 = vmatprep.subr.mxu0 0.0
    %2469 = vmatpush1.msra.mxu0 %v2450
    %2470 = vmatprep.subr.mxu0 0.0
    %2471 = vmatpush1.msra.mxu0 %v2451
    %2472 = vmatprep.subr.mxu0 0.0
    %2473 = vmatpush1.msra.mxu0 %v2452
    %2474 = vmatprep.subr.mxu0 0.0
    %2475 = vmatpush1.msra.mxu0 %v2453
    %2476 = vmatprep.subr.mxu0 0.0
    %2477 = vmatpush1.msra.mxu0 %v2454
    %2478 = vmatprep.subr.mxu0 0.0
    %2479 = vmatpush1.msra.mxu0 %v2455
    %2480 = vmatprep.subr.mxu0 0.0
    %2481 = vmatpush1.msra.mxu0 %v2456
    %2482 = vmatprep.subr.mxu0 0.0
    %2483 = vmatpush1.msra.mxu0 %v2457
    %2484 = vmatprep.subr.mxu0 0.0
    %2485 = vmatpush1.msra.mxu0 %v2458
    %2486 = vmatprep.subr.mxu0 0.0
    %2487 = vmatpush1.msra.mxu0 %v2459
    %2488 = vmatprep.subr.mxu0 0.0
    %2489 = vmatpush1.msra.mxu0 %v2460
    %2490 = vmatprep.subr.mxu0 0.0
    %2491 = vmatpush1.msra.mxu0 %v2461
    %2492 = vmatprep.subr.mxu0 0.0
    %2493 = vmatpush1.msra.mxu0 %v2462
    %2494 = vmatprep.subr.mxu0 0.0
    %2495 = vmatpush1.msra.mxu0 %v2463
    %2496 = vmatprep.subr.mxu0 0.0
    %2497 = vmatpush1.msra.mxu0 0.0
    %2498 = vmatprep.subr.mxu0 0.0
    %2499 = vmatpush1.msra.mxu0 0.0
    %2500 = vmatprep.subr.mxu0 0.0
    %2501 = vmatpush1.msra.mxu0 0.0
    %2502 = vmatprep.subr.mxu0 0.0
    %2503 = vmatpush1.msra.mxu0 0.0
    %2504 = vmatprep.subr.mxu0 0.0
    %2505 = vmatpush1.msra.mxu0 0.0
    %2506 = vmatprep.subr.mxu0 0.0
    %2507 = vmatpush1.msra.mxu0 0.0
    %2508 = vmatprep.subr.mxu0 0.0
    %2509 = vmatpush1.msra.mxu0 0.0
    %2510 = vmatprep.subr.mxu0 0.0
    %2511 = vmatpush1.msra.mxu0 0.0
    %2512 = vmatprep.subr.mxu0 0.0
    %2513 = vmatpush1.msra.mxu0 0.0
    %2514 = vmatprep.subr.mxu0 0.0
    %2515 = vmatpush1.msra.mxu0 0.0
    %2516 = vmatprep.subr.mxu0 0.0
    %2517 = vmatpush1.msra.mxu0 0.0
    %2518 = vmatprep.subr.mxu0 0.0
    %2519 = vmatpush1.msra.mxu0 0.0
    %2520 = vmatprep.subr.mxu0 0.0
    %2521 = vmatpush1.msra.mxu0 0.0
    %2522 = vmatprep.subr.mxu0 0.0
    %2523 = vmatpush1.msra.mxu0 0.0
    %2524 = vmatprep.subr.mxu0 0.0
    %2525 = vmatpush1.msra.mxu0 0.0
    %2526 = vmatprep.subr.mxu0 0.0
    %2527 = vmatpush1.msra.mxu0 0.0
    %2528 = vmatprep.mubr.f32.mxu0 0.0
    %2529 = vmatmul.mubr.f32.gmra.mrb[0].mxu0 %v783
    %v2530 = vpop.f32.mrb[0].mxu0
    %v2531 = vadd.f32 0.0, %v2530
    %v2532 = vpop.f32.mrb[0].mxu0
    %2533 = vdwg.mxu0
    %s2534 = scalar_lea.vmem [#allocation2], 3712
    %v2535 = vld [vmem:[%s2534] sm:$0xff]
    %v2536 = vld [vmem:[%s2534 + $0x8] sm:$0xff]
    %v2537 = vld [vmem:[%s2534 + $0x10] sm:$0xff]
    %v2538 = vld [vmem:[%s2534 + $0x18] sm:$0xff]
    %v2539 = vld [vmem:[%s2534 + $0x20] sm:$0xff]
    %v2540 = vld [vmem:[%s2534 + $0x28] sm:$0xff]
    %v2541 = vld [vmem:[%s2534 + $0x30] sm:$0xff]
    %v2542 = vld [vmem:[%s2534 + $0x38] sm:$0xff]
    %v2543 = vld [vmem:[%s2534 + $0x40] sm:$0xff]
    %v2544 = vld [vmem:[%s2534 + $0x48] sm:$0xff]
    %v2545 = vld [vmem:[%s2534 + $0x50] sm:$0xff]
    %v2546 = vld [vmem:[%s2534 + $0x58] sm:$0xff]
    %v2547 = vld [vmem:[%s2534 + $0x60] sm:$0xff]
    %v2548 = vld [vmem:[%s2534 + $0x68] sm:$0xff]
    %v2549 = vld [vmem:[%s2534 + $0x70] sm:$0xff]
    %v2550 = vld [vmem:[%s2534 + $0x78] sm:$0xff]
    %2551 = vmatprep.subr.mxu0 0.0
    %2552 = vmatpush1.msra.mxu0 %v2535
    %2553 = vmatprep.subr.mxu0 0.0
    %2554 = vmatpush1.msra.mxu0 %v2536
    %2555 = vmatprep.subr.mxu0 0.0
    %2556 = vmatpush1.msra.mxu0 %v2537
    %2557 = vmatprep.subr.mxu0 0.0
    %2558 = vmatpush1.msra.mxu0 %v2538
    %2559 = vmatprep.subr.mxu0 0.0
    %2560 = vmatpush1.msra.mxu0 %v2539
    %2561 = vmatprep.subr.mxu0 0.0
    %2562 = vmatpush1.msra.mxu0 %v2540
    %2563 = vmatprep.subr.mxu0 0.0
    %2564 = vmatpush1.msra.mxu0 %v2541
    %2565 = vmatprep.subr.mxu0 0.0
    %2566 = vmatpush1.msra.mxu0 %v2542
    %2567 = vmatprep.subr.mxu0 0.0
    %2568 = vmatpush1.msra.mxu0 %v2543
    %2569 = vmatprep.subr.mxu0 0.0
    %2570 = vmatpush1.msra.mxu0 %v2544
    %2571 = vmatprep.subr.mxu0 0.0
    %2572 = vmatpush1.msra.mxu0 %v2545
    %2573 = vmatprep.subr.mxu0 0.0
    %2574 = vmatpush1.msra.mxu0 %v2546
    %2575 = vmatprep.subr.mxu0 0.0
    %2576 = vmatpush1.msra.mxu0 %v2547
    %2577 = vmatprep.subr.mxu0 0.0
    %2578 = vmatpush1.msra.mxu0 %v2548
    %2579 = vmatprep.subr.mxu0 0.0
    %2580 = vmatpush1.msra.mxu0 %v2549
    %2581 = vmatprep.subr.mxu0 0.0
    %2582 = vmatpush1.msra.mxu0 %v2550
    %2583 = vmatprep.subr.mxu0 0.0
    %2584 = vmatpush1.msra.mxu0 0.0
    %2585 = vmatprep.subr.mxu0 0.0
    %2586 = vmatpush1.msra.mxu0 0.0
    %2587 = vmatprep.subr.mxu0 0.0
    %2588 = vmatpush1.msra.mxu0 0.0
    %2589 = vmatprep.subr.mxu0 0.0
    %2590 = vmatpush1.msra.mxu0 0.0
    %2591 = vmatprep.subr.mxu0 0.0
    %2592 = vmatpush1.msra.mxu0 0.0
    %2593 = vmatprep.subr.mxu0 0.0
    %2594 = vmatpush1.msra.mxu0 0.0
    %2595 = vmatprep.subr.mxu0 0.0
    %2596 = vmatpush1.msra.mxu0 0.0
    %2597 = vmatprep.subr.mxu0 0.0
    %2598 = vmatpush1.msra.mxu0 0.0
    %2599 = vmatprep.subr.mxu0 0.0
    %2600 = vmatpush1.msra.mxu0 0.0
    %2601 = vmatprep.subr.mxu0 0.0
    %2602 = vmatpush1.msra.mxu0 0.0
    %2603 = vmatprep.subr.mxu0 0.0
    %2604 = vmatpush1.msra.mxu0 0.0
    %2605 = vmatprep.subr.mxu0 0.0
    %2606 = vmatpush1.msra.mxu0 0.0
    %2607 = vmatprep.subr.mxu0 0.0
    %2608 = vmatpush1.msra.mxu0 0.0
    %2609 = vmatprep.subr.mxu0 0.0
    %2610 = vmatpush1.msra.mxu0 0.0
    %2611 = vmatprep.subr.mxu0 0.0
    %2612 = vmatpush1.msra.mxu0 0.0
    %2613 = vmatprep.subr.mxu0 0.0
    %2614 = vmatpush1.msra.mxu0 0.0
    %2615 = vmatprep.mubr.f32.mxu0 0.0
    %2616 = vmatmul.mubr.f32.gmra.mrb[0].mxu0 %v1917
    %v2617 = vpop.f32.mrb[0].mxu0
    %v2618 = vadd.f32 0.0, %v2617
    %v2619 = vpop.f32.mrb[0].mxu0
    %2620 = vdwg.mxu0
    %v2621 = vmul.f32 %v2531, %v2618
    %v2622 = vadd.f32 %v2446, %v2621
    %v2623 = vmax.f32 %v2622, 0.0
    %s2624 = scalar_lea.vmem [#allocation2], 2176
    %v2625 = vld [vmem:[%s2624] sm:$0xff]
    %v2626 = vld [vmem:[%s2624 + $0x8] sm:$0xff]
    %v2627 = vld [vmem:[%s2624 + $0x10] sm:$0xff]
    %v2628 = vld [vmem:[%s2624 + $0x18] sm:$0xff]
    %v2629 = vld [vmem:[%s2624 + $0x20] sm:$0xff]
    %v2630 = vld [vmem:[%s2624 + $0x28] sm:$0xff]
    %v2631 = vld [vmem:[%s2624 + $0x30] sm:$0xff]
    %v2632 = vld [vmem:[%s2624 + $0x38] sm:$0xff]
    %v2633 = vld [vmem:[%s2624 + $0x40] sm:$0xff]
    %v2634 = vld [vmem:[%s2624 + $0x48] sm:$0xff]
    %v2635 = vld [vmem:[%s2624 + $0x50] sm:$0xff]
    %v2636 = vld [vmem:[%s2624 + $0x58] sm:$0xff]
    %v2637 = vld [vmem:[%s2624 + $0x60] sm:$0xff]
    %v2638 = vld [vmem:[%s2624 + $0x68] sm:$0xff]
    %v2639 = vld [vmem:[%s2624 + $0x70] sm:$0xff]
    %v2640 = vld [vmem:[%s2624 + $0x78] sm:$0xff]
    %v2641 = vlaneseq
    %v2642 = vshrl.u32 %v2641, 7
    %v2643 = vsub.s32 6, %v2642
    %v2644 = vrot.slane %v44, %v2643
    %2645 = vmatprep.subr.mxu0 0.0
    %2646 = vmatpush1.msra.mxu0 %v2625
    %2647 = vmatprep.subr.mxu0 0.0
    %2648 = vmatpush1.msra.mxu0 %v2626
    %2649 = vmatprep.subr.mxu0 0.0
    %2650 = vmatpush1.msra.mxu0 %v2627
    %2651 = vmatprep.subr.mxu0 0.0
    %2652 = vmatpush1.msra.mxu0 %v2628
    %2653 = vmatprep.subr.mxu0 0.0
    %2654 = vmatpush1.msra.mxu0 %v2629
    %2655 = vmatprep.subr.mxu0 0.0
    %2656 = vmatpush1.msra.mxu0 %v2630
    %2657 = vmatprep.subr.mxu0 0.0
    %2658 = vmatpush1.msra.mxu0 %v2631
    %2659 = vmatprep.subr.mxu0 0.0
    %2660 = vmatpush1.msra.mxu0 %v2632
    %2661 = vmatprep.subr.mxu0 0.0
    %2662 = vmatpush1.msra.mxu0 %v2633
    %2663 = vmatprep.subr.mxu0 0.0
    %2664 = vmatpush1.msra.mxu0 %v2634
    %2665 = vmatprep.subr.mxu0 0.0
    %2666 = vmatpush1.msra.mxu0 %v2635
    %2667 = vmatprep.subr.mxu0 0.0
    %2668 = vmatpush1.msra.mxu0 %v2636
    %2669 = vmatprep.subr.mxu0 0.0
    %2670 = vmatpush1.msra.mxu0 %v2637
    %2671 = vmatprep.subr.mxu0 0.0
    %2672 = vmatpush1.msra.mxu0 %v2638
    %2673 = vmatprep.subr.mxu0 0.0
    %2674 = vmatpush1.msra.mxu0 %v2639
    %2675 = vmatprep.subr.mxu0 0.0
    %2676 = vmatpush1.msra.mxu0 %v2640
    %2677 = vmatprep.subr.mxu0 0.0
    %2678 = vmatpush1.msra.mxu0 0.0
    %2679 = vmatprep.subr.mxu0 0.0
    %2680 = vmatpush1.msra.mxu0 0.0
    %2681 = vmatprep.subr.mxu0 0.0
    %2682 = vmatpush1.msra.mxu0 0.0
    %2683 = vmatprep.subr.mxu0 0.0
    %2684 = vmatpush1.msra.mxu0 0.0
    %2685 = vmatprep.subr.mxu0 0.0
    %2686 = vmatpush1.msra.mxu0 0.0
    %2687 = vmatprep.subr.mxu0 0.0
    %2688 = vmatpush1.msra.mxu0 0.0
    %2689 = vmatprep.subr.mxu0 0.0
    %2690 = vmatpush1.msra.mxu0 0.0
    %2691 = vmatprep.subr.mxu0 0.0
    %2692 = vmatpush1.msra.mxu0 0.0
    %2693 = vmatprep.subr.mxu0 0.0
    %2694 = vmatpush1.msra.mxu0 0.0
    %2695 = vmatprep.subr.mxu0 0.0
    %2696 = vmatpush1.msra.mxu0 0.0
    %2697 = vmatprep.subr.mxu0 0.0
    %2698 = vmatpush1.msra.mxu0 0.0
    %2699 = vmatprep.subr.mxu0 0.0
    %2700 = vmatpush1.msra.mxu0 0.0
    %2701 = vmatprep.subr.mxu0 0.0
    %2702 = vmatpush1.msra.mxu0 0.0
    %2703 = vmatprep.subr.mxu0 0.0
    %2704 = vmatpush1.msra.mxu0 0.0
    %2705 = vmatprep.subr.mxu0 0.0
    %2706 = vmatpush1.msra.mxu0 0.0
    %2707 = vmatprep.subr.mxu0 0.0
    %2708 = vmatpush1.msra.mxu0 0.0
    %2709 = vmatprep.mubr.f32.mxu0 0.0
    %2710 = vmatmul.mubr.f32.gmra.mrb[0].mxu0 %v2623
    %v2711 = vpop.f32.mrb[0].mxu0
    %v2712 = vadd.f32 %v2644, %v2711
    %v2713 = vpop.f32.mrb[0].mxu0
    %2714 = vdwg.mxu0
    %2715 = vmatprep.subr.mxu0 0.0
    %2716 = vmatpush1.msra.mxu0 %v1921
    %2717 = vmatprep.subr.mxu0 0.0
    %2718 = vmatpush1.msra.mxu0 %v1922
    %2719 = vmatprep.subr.mxu0 0.0
    %2720 = vmatpush1.msra.mxu0 %v1923
    %2721 = vmatprep.subr.mxu0 0.0
    %2722 = vmatpush1.msra.mxu0 %v1924
    %2723 = vmatprep.subr.mxu0 0.0
    %2724 = vmatpush1.msra.mxu0 %v1925
    %2725 = vmatprep.subr.mxu0 0.0
    %2726 = vmatpush1.msra.mxu0 %v1926
    %2727 = vmatprep.subr.mxu0 0.0
    %2728 = vmatpush1.msra.mxu0 %v1927
    %2729 = vmatprep.subr.mxu0 0.0
    %2730 = vmatpush1.msra.mxu0 %v1928
    %2731 = vmatprep.subr.mxu0 0.0
    %2732 = vmatpush1.msra.mxu0 %v1929
    %2733 = vmatprep.subr.mxu0 0.0
    %2734 = vmatpush1.msra.mxu0 %v1930
    %2735 = vmatprep.subr.mxu0 0.0
    %2736 = vmatpush1.msra.mxu0 %v1931
    %2737 = vmatprep.subr.mxu0 0.0
    %2738 = vmatpush1.msra.mxu0 %v1932
    %2739 = vmatprep.subr.mxu0 0.0
    %2740 = vmatpush1.msra.mxu0 %v1933
    %2741 = vmatprep.subr.mxu0 0.0
    %2742 = vmatpush1.msra.mxu0 %v1934
    %2743 = vmatprep.subr.mxu0 0.0
    %2744 = vmatpush1.msra.mxu0 %v1935
    %2745 = vmatprep.subr.mxu0 0.0
    %2746 = vmatpush1.msra.mxu0 %v1936
    %2747 = vmatprep.subr.mxu0 0.0
    %2748 = vmatpush1.msra.mxu0 0.0
    %2749 = vmatprep.subr.mxu0 0.0
    %2750 = vmatpush1.msra.mxu0 0.0
    %2751 = vmatprep.subr.mxu0 0.0
    %2752 = vmatpush1.msra.mxu0 0.0
    %2753 = vmatprep.subr.mxu0 0.0
    %2754 = vmatpush1.msra.mxu0 0.0
    %2755 = vmatprep.subr.mxu0 0.0
    %2756 = vmatpush1.msra.mxu0 0.0
    %2757 = vmatprep.subr.mxu0 0.0
    %2758 = vmatpush1.msra.mxu0 0.0
    %2759 = vmatprep.subr.mxu0 0.0
    %2760 = vmatpush1.msra.mxu0 0.0
    %2761 = vmatprep.subr.mxu0 0.0
    %2762 = vmatpush1.msra.mxu0 0.0
    %2763 = vmatprep.subr.mxu0 0.0
    %2764 = vmatpush1.msra.mxu0 0.0
    %2765 = vmatprep.subr.mxu0 0.0
    %2766 = vmatpush1.msra.mxu0 0.0
    %2767 = vmatprep.subr.mxu0 0.0
    %2768 = vmatpush1.msra.mxu0 0.0
    %2769 = vmatprep.subr.mxu0 0.0
    %2770 = vmatpush1.msra.mxu0 0.0
    %2771 = vmatprep.subr.mxu0 0.0
    %2772 = vmatpush1.msra.mxu0 0.0
    %2773 = vmatprep.subr.mxu0 0.0
    %2774 = vmatpush1.msra.mxu0 0.0
    %2775 = vmatprep.subr.mxu0 0.0
    %2776 = vmatpush1.msra.mxu0 0.0
    %2777 = vmatprep.subr.mxu0 0.0
    %2778 = vmatpush1.msra.mxu0 0.0
    %2779 = vmatprep.mubr.f32.mxu0 0.0
    %2780 = vmatmul.mubr.f32.gmra.mrb[0].mxu0 %v1044
    %v2781 = vpop.f32.mrb[0].mxu0
    %v2782 = vadd.f32 0.0, %v2781
    %v2783 = vpop.f32.mrb[0].mxu0
    %2784 = vdwg.mxu0
    %2785 = vmatprep.subr.mxu0 0.0
    %2786 = vmatpush1.msra.mxu0 %v2008
    %2787 = vmatprep.subr.mxu0 0.0
    %2788 = vmatpush1.msra.mxu0 %v2009
    %2789 = vmatprep.subr.mxu0 0.0
    %2790 = vmatpush1.msra.mxu0 %v2010
    %2791 = vmatprep.subr.mxu0 0.0
    %2792 = vmatpush1.msra.mxu0 %v2011
    %2793 = vmatprep.subr.mxu0 0.0
    %2794 = vmatpush1.msra.mxu0 %v2012
    %2795 = vmatprep.subr.mxu0 0.0
    %2796 = vmatpush1.msra.mxu0 %v2013
    %2797 = vmatprep.subr.mxu0 0.0
    %2798 = vmatpush1.msra.mxu0 %v2014
    %2799 = vmatprep.subr.mxu0 0.0
    %2800 = vmatpush1.msra.mxu0 %v2015
    %2801 = vmatprep.subr.mxu0 0.0
    %2802 = vmatpush1.msra.mxu0 %v2016
    %2803 = vmatprep.subr.mxu0 0.0
    %2804 = vmatpush1.msra.mxu0 %v2017
    %2805 = vmatprep.subr.mxu0 0.0
    %2806 = vmatpush1.msra.mxu0 %v2018
    %2807 = vmatprep.subr.mxu0 0.0
    %2808 = vmatpush1.msra.mxu0 %v2019
    %2809 = vmatprep.subr.mxu0 0.0
    %2810 = vmatpush1.msra.mxu0 %v2020
    %2811 = vmatprep.subr.mxu0 0.0
    %2812 = vmatpush1.msra.mxu0 %v2021
    %2813 = vmatprep.subr.mxu0 0.0
    %2814 = vmatpush1.msra.mxu0 %v2022
    %2815 = vmatprep.subr.mxu0 0.0
    %2816 = vmatpush1.msra.mxu0 %v2023
    %2817 = vmatprep.subr.mxu0 0.0
    %2818 = vmatpush1.msra.mxu0 0.0
    %2819 = vmatprep.subr.mxu0 0.0
    %2820 = vmatpush1.msra.mxu0 0.0
    %2821 = vmatprep.subr.mxu0 0.0
    %2822 = vmatpush1.msra.mxu0 0.0
    %2823 = vmatprep.subr.mxu0 0.0
    %2824 = vmatpush1.msra.mxu0 0.0
    %2825 = vmatprep.subr.mxu0 0.0
    %2826 = vmatpush1.msra.mxu0 0.0
    %2827 = vmatprep.subr.mxu0 0.0
    %2828 = vmatpush1.msra.mxu0 0.0
    %2829 = vmatprep.subr.mxu0 0.0
    %2830 = vmatpush1.msra.mxu0 0.0
    %2831 = vmatprep.subr.mxu0 0.0
    %2832 = vmatpush1.msra.mxu0 0.0
    %2833 = vmatprep.subr.mxu0 0.0
    %2834 = vmatpush1.msra.mxu0 0.0
    %2835 = vmatprep.subr.mxu0 0.0
    %2836 = vmatpush1.msra.mxu0 0.0
    %2837 = vmatprep.subr.mxu0 0.0
    %2838 = vmatpush1.msra.mxu0 0.0
    %2839 = vmatprep.subr.mxu0 0.0
    %2840 = vmatpush1.msra.mxu0 0.0
    %2841 = vmatprep.subr.mxu0 0.0
    %2842 = vmatpush1.msra.mxu0 0.0
    %2843 = vmatprep.subr.mxu0 0.0
    %2844 = vmatpush1.msra.mxu0 0.0
    %2845 = vmatprep.subr.mxu0 0.0
    %2846 = vmatpush1.msra.mxu0 0.0
    %2847 = vmatprep.subr.mxu0 0.0
    %2848 = vmatpush1.msra.mxu0 0.0
    %2849 = vmatprep.mubr.f32.mxu0 0.0
    %2850 = vmatmul.mubr.f32.gmra.mrb[0].mxu0 %v2712
    %v2851 = vpop.f32.mrb[0].mxu0
    %v2852 = vadd.f32 0.0, %v2851
    %v2853 = vpop.f32.mrb[0].mxu0
    %2854 = vdwg.mxu0
    %v2855 = vmul.f32 %v2782, %v2852
    %2856 = vmatprep.subr.mxu0 0.0
    %2857 = vmatpush1.msra.mxu0 %v2096
    %2858 = vmatprep.subr.mxu0 0.0
    %2859 = vmatpush1.msra.mxu0 %v2097
    %2860 = vmatprep.subr.mxu0 0.0
    %2861 = vmatpush1.msra.mxu0 %v2098
    %2862 = vmatprep.subr.mxu0 0.0
    %2863 = vmatpush1.msra.mxu0 %v2099
    %2864 = vmatprep.subr.mxu0 0.0
    %2865 = vmatpush1.msra.mxu0 %v2100
    %2866 = vmatprep.subr.mxu0 0.0
    %2867 = vmatpush1.msra.mxu0 %v2101
    %2868 = vmatprep.subr.mxu0 0.0
    %2869 = vmatpush1.msra.mxu0 %v2102
    %2870 = vmatprep.subr.mxu0 0.0
    %2871 = vmatpush1.msra.mxu0 %v2103
    %2872 = vmatprep.subr.mxu0 0.0
    %2873 = vmatpush1.msra.mxu0 %v2104
    %2874 = vmatprep.subr.mxu0 0.0
    %2875 = vmatpush1.msra.mxu0 %v2105
    %2876 = vmatprep.subr.mxu0 0.0
    %2877 = vmatpush1.msra.mxu0 %v2106
    %2878 = vmatprep.subr.mxu0 0.0
    %2879 = vmatpush1.msra.mxu0 %v2107
    %2880 = vmatprep.subr.mxu0 0.0
    %2881 = vmatpush1.msra.mxu0 %v2108
    %2882 = vmatprep.subr.mxu0 0.0
    %2883 = vmatpush1.msra.mxu0 %v2109
    %2884 = vmatprep.subr.mxu0 0.0
    %2885 = vmatpush1.msra.mxu0 %v2110
    %2886 = vmatprep.subr.mxu0 0.0
    %2887 = vmatpush1.msra.mxu0 %v2111
    %2888 = vmatprep.subr.mxu0 0.0
    %2889 = vmatpush1.msra.mxu0 0.0
    %2890 = vmatprep.subr.mxu0 0.0
    %2891 = vmatpush1.msra.mxu0 0.0
    %2892 = vmatprep.subr.mxu0 0.0
    %2893 = vmatpush1.msra.mxu0 0.0
    %2894 = vmatprep.subr.mxu0 0.0
    %2895 = vmatpush1.msra.mxu0 0.0
    %2896 = vmatprep.subr.mxu0 0.0
    %2897 = vmatpush1.msra.mxu0 0.0
    %2898 = vmatprep.subr.mxu0 0.0
    %2899 = vmatpush1.msra.mxu0 0.0
    %2900 = vmatprep.subr.mxu0 0.0
    %2901 = vmatpush1.msra.mxu0 0.0
    %2902 = vmatprep.subr.mxu0 0.0
    %2903 = vmatpush1.msra.mxu0 0.0
    %2904 = vmatprep.subr.mxu0 0.0
    %2905 = vmatpush1.msra.mxu0 0.0
    %2906 = vmatprep.subr.mxu0 0.0
    %2907 = vmatpush1.msra.mxu0 0.0
    %2908 = vmatprep.subr.mxu0 0.0
    %2909 = vmatpush1.msra.mxu0 0.0
    %2910 = vmatprep.subr.mxu0 0.0
    %2911 = vmatpush1.msra.mxu0 0.0
    %2912 = vmatprep.subr.mxu0 0.0
    %2913 = vmatpush1.msra.mxu0 0.0
    %2914 = vmatprep.subr.mxu0 0.0
    %2915 = vmatpush1.msra.mxu0 0.0
    %2916 = vmatprep.subr.mxu0 0.0
    %2917 = vmatpush1.msra.mxu0 0.0
    %2918 = vmatprep.subr.mxu0 0.0
    %2919 = vmatpush1.msra.mxu0 0.0
    %2920 = vmatprep.mubr.f32.mxu0 0.0
    %2921 = vmatmul.mubr.f32.gmra.mrb[0].mxu0 %v1044
    %v2922 = vpop.f32.mrb[0].mxu0
    %v2923 = vadd.f32 0.0, %v2922
    %v2924 = vpop.f32.mrb[0].mxu0
    %2925 = vdwg.mxu0
    %2926 = vmatprep.subr.mxu0 0.0
    %2927 = vmatpush1.msra.mxu0 %v2183
    %2928 = vmatprep.subr.mxu0 0.0
    %2929 = vmatpush1.msra.mxu0 %v2184
    %2930 = vmatprep.subr.mxu0 0.0
    %2931 = vmatpush1.msra.mxu0 %v2185
    %2932 = vmatprep.subr.mxu0 0.0
    %2933 = vmatpush1.msra.mxu0 %v2186
    %2934 = vmatprep.subr.mxu0 0.0
    %2935 = vmatpush1.msra.mxu0 %v2187
    %2936 = vmatprep.subr.mxu0 0.0
    %2937 = vmatpush1.msra.mxu0 %v2188
    %2938 = vmatprep.subr.mxu0 0.0
    %2939 = vmatpush1.msra.mxu0 %v2189
    %2940 = vmatprep.subr.mxu0 0.0
    %2941 = vmatpush1.msra.mxu0 %v2190
    %2942 = vmatprep.subr.mxu0 0.0
    %2943 = vmatpush1.msra.mxu0 %v2191
    %2944 = vmatprep.subr.mxu0 0.0
    %2945 = vmatpush1.msra.mxu0 %v2192
    %2946 = vmatprep.subr.mxu0 0.0
    %2947 = vmatpush1.msra.mxu0 %v2193
    %2948 = vmatprep.subr.mxu0 0.0
    %2949 = vmatpush1.msra.mxu0 %v2194
    %2950 = vmatprep.subr.mxu0 0.0
    %2951 = vmatpush1.msra.mxu0 %v2195
    %2952 = vmatprep.subr.mxu0 0.0
    %2953 = vmatpush1.msra.mxu0 %v2196
    %2954 = vmatprep.subr.mxu0 0.0
    %2955 = vmatpush1.msra.mxu0 %v2197
    %2956 = vmatprep.subr.mxu0 0.0
    %2957 = vmatpush1.msra.mxu0 %v2198
    %2958 = vmatprep.subr.mxu0 0.0
    %2959 = vmatpush1.msra.mxu0 0.0
    %2960 = vmatprep.subr.mxu0 0.0
    %2961 = vmatpush1.msra.mxu0 0.0
    %2962 = vmatprep.subr.mxu0 0.0
    %2963 = vmatpush1.msra.mxu0 0.0
    %2964 = vmatprep.subr.mxu0 0.0
    %2965 = vmatpush1.msra.mxu0 0.0
    %2966 = vmatprep.subr.mxu0 0.0
    %2967 = vmatpush1.msra.mxu0 0.0
    %2968 = vmatprep.subr.mxu0 0.0
    %2969 = vmatpush1.msra.mxu0 0.0
    %2970 = vmatprep.subr.mxu0 0.0
    %2971 = vmatpush1.msra.mxu0 0.0
    %2972 = vmatprep.subr.mxu0 0.0
    %2973 = vmatpush1.msra.mxu0 0.0
    %2974 = vmatprep.subr.mxu0 0.0
    %2975 = vmatpush1.msra.mxu0 0.0
    %2976 = vmatprep.subr.mxu0 0.0
    %2977 = vmatpush1.msra.mxu0 0.0
    %2978 = vmatprep.subr.mxu0 0.0
    %2979 = vmatpush1.msra.mxu0 0.0
    %2980 = vmatprep.subr.mxu0 0.0
    %2981 = vmatpush1.msra.mxu0 0.0
    %2982 = vmatprep.subr.mxu0 0.0
    %2983 = vmatpush1.msra.mxu0 0.0
    %2984 = vmatprep.subr.mxu0 0.0
    %2985 = vmatpush1.msra.mxu0 0.0
    %2986 = vmatprep.subr.mxu0 0.0
    %2987 = vmatpush1.msra.mxu0 0.0
    %2988 = vmatprep.subr.mxu0 0.0
    %2989 = vmatpush1.msra.mxu0 0.0
    %2990 = vmatprep.mubr.f32.mxu0 0.0
    %2991 = vmatmul.mubr.f32.gmra.mrb[0].mxu0 %v2712
    %v2992 = vpop.f32.mrb[0].mxu0
    %v2993 = vadd.f32 0.0, %v2992
    %v2994 = vpop.f32.mrb[0].mxu0
    %2995 = vdwg.mxu0
    %v2996 = vmul.f32 %v2923, %v2993
    %v2997 = vadd.f32 %v2855, %v2996
    %2998 = vmatprep.subr.mxu0 0.0
    %2999 = vmatpush1.msra.mxu0 %v2272
    %3000 = vmatprep.subr.mxu0 0.0
    %3001 = vmatpush1.msra.mxu0 %v2273
    %3002 = vmatprep.subr.mxu0 0.0
    %3003 = vmatpush1.msra.mxu0 %v2274
    %3004 = vmatprep.subr.mxu0 0.0
    %3005 = vmatpush1.msra.mxu0 %v2275
    %3006 = vmatprep.subr.mxu0 0.0
    %3007 = vmatpush1.msra.mxu0 %v2276
    %3008 = vmatprep.subr.mxu0 0.0
    %3009 = vmatpush1.msra.mxu0 %v2277
    %3010 = vmatprep.subr.mxu0 0.0
    %3011 = vmatpush1.msra.mxu0 %v2278
    %3012 = vmatprep.subr.mxu0 0.0
    %3013 = vmatpush1.msra.mxu0 %v2279
    %3014 = vmatprep.subr.mxu0 0.0
    %3015 = vmatpush1.msra.mxu0 %v2280
    %3016 = vmatprep.subr.mxu0 0.0
    %3017 = vmatpush1.msra.mxu0 %v2281
    %3018 = vmatprep.subr.mxu0 0.0
    %3019 = vmatpush1.msra.mxu0 %v2282
    %3020 = vmatprep.subr.mxu0 0.0
    %3021 = vmatpush1.msra.mxu0 %v2283
    %3022 = vmatprep.subr.mxu0 0.0
    %3023 = vmatpush1.msra.mxu0 %v2284
    %3024 = vmatprep.subr.mxu0 0.0
    %3025 = vmatpush1.msra.mxu0 %v2285
    %3026 = vmatprep.subr.mxu0 0.0
    %3027 = vmatpush1.msra.mxu0 %v2286
    %3028 = vmatprep.subr.mxu0 0.0
    %3029 = vmatpush1.msra.mxu0 %v2287
    %3030 = vmatprep.subr.mxu0 0.0
    %3031 = vmatpush1.msra.mxu0 0.0
    %3032 = vmatprep.subr.mxu0 0.0
    %3033 = vmatpush1.msra.mxu0 0.0
    %3034 = vmatprep.subr.mxu0 0.0
    %3035 = vmatpush1.msra.mxu0 0.0
    %3036 = vmatprep.subr.mxu0 0.0
    %3037 = vmatpush1.msra.mxu0 0.0
    %3038 = vmatprep.subr.mxu0 0.0
    %3039 = vmatpush1.msra.mxu0 0.0
    %3040 = vmatprep.subr.mxu0 0.0
    %3041 = vmatpush1.msra.mxu0 0.0
    %3042 = vmatprep.subr.mxu0 0.0
    %3043 = vmatpush1.msra.mxu0 0.0
    %3044 = vmatprep.subr.mxu0 0.0
    %3045 = vmatpush1.msra.mxu0 0.0
    %3046 = vmatprep.subr.mxu0 0.0
    %3047 = vmatpush1.msra.mxu0 0.0
    %3048 = vmatprep.subr.mxu0 0.0
    %3049 = vmatpush1.msra.mxu0 0.0
    %3050 = vmatprep.subr.mxu0 0.0
    %3051 = vmatpush1.msra.mxu0 0.0
    %3052 = vmatprep.subr.mxu0 0.0
    %3053 = vmatpush1.msra.mxu0 0.0
    %3054 = vmatprep.subr.mxu0 0.0
    %3055 = vmatpush1.msra.mxu0 0.0
    %3056 = vmatprep.subr.mxu0 0.0
    %3057 = vmatpush1.msra.mxu0 0.0
    %3058 = vmatprep.subr.mxu0 0.0
    %3059 = vmatpush1.msra.mxu0 0.0
    %3060 = vmatprep.subr.mxu0 0.0
    %3061 = vmatpush1.msra.mxu0 0.0
    %3062 = vmatprep.mubr.f32.mxu0 0.0
    %3063 = vmatmul.mubr.f32.gmra.mrb[0].mxu0 %v1044
    %v3064 = vpop.f32.mrb[0].mxu0
    %v3065 = vadd.f32 0.0, %v3064
    %v3066 = vpop.f32.mrb[0].mxu0
    %3067 = vdwg.mxu0
    %3068 = vmatprep.subr.mxu0 0.0
    %3069 = vmatpush1.msra.mxu0 %v2359
    %3070 = vmatprep.subr.mxu0 0.0
    %3071 = vmatpush1.msra.mxu0 %v2360
    %3072 = vmatprep.subr.mxu0 0.0
    %3073 = vmatpush1.msra.mxu0 %v2361
    %3074 = vmatprep.subr.mxu0 0.0
    %3075 = vmatpush1.msra.mxu0 %v2362
    %3076 = vmatprep.subr.mxu0 0.0
    %3077 = vmatpush1.msra.mxu0 %v2363
    %3078 = vmatprep.subr.mxu0 0.0
    %3079 = vmatpush1.msra.mxu0 %v2364
    %3080 = vmatprep.subr.mxu0 0.0
    %3081 = vmatpush1.msra.mxu0 %v2365
    %3082 = vmatprep.subr.mxu0 0.0
    %3083 = vmatpush1.msra.mxu0 %v2366
    %3084 = vmatprep.subr.mxu0 0.0
    %3085 = vmatpush1.msra.mxu0 %v2367
    %3086 = vmatprep.subr.mxu0 0.0
    %3087 = vmatpush1.msra.mxu0 %v2368
    %3088 = vmatprep.subr.mxu0 0.0
    %3089 = vmatpush1.msra.mxu0 %v2369
    %3090 = vmatprep.subr.mxu0 0.0
    %3091 = vmatpush1.msra.mxu0 %v2370
    %3092 = vmatprep.subr.mxu0 0.0
    %3093 = vmatpush1.msra.mxu0 %v2371
    %3094 = vmatprep.subr.mxu0 0.0
    %3095 = vmatpush1.msra.mxu0 %v2372
    %3096 = vmatprep.subr.mxu0 0.0
    %3097 = vmatpush1.msra.mxu0 %v2373
    %3098 = vmatprep.subr.mxu0 0.0
    %3099 = vmatpush1.msra.mxu0 %v2374
    %3100 = vmatprep.subr.mxu0 0.0
    %3101 = vmatpush1.msra.mxu0 0.0
    %3102 = vmatprep.subr.mxu0 0.0
    %3103 = vmatpush1.msra.mxu0 0.0
    %3104 = vmatprep.subr.mxu0 0.0
    %3105 = vmatpush1.msra.mxu0 0.0
    %3106 = vmatprep.subr.mxu0 0.0
    %3107 = vmatpush1.msra.mxu0 0.0
    %3108 = vmatprep.subr.mxu0 0.0
    %3109 = vmatpush1.msra.mxu0 0.0
    %3110 = vmatprep.subr.mxu0 0.0
    %3111 = vmatpush1.msra.mxu0 0.0
    %3112 = vmatprep.subr.mxu0 0.0
    %3113 = vmatpush1.msra.mxu0 0.0
    %3114 = vmatprep.subr.mxu0 0.0
    %3115 = vmatpush1.msra.mxu0 0.0
    %3116 = vmatprep.subr.mxu0 0.0
    %3117 = vmatpush1.msra.mxu0 0.0
    %3118 = vmatprep.subr.mxu0 0.0
    %3119 = vmatpush1.msra.mxu0 0.0
    %3120 = vmatprep.subr.mxu0 0.0
    %3121 = vmatpush1.msra.mxu0 0.0
    %3122 = vmatprep.subr.mxu0 0.0
    %3123 = vmatpush1.msra.mxu0 0.0
    %3124 = vmatprep.subr.mxu0 0.0
    %3125 = vmatpush1.msra.mxu0 0.0
    %3126 = vmatprep.subr.mxu0 0.0
    %3127 = vmatpush1.msra.mxu0 0.0
    %3128 = vmatprep.subr.mxu0 0.0
    %3129 = vmatpush1.msra.mxu0 0.0
    %3130 = vmatprep.subr.mxu0 0.0
    %3131 = vmatpush1.msra.mxu0 0.0
    %3132 = vmatprep.mubr.f32.mxu0 0.0
    %3133 = vmatmul.mubr.f32.gmra.mrb[0].mxu0 %v2712
    %v3134 = vpop.f32.mrb[0].mxu0
    %v3135 = vadd.f32 0.0, %v3134
    %v3136 = vpop.f32.mrb[0].mxu0
    %3137 = vdwg.mxu0
    %v3138 = vmul.f32 %v3065, %v3135
    %v3139 = vadd.f32 %v2997, %v3138
    %3140 = vmatprep.subr.mxu0 0.0
    %3141 = vmatpush1.msra.mxu0 %v2448
    %3142 = vmatprep.subr.mxu0 0.0
    %3143 = vmatpush1.msra.mxu0 %v2449
    %3144 = vmatprep.subr.mxu0 0.0
    %3145 = vmatpush1.msra.mxu0 %v2450
    %3146 = vmatprep.subr.mxu0 0.0
    %3147 = vmatpush1.msra.mxu0 %v2451
    %3148 = vmatprep.subr.mxu0 0.0
    %3149 = vmatpush1.msra.mxu0 %v2452
    %3150 = vmatprep.subr.mxu0 0.0
    %3151 = vmatpush1.msra.mxu0 %v2453
    %3152 = vmatprep.subr.mxu0 0.0
    %3153 = vmatpush1.msra.mxu0 %v2454
    %3154 = vmatprep.subr.mxu0 0.0
    %3155 = vmatpush1.msra.mxu0 %v2455
    %3156 = vmatprep.subr.mxu0 0.0
    %3157 = vmatpush1.msra.mxu0 %v2456
    %3158 = vmatprep.subr.mxu0 0.0
    %3159 = vmatpush1.msra.mxu0 %v2457
    %3160 = vmatprep.subr.mxu0 0.0
    %3161 = vmatpush1.msra.mxu0 %v2458
    %3162 = vmatprep.subr.mxu0 0.0
    %3163 = vmatpush1.msra.mxu0 %v2459
    %3164 = vmatprep.subr.mxu0 0.0
    %3165 = vmatpush1.msra.mxu0 %v2460
    %3166 = vmatprep.subr.mxu0 0.0
    %3167 = vmatpush1.msra.mxu0 %v2461
    %3168 = vmatprep.subr.mxu0 0.0
    %3169 = vmatpush1.msra.mxu0 %v2462
    %3170 = vmatprep.subr.mxu0 0.0
    %3171 = vmatpush1.msra.mxu0 %v2463
    %3172 = vmatprep.subr.mxu0 0.0
    %3173 = vmatpush1.msra.mxu0 0.0
    %3174 = vmatprep.subr.mxu0 0.0
    %3175 = vmatpush1.msra.mxu0 0.0
    %3176 = vmatprep.subr.mxu0 0.0
    %3177 = vmatpush1.msra.mxu0 0.0
    %3178 = vmatprep.subr.mxu0 0.0
    %3179 = vmatpush1.msra.mxu0 0.0
    %3180 = vmatprep.subr.mxu0 0.0
    %3181 = vmatpush1.msra.mxu0 0.0
    %3182 = vmatprep.subr.mxu0 0.0
    %3183 = vmatpush1.msra.mxu0 0.0
    %3184 = vmatprep.subr.mxu0 0.0
    %3185 = vmatpush1.msra.mxu0 0.0
    %3186 = vmatprep.subr.mxu0 0.0
    %3187 = vmatpush1.msra.mxu0 0.0
    %3188 = vmatprep.subr.mxu0 0.0
    %3189 = vmatpush1.msra.mxu0 0.0
    %3190 = vmatprep.subr.mxu0 0.0
    %3191 = vmatpush1.msra.mxu0 0.0
    %3192 = vmatprep.subr.mxu0 0.0
    %3193 = vmatpush1.msra.mxu0 0.0
    %3194 = vmatprep.subr.mxu0 0.0
    %3195 = vmatpush1.msra.mxu0 0.0
    %3196 = vmatprep.subr.mxu0 0.0
    %3197 = vmatpush1.msra.mxu0 0.0
    %3198 = vmatprep.subr.mxu0 0.0
    %3199 = vmatpush1.msra.mxu0 0.0
    %3200 = vmatprep.subr.mxu0 0.0
    %3201 = vmatpush1.msra.mxu0 0.0
    %3202 = vmatprep.subr.mxu0 0.0
    %3203 = vmatpush1.msra.mxu0 0.0
    %3204 = vmatprep.mubr.f32.mxu0 0.0
    %3205 = vmatmul.mubr.f32.gmra.mrb[0].mxu0 %v1044
    %v3206 = vpop.f32.mrb[0].mxu0
    %v3207 = vadd.f32 0.0, %v3206
    %v3208 = vpop.f32.mrb[0].mxu0
    %3209 = vdwg.mxu0
    %3210 = vmatprep.subr.mxu0 0.0
    %3211 = vmatpush1.msra.mxu0 %v2535
    %3212 = vmatprep.subr.mxu0 0.0
    %3213 = vmatpush1.msra.mxu0 %v2536
    %3214 = vmatprep.subr.mxu0 0.0
    %3215 = vmatpush1.msra.mxu0 %v2537
    %3216 = vmatprep.subr.mxu0 0.0
    %3217 = vmatpush1.msra.mxu0 %v2538
    %3218 = vmatprep.subr.mxu0 0.0
    %3219 = vmatpush1.msra.mxu0 %v2539
    %3220 = vmatprep.subr.mxu0 0.0
    %3221 = vmatpush1.msra.mxu0 %v2540
    %3222 = vmatprep.subr.mxu0 0.0
    %3223 = vmatpush1.msra.mxu0 %v2541
    %3224 = vmatprep.subr.mxu0 0.0
    %3225 = vmatpush1.msra.mxu0 %v2542
    %3226 = vmatprep.subr.mxu0 0.0
    %3227 = vmatpush1.msra.mxu0 %v2543
    %3228 = vmatprep.subr.mxu0 0.0
    %3229 = vmatpush1.msra.mxu0 %v2544
    %3230 = vmatprep.subr.mxu0 0.0
    %3231 = vmatpush1.msra.mxu0 %v2545
    %3232 = vmatprep.subr.mxu0 0.0
    %3233 = vmatpush1.msra.mxu0 %v2546
    %3234 = vmatprep.subr.mxu0 0.0
    %3235 = vmatpush1.msra.mxu0 %v2547
    %3236 = vmatprep.subr.mxu0 0.0
    %3237 = vmatpush1.msra.mxu0 %v2548
    %3238 = vmatprep.subr.mxu0 0.0
    %3239 = vmatpush1.msra.mxu0 %v2549
    %3240 = vmatprep.subr.mxu0 0.0
    %3241 = vmatpush1.msra.mxu0 %v2550
    %3242 = vmatprep.subr.mxu0 0.0
    %3243 = vmatpush1.msra.mxu0 0.0
    %3244 = vmatprep.subr.mxu0 0.0
    %3245 = vmatpush1.msra.mxu0 0.0
    %3246 = vmatprep.subr.mxu0 0.0
    %3247 = vmatpush1.msra.mxu0 0.0
    %3248 = vmatprep.subr.mxu0 0.0
    %3249 = vmatpush1.msra.mxu0 0.0
    %3250 = vmatprep.subr.mxu0 0.0
    %3251 = vmatpush1.msra.mxu0 0.0
    %3252 = vmatprep.subr.mxu0 0.0
    %3253 = vmatpush1.msra.mxu0 0.0
    %3254 = vmatprep.subr.mxu0 0.0
    %3255 = vmatpush1.msra.mxu0 0.0
    %3256 = vmatprep.subr.mxu0 0.0
    %3257 = vmatpush1.msra.mxu0 0.0
    %3258 = vmatprep.subr.mxu0 0.0
    %3259 = vmatpush1.msra.mxu0 0.0
    %3260 = vmatprep.subr.mxu0 0.0
    %3261 = vmatpush1.msra.mxu0 0.0
    %3262 = vmatprep.subr.mxu0 0.0
    %3263 = vmatpush1.msra.mxu0 0.0
    %3264 = vmatprep.subr.mxu0 0.0
    %3265 = vmatpush1.msra.mxu0 0.0
    %3266 = vmatprep.subr.mxu0 0.0
    %3267 = vmatpush1.msra.mxu0 0.0
    %3268 = vmatprep.subr.mxu0 0.0
    %3269 = vmatpush1.msra.mxu0 0.0
    %3270 = vmatprep.subr.mxu0 0.0
    %3271 = vmatpush1.msra.mxu0 0.0
    %3272 = vmatprep.subr.mxu0 0.0
    %3273 = vmatpush1.msra.mxu0 0.0
    %3274 = vmatprep.mubr.f32.mxu0 0.0
    %3275 = vmatmul.mubr.f32.gmra.mrb[0].mxu0 %v2712
    %v3276 = vpop.f32.mrb[0].mxu0
    %v3277 = vadd.f32 0.0, %v3276
    %v3278 = vpop.f32.mrb[0].mxu0
    %3279 = vdwg.mxu0
    %v3280 = vmul.f32 %v3207, %v3277
    %v3281 = vadd.f32 %v3139, %v3280
    %v3282 = vmax.f32 %v3281, 0.0
    %s3283 = scalar_lea.vmem [#allocation2], 2304
    %v3284 = vld [vmem:[%s3283] sm:$0xff]
    %v3285 = vld [vmem:[%s3283 + $0x8] sm:$0xff]
    %v3286 = vld [vmem:[%s3283 + $0x10] sm:$0xff]
    %v3287 = vld [vmem:[%s3283 + $0x18] sm:$0xff]
    %v3288 = vld [vmem:[%s3283 + $0x20] sm:$0xff]
    %v3289 = vld [vmem:[%s3283 + $0x28] sm:$0xff]
    %v3290 = vld [vmem:[%s3283 + $0x30] sm:$0xff]
    %v3291 = vld [vmem:[%s3283 + $0x38] sm:$0xff]
    %v3292 = vld [vmem:[%s3283 + $0x40] sm:$0xff]
    %v3293 = vld [vmem:[%s3283 + $0x48] sm:$0xff]
    %v3294 = vld [vmem:[%s3283 + $0x50] sm:$0xff]
    %v3295 = vld [vmem:[%s3283 + $0x58] sm:$0xff]
    %v3296 = vld [vmem:[%s3283 + $0x60] sm:$0xff]
    %v3297 = vld [vmem:[%s3283 + $0x68] sm:$0xff]
    %v3298 = vld [vmem:[%s3283 + $0x70] sm:$0xff]
    %v3299 = vld [vmem:[%s3283 + $0x78] sm:$0xff]
    %v3300 = vlaneseq
    %v3301 = vshrl.u32 %v3300, 7
    %v3302 = vsub.s32 7, %v3301
    %v3303 = vrot.slane %v44, %v3302
    %3304 = vmatprep.subr.mxu0 0.0
    %3305 = vmatpush1.msra.mxu0 %v3284
    %3306 = vmatprep.subr.mxu0 0.0
    %3307 = vmatpush1.msra.mxu0 %v3285
    %3308 = vmatprep.subr.mxu0 0.0
    %3309 = vmatpush1.msra.mxu0 %v3286
    %3310 = vmatprep.subr.mxu0 0.0
    %3311 = vmatpush1.msra.mxu0 %v3287
    %3312 = vmatprep.subr.mxu0 0.0
    %3313 = vmatpush1.msra.mxu0 %v3288
    %3314 = vmatprep.subr.mxu0 0.0
    %3315 = vmatpush1.msra.mxu0 %v3289
    %3316 = vmatprep.subr.mxu0 0.0
    %3317 = vmatpush1.msra.mxu0 %v3290
    %3318 = vmatprep.subr.mxu0 0.0
    %3319 = vmatpush1.msra.mxu0 %v3291
    %3320 = vmatprep.subr.mxu0 0.0
    %3321 = vmatpush1.msra.mxu0 %v3292
    %3322 = vmatprep.subr.mxu0 0.0
    %3323 = vmatpush1.msra.mxu0 %v3293
    %3324 = vmatprep.subr.mxu0 0.0
    %3325 = vmatpush1.msra.mxu0 %v3294
    %3326 = vmatprep.subr.mxu0 0.0
    %3327 = vmatpush1.msra.mxu0 %v3295
    %3328 = vmatprep.subr.mxu0 0.0
    %3329 = vmatpush1.msra.mxu0 %v3296
    %3330 = vmatprep.subr.mxu0 0.0
    %3331 = vmatpush1.msra.mxu0 %v3297
    %3332 = vmatprep.subr.mxu0 0.0
    %3333 = vmatpush1.msra.mxu0 %v3298
    %3334 = vmatprep.subr.mxu0 0.0
    %3335 = vmatpush1.msra.mxu0 %v3299
    %3336 = vmatprep.subr.mxu0 0.0
    %3337 = vmatpush1.msra.mxu0 0.0
    %3338 = vmatprep.subr.mxu0 0.0
    %3339 = vmatpush1.msra.mxu0 0.0
    %3340 = vmatprep.subr.mxu0 0.0
    %3341 = vmatpush1.msra.mxu0 0.0
    %3342 = vmatprep.subr.mxu0 0.0
    %3343 = vmatpush1.msra.mxu0 0.0
    %3344 = vmatprep.subr.mxu0 0.0
    %3345 = vmatpush1.msra.mxu0 0.0
    %3346 = vmatprep.subr.mxu0 0.0
    %3347 = vmatpush1.msra.mxu0 0.0
    %3348 = vmatprep.subr.mxu0 0.0
    %3349 = vmatpush1.msra.mxu0 0.0
    %3350 = vmatprep.subr.mxu0 0.0
    %3351 = vmatpush1.msra.mxu0 0.0
    %3352 = vmatprep.subr.mxu0 0.0
    %3353 = vmatpush1.msra.mxu0 0.0
    %3354 = vmatprep.subr.mxu0 0.0
    %3355 = vmatpush1.msra.mxu0 0.0
    %3356 = vmatprep.subr.mxu0 0.0
    %3357 = vmatpush1.msra.mxu0 0.0
    %3358 = vmatprep.subr.mxu0 0.0
    %3359 = vmatpush1.msra.mxu0 0.0
    %3360 = vmatprep.subr.mxu0 0.0
    %3361 = vmatpush1.msra.mxu0 0.0
    %3362 = vmatprep.subr.mxu0 0.0
    %3363 = vmatpush1.msra.mxu0 0.0
    %3364 = vmatprep.subr.mxu0 0.0
    %3365 = vmatpush1.msra.mxu0 0.0
    %3366 = vmatprep.subr.mxu0 0.0
    %3367 = vmatpush1.msra.mxu0 0.0
    %3368 = vmatprep.mubr.f32.mxu0 0.0
    %3369 = vmatmul.mubr.f32.gmra.mrb[0].mxu0 %v3282
    %v3370 = vpop.f32.mrb[0].mxu0
    %v3371 = vadd.f32 %v3303, %v3370
    %v3372 = vpop.f32.mrb[0].mxu0
    %3373 = vdwg.mxu0
    %3374 = vmatprep.subr.mxu0 0.0
    %3375 = vmatpush1.msra.mxu0 %v1921
    %3376 = vmatprep.subr.mxu0 0.0
    %3377 = vmatpush1.msra.mxu0 %v1922
    %3378 = vmatprep.subr.mxu0 0.0
    %3379 = vmatpush1.msra.mxu0 %v1923
    %3380 = vmatprep.subr.mxu0 0.0
    %3381 = vmatpush1.msra.mxu0 %v1924
    %3382 = vmatprep.subr.mxu0 0.0
    %3383 = vmatpush1.msra.mxu0 %v1925
    %3384 = vmatprep.subr.mxu0 0.0
    %3385 = vmatpush1.msra.mxu0 %v1926
    %3386 = vmatprep.subr.mxu0 0.0
    %3387 = vmatpush1.msra.mxu0 %v1927
    %3388 = vmatprep.subr.mxu0 0.0
    %3389 = vmatpush1.msra.mxu0 %v1928
    %3390 = vmatprep.subr.mxu0 0.0
    %3391 = vmatpush1.msra.mxu0 %v1929
    %3392 = vmatprep.subr.mxu0 0.0
    %3393 = vmatpush1.msra.mxu0 %v1930
    %3394 = vmatprep.subr.mxu0 0.0
    %3395 = vmatpush1.msra.mxu0 %v1931
    %3396 = vmatprep.subr.mxu0 0.0
    %3397 = vmatpush1.msra.mxu0 %v1932
    %3398 = vmatprep.subr.mxu0 0.0
    %3399 = vmatpush1.msra.mxu0 %v1933
    %3400 = vmatprep.subr.mxu0 0.0
    %3401 = vmatpush1.msra.mxu0 %v1934
    %3402 = vmatprep.subr.mxu0 0.0
    %3403 = vmatpush1.msra.mxu0 %v1935
    %3404 = vmatprep.subr.mxu0 0.0
    %3405 = vmatpush1.msra.mxu0 %v1936
    %3406 = vmatprep.subr.mxu0 0.0
    %3407 = vmatpush1.msra.mxu0 0.0
    %3408 = vmatprep.subr.mxu0 0.0
    %3409 = vmatpush1.msra.mxu0 0.0
    %3410 = vmatprep.subr.mxu0 0.0
    %3411 = vmatpush1.msra.mxu0 0.0
    %3412 = vmatprep.subr.mxu0 0.0
    %3413 = vmatpush1.msra.mxu0 0.0
    %3414 = vmatprep.subr.mxu0 0.0
    %3415 = vmatpush1.msra.mxu0 0.0
    %3416 = vmatprep.subr.mxu0 0.0
    %3417 = vmatpush1.msra.mxu0 0.0
    %3418 = vmatprep.subr.mxu0 0.0
    %3419 = vmatpush1.msra.mxu0 0.0
    %3420 = vmatprep.subr.mxu0 0.0
    %3421 = vmatpush1.msra.mxu0 0.0
    %3422 = vmatprep.subr.mxu0 0.0
    %3423 = vmatpush1.msra.mxu0 0.0
    %3424 = vmatprep.subr.mxu0 0.0
    %3425 = vmatpush1.msra.mxu0 0.0
    %3426 = vmatprep.subr.mxu0 0.0
    %3427 = vmatpush1.msra.mxu0 0.0
    %3428 = vmatprep.subr.mxu0 0.0
    %3429 = vmatpush1.msra.mxu0 0.0
    %3430 = vmatprep.subr.mxu0 0.0
    %3431 = vmatpush1.msra.mxu0 0.0
    %3432 = vmatprep.subr.mxu0 0.0
    %3433 = vmatpush1.msra.mxu0 0.0
    %3434 = vmatprep.subr.mxu0 0.0
    %3435 = vmatpush1.msra.mxu0 0.0
    %3436 = vmatprep.subr.mxu0 0.0
    %3437 = vmatpush1.msra.mxu0 0.0
    %3438 = vmatprep.mubr.f32.mxu0 0.0
    %3439 = vmatmul.mubr.f32.gmra.mrb[0].mxu0 %v1392
    %v3440 = vpop.f32.mrb[0].mxu0
    %v3441 = vadd.f32 0.0, %v3440
    %v3442 = vpop.f32.mrb[0].mxu0
    %3443 = vdwg.mxu0
    %3444 = vmatprep.subr.mxu0 0.0
    %3445 = vmatpush1.msra.mxu0 %v2008
    %3446 = vmatprep.subr.mxu0 0.0
    %3447 = vmatpush1.msra.mxu0 %v2009
    %3448 = vmatprep.subr.mxu0 0.0
    %3449 = vmatpush1.msra.mxu0 %v2010
    %3450 = vmatprep.subr.mxu0 0.0
    %3451 = vmatpush1.msra.mxu0 %v2011
    %3452 = vmatprep.subr.mxu0 0.0
    %3453 = vmatpush1.msra.mxu0 %v2012
    %3454 = vmatprep.subr.mxu0 0.0
    %3455 = vmatpush1.msra.mxu0 %v2013
    %3456 = vmatprep.subr.mxu0 0.0
    %3457 = vmatpush1.msra.mxu0 %v2014
    %3458 = vmatprep.subr.mxu0 0.0
    %3459 = vmatpush1.msra.mxu0 %v2015
    %3460 = vmatprep.subr.mxu0 0.0
    %3461 = vmatpush1.msra.mxu0 %v2016
    %3462 = vmatprep.subr.mxu0 0.0
    %3463 = vmatpush1.msra.mxu0 %v2017
    %3464 = vmatprep.subr.mxu0 0.0
    %3465 = vmatpush1.msra.mxu0 %v2018
    %3466 = vmatprep.subr.mxu0 0.0
    %3467 = vmatpush1.msra.mxu0 %v2019
    %3468 = vmatprep.subr.mxu0 0.0
    %3469 = vmatpush1.msra.mxu0 %v2020
    %3470 = vmatprep.subr.mxu0 0.0
    %3471 = vmatpush1.msra.mxu0 %v2021
    %3472 = vmatprep.subr.mxu0 0.0
    %3473 = vmatpush1.msra.mxu0 %v2022
    %3474 = vmatprep.subr.mxu0 0.0
    %3475 = vmatpush1.msra.mxu0 %v2023
    %3476 = vmatprep.subr.mxu0 0.0
    %3477 = vmatpush1.msra.mxu0 0.0
    %3478 = vmatprep.subr.mxu0 0.0
    %3479 = vmatpush1.msra.mxu0 0.0
    %3480 = vmatprep.subr.mxu0 0.0
    %3481 = vmatpush1.msra.mxu0 0.0
    %3482 = vmatprep.subr.mxu0 0.0
    %3483 = vmatpush1.msra.mxu0 0.0
    %3484 = vmatprep.subr.mxu0 0.0
    %3485 = vmatpush1.msra.mxu0 0.0
    %3486 = vmatprep.subr.mxu0 0.0
    %3487 = vmatpush1.msra.mxu0 0.0
    %3488 = vmatprep.subr.mxu0 0.0
    %3489 = vmatpush1.msra.mxu0 0.0
    %3490 = vmatprep.subr.mxu0 0.0
    %3491 = vmatpush1.msra.mxu0 0.0
    %3492 = vmatprep.subr.mxu0 0.0
    %3493 = vmatpush1.msra.mxu0 0.0
    %3494 = vmatprep.subr.mxu0 0.0
    %3495 = vmatpush1.msra.mxu0 0.0
    %3496 = vmatprep.subr.mxu0 0.0
    %3497 = vmatpush1.msra.mxu0 0.0
    %3498 = vmatprep.subr.mxu0 0.0
    %3499 = vmatpush1.msra.mxu0 0.0
    %3500 = vmatprep.subr.mxu0 0.0
    %3501 = vmatpush1.msra.mxu0 0.0
    %3502 = vmatprep.subr.mxu0 0.0
    %3503 = vmatpush1.msra.mxu0 0.0
    %3504 = vmatprep.subr.mxu0 0.0
    %3505 = vmatpush1.msra.mxu0 0.0
    %3506 = vmatprep.subr.mxu0 0.0
    %3507 = vmatpush1.msra.mxu0 0.0
    %3508 = vmatprep.mubr.f32.mxu0 0.0
    %3509 = vmatmul.mubr.f32.gmra.mrb[0].mxu0 %v3371
    %v3510 = vpop.f32.mrb[0].mxu0
    %v3511 = vadd.f32 0.0, %v3510
    %v3512 = vpop.f32.mrb[0].mxu0
    %3513 = vdwg.mxu0
    %v3514 = vmul.f32 %v3441, %v3511
    %3515 = vmatprep.subr.mxu0 0.0
    %3516 = vmatpush1.msra.mxu0 %v2096
    %3517 = vmatprep.subr.mxu0 0.0
    %3518 = vmatpush1.msra.mxu0 %v2097
    %3519 = vmatprep.subr.mxu0 0.0
    %3520 = vmatpush1.msra.mxu0 %v2098
    %3521 = vmatprep.subr.mxu0 0.0
    %3522 = vmatpush1.msra.mxu0 %v2099
    %3523 = vmatprep.subr.mxu0 0.0
    %3524 = vmatpush1.msra.mxu0 %v2100
    %3525 = vmatprep.subr.mxu0 0.0
    %3526 = vmatpush1.msra.mxu0 %v2101
    %3527 = vmatprep.subr.mxu0 0.0
    %3528 = vmatpush1.msra.mxu0 %v2102
    %3529 = vmatprep.subr.mxu0 0.0
    %3530 = vmatpush1.msra.mxu0 %v2103
    %3531 = vmatprep.subr.mxu0 0.0
    %3532 = vmatpush1.msra.mxu0 %v2104
    %3533 = vmatprep.subr.mxu0 0.0
    %3534 = vmatpush1.msra.mxu0 %v2105
    %3535 = vmatprep.subr.mxu0 0.0
    %3536 = vmatpush1.msra.mxu0 %v2106
    %3537 = vmatprep.subr.mxu0 0.0
    %3538 = vmatpush1.msra.mxu0 %v2107
    %3539 = vmatprep.subr.mxu0 0.0
    %3540 = vmatpush1.msra.mxu0 %v2108
    %3541 = vmatprep.subr.mxu0 0.0
    %3542 = vmatpush1.msra.mxu0 %v2109
    %3543 = vmatprep.subr.mxu0 0.0
    %3544 = vmatpush1.msra.mxu0 %v2110
    %3545 = vmatprep.subr.mxu0 0.0
    %3546 = vmatpush1.msra.mxu0 %v2111
    %3547 = vmatprep.subr.mxu0 0.0
    %3548 = vmatpush1.msra.mxu0 0.0
    %3549 = vmatprep.subr.mxu0 0.0
    %3550 = vmatpush1.msra.mxu0 0.0
    %3551 = vmatprep.subr.mxu0 0.0
    %3552 = vmatpush1.msra.mxu0 0.0
    %3553 = vmatprep.subr.mxu0 0.0
    %3554 = vmatpush1.msra.mxu0 0.0
    %3555 = vmatprep.subr.mxu0 0.0
    %3556 = vmatpush1.msra.mxu0 0.0
    %3557 = vmatprep.subr.mxu0 0.0
    %3558 = vmatpush1.msra.mxu0 0.0
    %3559 = vmatprep.subr.mxu0 0.0
    %3560 = vmatpush1.msra.mxu0 0.0
    %3561 = vmatprep.subr.mxu0 0.0
    %3562 = vmatpush1.msra.mxu0 0.0
    %3563 = vmatprep.subr.mxu0 0.0
    %3564 = vmatpush1.msra.mxu0 0.0
    %3565 = vmatprep.subr.mxu0 0.0
    %3566 = vmatpush1.msra.mxu0 0.0
    %3567 = vmatprep.subr.mxu0 0.0
    %3568 = vmatpush1.msra.mxu0 0.0
    %3569 = vmatprep.subr.mxu0 0.0
    %3570 = vmatpush1.msra.mxu0 0.0
    %3571 = vmatprep.subr.mxu0 0.0
    %3572 = vmatpush1.msra.mxu0 0.0
    %3573 = vmatprep.subr.mxu0 0.0
    %3574 = vmatpush1.msra.mxu0 0.0
    %3575 = vmatprep.subr.mxu0 0.0
    %3576 = vmatpush1.msra.mxu0 0.0
    %3577 = vmatprep.subr.mxu0 0.0
    %3578 = vmatpush1.msra.mxu0 0.0
    %3579 = vmatprep.mubr.f32.mxu0 0.0
    %3580 = vmatmul.mubr.f32.gmra.mrb[0].mxu0 %v1392
    %v3581 = vpop.f32.mrb[0].mxu0
    %v3582 = vadd.f32 0.0, %v3581
    %v3583 = vpop.f32.mrb[0].mxu0
    %3584 = vdwg.mxu0
    %3585 = vmatprep.subr.mxu0 0.0
    %3586 = vmatpush1.msra.mxu0 %v2183
    %3587 = vmatprep.subr.mxu0 0.0
    %3588 = vmatpush1.msra.mxu0 %v2184
    %3589 = vmatprep.subr.mxu0 0.0
    %3590 = vmatpush1.msra.mxu0 %v2185
    %3591 = vmatprep.subr.mxu0 0.0
    %3592 = vmatpush1.msra.mxu0 %v2186
    %3593 = vmatprep.subr.mxu0 0.0
    %3594 = vmatpush1.msra.mxu0 %v2187
    %3595 = vmatprep.subr.mxu0 0.0
    %3596 = vmatpush1.msra.mxu0 %v2188
    %3597 = vmatprep.subr.mxu0 0.0
    %3598 = vmatpush1.msra.mxu0 %v2189
    %3599 = vmatprep.subr.mxu0 0.0
    %3600 = vmatpush1.msra.mxu0 %v2190
    %3601 = vmatprep.subr.mxu0 0.0
    %3602 = vmatpush1.msra.mxu0 %v2191
    %3603 = vmatprep.subr.mxu0 0.0
    %3604 = vmatpush1.msra.mxu0 %v2192
    %3605 = vmatprep.subr.mxu0 0.0
    %3606 = vmatpush1.msra.mxu0 %v2193
    %3607 = vmatprep.subr.mxu0 0.0
    %3608 = vmatpush1.msra.mxu0 %v2194
    %3609 = vmatprep.subr.mxu0 0.0
    %3610 = vmatpush1.msra.mxu0 %v2195
    %3611 = vmatprep.subr.mxu0 0.0
    %3612 = vmatpush1.msra.mxu0 %v2196
    %3613 = vmatprep.subr.mxu0 0.0
    %3614 = vmatpush1.msra.mxu0 %v2197
    %3615 = vmatprep.subr.mxu0 0.0
    %3616 = vmatpush1.msra.mxu0 %v2198
    %3617 = vmatprep.subr.mxu0 0.0
    %3618 = vmatpush1.msra.mxu0 0.0
    %3619 = vmatprep.subr.mxu0 0.0
    %3620 = vmatpush1.msra.mxu0 0.0
    %3621 = vmatprep.subr.mxu0 0.0
    %3622 = vmatpush1.msra.mxu0 0.0
    %3623 = vmatprep.subr.mxu0 0.0
    %3624 = vmatpush1.msra.mxu0 0.0
    %3625 = vmatprep.subr.mxu0 0.0
    %3626 = vmatpush1.msra.mxu0 0.0
    %3627 = vmatprep.subr.mxu0 0.0
    %3628 = vmatpush1.msra.mxu0 0.0
    %3629 = vmatprep.subr.mxu0 0.0
    %3630 = vmatpush1.msra.mxu0 0.0
    %3631 = vmatprep.subr.mxu0 0.0
    %3632 = vmatpush1.msra.mxu0 0.0
    %3633 = vmatprep.subr.mxu0 0.0
    %3634 = vmatpush1.msra.mxu0 0.0
    %3635 = vmatprep.subr.mxu0 0.0
    %3636 = vmatpush1.msra.mxu0 0.0
    %3637 = vmatprep.subr.mxu0 0.0
    %3638 = vmatpush1.msra.mxu0 0.0
    %3639 = vmatprep.subr.mxu0 0.0
    %3640 = vmatpush1.msra.mxu0 0.0
    %3641 = vmatprep.subr.mxu0 0.0
    %3642 = vmatpush1.msra.mxu0 0.0
    %3643 = vmatprep.subr.mxu0 0.0
    %3644 = vmatpush1.msra.mxu0 0.0
    %3645 = vmatprep.subr.mxu0 0.0
    %3646 = vmatpush1.msra.mxu0 0.0
    %3647 = vmatprep.subr.mxu0 0.0
    %3648 = vmatpush1.msra.mxu0 0.0
    %3649 = vmatprep.mubr.f32.mxu0 0.0
    %3650 = vmatmul.mubr.f32.gmra.mrb[0].mxu0 %v3371
    %v3651 = vpop.f32.mrb[0].mxu0
    %v3652 = vadd.f32 0.0, %v3651
    %v3653 = vpop.f32.mrb[0].mxu0
    %3654 = vdwg.mxu0
    %v3655 = vmul.f32 %v3582, %v3652
    %v3656 = vadd.f32 %v3514, %v3655
    %3657 = vmatprep.subr.mxu0 0.0
    %3658 = vmatpush1.msra.mxu0 %v2272
    %3659 = vmatprep.subr.mxu0 0.0
    %3660 = vmatpush1.msra.mxu0 %v2273
    %3661 = vmatprep.subr.mxu0 0.0
    %3662 = vmatpush1.msra.mxu0 %v2274
    %3663 = vmatprep.subr.mxu0 0.0
    %3664 = vmatpush1.msra.mxu0 %v2275
    %3665 = vmatprep.subr.mxu0 0.0
    %3666 = vmatpush1.msra.mxu0 %v2276
    %3667 = vmatprep.subr.mxu0 0.0
    %3668 = vmatpush1.msra.mxu0 %v2277
    %3669 = vmatprep.subr.mxu0 0.0
    %3670 = vmatpush1.msra.mxu0 %v2278
    %3671 = vmatprep.subr.mxu0 0.0
    %3672 = vmatpush1.msra.mxu0 %v2279
    %3673 = vmatprep.subr.mxu0 0.0
    %3674 = vmatpush1.msra.mxu0 %v2280
    %3675 = vmatprep.subr.mxu0 0.0
    %3676 = vmatpush1.msra.mxu0 %v2281
    %3677 = vmatprep.subr.mxu0 0.0
    %3678 = vmatpush1.msra.mxu0 %v2282
    %3679 = vmatprep.subr.mxu0 0.0
    %3680 = vmatpush1.msra.mxu0 %v2283
    %3681 = vmatprep.subr.mxu0 0.0
    %3682 = vmatpush1.msra.mxu0 %v2284
    %3683 = vmatprep.subr.mxu0 0.0
    %3684 = vmatpush1.msra.mxu0 %v2285
    %3685 = vmatprep.subr.mxu0 0.0
    %3686 = vmatpush1.msra.mxu0 %v2286
    %3687 = vmatprep.subr.mxu0 0.0
    %3688 = vmatpush1.msra.mxu0 %v2287
    %3689 = vmatprep.subr.mxu0 0.0
    %3690 = vmatpush1.msra.mxu0 0.0
    %3691 = vmatprep.subr.mxu0 0.0
    %3692 = vmatpush1.msra.mxu0 0.0
    %3693 = vmatprep.subr.mxu0 0.0
    %3694 = vmatpush1.msra.mxu0 0.0
    %3695 = vmatprep.subr.mxu0 0.0
    %3696 = vmatpush1.msra.mxu0 0.0
    %3697 = vmatprep.subr.mxu0 0.0
    %3698 = vmatpush1.msra.mxu0 0.0
    %3699 = vmatprep.subr.mxu0 0.0
    %3700 = vmatpush1.msra.mxu0 0.0
    %3701 = vmatprep.subr.mxu0 0.0
    %3702 = vmatpush1.msra.mxu0 0.0
    %3703 = vmatprep.subr.mxu0 0.0
    %3704 = vmatpush1.msra.mxu0 0.0
    %3705 = vmatprep.subr.mxu0 0.0
    %3706 = vmatpush1.msra.mxu0 0.0
    %3707 = vmatprep.subr.mxu0 0.0
    %3708 = vmatpush1.msra.mxu0 0.0
    %3709 = vmatprep.subr.mxu0 0.0
    %3710 = vmatpush1.msra.mxu0 0.0
    %3711 = vmatprep.subr.mxu0 0.0
    %3712 = vmatpush1.msra.mxu0 0.0
    %3713 = vmatprep.subr.mxu0 0.0
    %3714 = vmatpush1.msra.mxu0 0.0
    %3715 = vmatprep.subr.mxu0 0.0
    %3716 = vmatpush1.msra.mxu0 0.0
    %3717 = vmatprep.subr.mxu0 0.0
    %3718 = vmatpush1.msra.mxu0 0.0
    %3719 = vmatprep.subr.mxu0 0.0
    %3720 = vmatpush1.msra.mxu0 0.0
    %3721 = vmatprep.mubr.f32.mxu0 0.0
    %3722 = vmatmul.mubr.f32.gmra.mrb[0].mxu0 %v1392
    %v3723 = vpop.f32.mrb[0].mxu0
    %v3724 = vadd.f32 0.0, %v3723
    %v3725 = vpop.f32.mrb[0].mxu0
    %3726 = vdwg.mxu0
    %3727 = vmatprep.subr.mxu0 0.0
    %3728 = vmatpush1.msra.mxu0 %v2359
    %3729 = vmatprep.subr.mxu0 0.0
    %3730 = vmatpush1.msra.mxu0 %v2360
    %3731 = vmatprep.subr.mxu0 0.0
    %3732 = vmatpush1.msra.mxu0 %v2361
    %3733 = vmatprep.subr.mxu0 0.0
    %3734 = vmatpush1.msra.mxu0 %v2362
    %3735 = vmatprep.subr.mxu0 0.0
    %3736 = vmatpush1.msra.mxu0 %v2363
    %3737 = vmatprep.subr.mxu0 0.0
    %3738 = vmatpush1.msra.mxu0 %v2364
    %3739 = vmatprep.subr.mxu0 0.0
    %3740 = vmatpush1.msra.mxu0 %v2365
    %3741 = vmatprep.subr.mxu0 0.0
    %3742 = vmatpush1.msra.mxu0 %v2366
    %3743 = vmatprep.subr.mxu0 0.0
    %3744 = vmatpush1.msra.mxu0 %v2367
    %3745 = vmatprep.subr.mxu0 0.0
    %3746 = vmatpush1.msra.mxu0 %v2368
    %3747 = vmatprep.subr.mxu0 0.0
    %3748 = vmatpush1.msra.mxu0 %v2369
    %3749 = vmatprep.subr.mxu0 0.0
    %3750 = vmatpush1.msra.mxu0 %v2370
    %3751 = vmatprep.subr.mxu0 0.0
    %3752 = vmatpush1.msra.mxu0 %v2371
    %3753 = vmatprep.subr.mxu0 0.0
    %3754 = vmatpush1.msra.mxu0 %v2372
    %3755 = vmatprep.subr.mxu0 0.0
    %3756 = vmatpush1.msra.mxu0 %v2373
    %3757 = vmatprep.subr.mxu0 0.0
    %3758 = vmatpush1.msra.mxu0 %v2374
    %3759 = vmatprep.subr.mxu0 0.0
    %3760 = vmatpush1.msra.mxu0 0.0
    %3761 = vmatprep.subr.mxu0 0.0
    %3762 = vmatpush1.msra.mxu0 0.0
    %3763 = vmatprep.subr.mxu0 0.0
    %3764 = vmatpush1.msra.mxu0 0.0
    %3765 = vmatprep.subr.mxu0 0.0
    %3766 = vmatpush1.msra.mxu0 0.0
    %3767 = vmatprep.subr.mxu0 0.0
    %3768 = vmatpush1.msra.mxu0 0.0
    %3769 = vmatprep.subr.mxu0 0.0
    %3770 = vmatpush1.msra.mxu0 0.0
    %3771 = vmatprep.subr.mxu0 0.0
    %3772 = vmatpush1.msra.mxu0 0.0
    %3773 = vmatprep.subr.mxu0 0.0
    %3774 = vmatpush1.msra.mxu0 0.0
    %3775 = vmatprep.subr.mxu0 0.0
    %3776 = vmatpush1.msra.mxu0 0.0
    %3777 = vmatprep.subr.mxu0 0.0
    %3778 = vmatpush1.msra.mxu0 0.0
    %3779 = vmatprep.subr.mxu0 0.0
    %3780 = vmatpush1.msra.mxu0 0.0
    %3781 = vmatprep.subr.mxu0 0.0
    %3782 = vmatpush1.msra.mxu0 0.0
    %3783 = vmatprep.subr.mxu0 0.0
    %3784 = vmatpush1.msra.mxu0 0.0
    %3785 = vmatprep.subr.mxu0 0.0
    %3786 = vmatpush1.msra.mxu0 0.0
    %3787 = vmatprep.subr.mxu0 0.0
    %3788 = vmatpush1.msra.mxu0 0.0
    %3789 = vmatprep.subr.mxu0 0.0
    %3790 = vmatpush1.msra.mxu0 0.0
    %3791 = vmatprep.mubr.f32.mxu0 0.0
    %3792 = vmatmul.mubr.f32.gmra.mrb[0].mxu0 %v3371
    %v3793 = vpop.f32.mrb[0].mxu0
    %v3794 = vadd.f32 0.0, %v3793
    %v3795 = vpop.f32.mrb[0].mxu0
    %3796 = vdwg.mxu0
    %v3797 = vmul.f32 %v3724, %v3794
    %v3798 = vadd.f32 %v3656, %v3797
    %3799 = vmatprep.subr.mxu0 0.0
    %3800 = vmatpush1.msra.mxu0 %v2448
    %3801 = vmatprep.subr.mxu0 0.0
    %3802 = vmatpush1.msra.mxu0 %v2449
    %3803 = vmatprep.subr.mxu0 0.0
    %3804 = vmatpush1.msra.mxu0 %v2450
    %3805 = vmatprep.subr.mxu0 0.0
    %3806 = vmatpush1.msra.mxu0 %v2451
    %3807 = vmatprep.subr.mxu0 0.0
    %3808 = vmatpush1.msra.mxu0 %v2452
    %3809 = vmatprep.subr.mxu0 0.0
    %3810 = vmatpush1.msra.mxu0 %v2453
    %3811 = vmatprep.subr.mxu0 0.0
    %3812 = vmatpush1.msra.mxu0 %v2454
    %3813 = vmatprep.subr.mxu0 0.0
    %3814 = vmatpush1.msra.mxu0 %v2455
    %3815 = vmatprep.subr.mxu0 0.0
    %3816 = vmatpush1.msra.mxu0 %v2456
    %3817 = vmatprep.subr.mxu0 0.0
    %3818 = vmatpush1.msra.mxu0 %v2457
    %3819 = vmatprep.subr.mxu0 0.0
    %3820 = vmatpush1.msra.mxu0 %v2458
    %3821 = vmatprep.subr.mxu0 0.0
    %3822 = vmatpush1.msra.mxu0 %v2459
    %3823 = vmatprep.subr.mxu0 0.0
    %3824 = vmatpush1.msra.mxu0 %v2460
    %3825 = vmatprep.subr.mxu0 0.0
    %3826 = vmatpush1.msra.mxu0 %v2461
    %3827 = vmatprep.subr.mxu0 0.0
    %3828 = vmatpush1.msra.mxu0 %v2462
    %3829 = vmatprep.subr.mxu0 0.0
    %3830 = vmatpush1.msra.mxu0 %v2463
    %3831 = vmatprep.subr.mxu0 0.0
    %3832 = vmatpush1.msra.mxu0 0.0
    %3833 = vmatprep.subr.mxu0 0.0
    %3834 = vmatpush1.msra.mxu0 0.0
    %3835 = vmatprep.subr.mxu0 0.0
    %3836 = vmatpush1.msra.mxu0 0.0
    %3837 = vmatprep.subr.mxu0 0.0
    %3838 = vmatpush1.msra.mxu0 0.0
    %3839 = vmatprep.subr.mxu0 0.0
    %3840 = vmatpush1.msra.mxu0 0.0
    %3841 = vmatprep.subr.mxu0 0.0
    %3842 = vmatpush1.msra.mxu0 0.0
    %3843 = vmatprep.subr.mxu0 0.0
    %3844 = vmatpush1.msra.mxu0 0.0
    %3845 = vmatprep.subr.mxu0 0.0
    %3846 = vmatpush1.msra.mxu0 0.0
    %3847 = vmatprep.subr.mxu0 0.0
    %3848 = vmatpush1.msra.mxu0 0.0
    %3849 = vmatprep.subr.mxu0 0.0
    %3850 = vmatpush1.msra.mxu0 0.0
    %3851 = vmatprep.subr.mxu0 0.0
    %3852 = vmatpush1.msra.mxu0 0.0
    %3853 = vmatprep.subr.mxu0 0.0
    %3854 = vmatpush1.msra.mxu0 0.0
    %3855 = vmatprep.subr.mxu0 0.0
    %3856 = vmatpush1.msra.mxu0 0.0
    %3857 = vmatprep.subr.mxu0 0.0
    %3858 = vmatpush1.msra.mxu0 0.0
    %3859 = vmatprep.subr.mxu0 0.0
    %3860 = vmatpush1.msra.mxu0 0.0
    %3861 = vmatprep.subr.mxu0 0.0
    %3862 = vmatpush1.msra.mxu0 0.0
    %3863 = vmatprep.mubr.f32.mxu0 0.0
    %3864 = vmatmul.mubr.f32.gmra.mrb[0].mxu0 %v1392
    %v3865 = vpop.f32.mrb[0].mxu0
    %v3866 = vadd.f32 0.0, %v3865
    %v3867 = vpop.f32.mrb[0].mxu0
    %3868 = vdwg.mxu0
    %3869 = vmatprep.subr.mxu0 0.0
    %3870 = vmatpush1.msra.mxu0 %v2535
    %3871 = vmatprep.subr.mxu0 0.0
    %3872 = vmatpush1.msra.mxu0 %v2536
    %3873 = vmatprep.subr.mxu0 0.0
    %3874 = vmatpush1.msra.mxu0 %v2537
    %3875 = vmatprep.subr.mxu0 0.0
    %3876 = vmatpush1.msra.mxu0 %v2538
    %3877 = vmatprep.subr.mxu0 0.0
    %3878 = vmatpush1.msra.mxu0 %v2539
    %3879 = vmatprep.subr.mxu0 0.0
    %3880 = vmatpush1.msra.mxu0 %v2540
    %3881 = vmatprep.subr.mxu0 0.0
    %3882 = vmatpush1.msra.mxu0 %v2541
    %3883 = vmatprep.subr.mxu0 0.0
    %3884 = vmatpush1.msra.mxu0 %v2542
    %3885 = vmatprep.subr.mxu0 0.0
    %3886 = vmatpush1.msra.mxu0 %v2543
    %3887 = vmatprep.subr.mxu0 0.0
    %3888 = vmatpush1.msra.mxu0 %v2544
    %3889 = vmatprep.subr.mxu0 0.0
    %3890 = vmatpush1.msra.mxu0 %v2545
    %3891 = vmatprep.subr.mxu0 0.0
    %3892 = vmatpush1.msra.mxu0 %v2546
    %3893 = vmatprep.subr.mxu0 0.0
    %3894 = vmatpush1.msra.mxu0 %v2547
    %3895 = vmatprep.subr.mxu0 0.0
    %3896 = vmatpush1.msra.mxu0 %v2548
    %3897 = vmatprep.subr.mxu0 0.0
    %3898 = vmatpush1.msra.mxu0 %v2549
    %3899 = vmatprep.subr.mxu0 0.0
    %3900 = vmatpush1.msra.mxu0 %v2550
    %3901 = vmatprep.subr.mxu0 0.0
    %3902 = vmatpush1.msra.mxu0 0.0
    %3903 = vmatprep.subr.mxu0 0.0
    %3904 = vmatpush1.msra.mxu0 0.0
    %3905 = vmatprep.subr.mxu0 0.0
    %3906 = vmatpush1.msra.mxu0 0.0
    %3907 = vmatprep.subr.mxu0 0.0
    %3908 = vmatpush1.msra.mxu0 0.0
    %3909 = vmatprep.subr.mxu0 0.0
    %3910 = vmatpush1.msra.mxu0 0.0
    %3911 = vmatprep.subr.mxu0 0.0
    %3912 = vmatpush1.msra.mxu0 0.0
    %3913 = vmatprep.subr.mxu0 0.0
    %3914 = vmatpush1.msra.mxu0 0.0
    %3915 = vmatprep.subr.mxu0 0.0
    %3916 = vmatpush1.msra.mxu0 0.0
    %3917 = vmatprep.subr.mxu0 0.0
    %3918 = vmatpush1.msra.mxu0 0.0
    %3919 = vmatprep.subr.mxu0 0.0
    %3920 = vmatpush1.msra.mxu0 0.0
    %3921 = vmatprep.subr.mxu0 0.0
    %3922 = vmatpush1.msra.mxu0 0.0
    %3923 = vmatprep.subr.mxu0 0.0
    %3924 = vmatpush1.msra.mxu0 0.0
    %3925 = vmatprep.subr.mxu0 0.0
    %3926 = vmatpush1.msra.mxu0 0.0
    %3927 = vmatprep.subr.mxu0 0.0
    %3928 = vmatpush1.msra.mxu0 0.0
    %3929 = vmatprep.subr.mxu0 0.0
    %3930 = vmatpush1.msra.mxu0 0.0
    %3931 = vmatprep.subr.mxu0 0.0
    %3932 = vmatpush1.msra.mxu0 0.0
    %3933 = vmatprep.mubr.f32.mxu0 0.0
    %3934 = vmatmul.mubr.f32.gmra.mrb[0].mxu0 %v3371
    %v3935 = vpop.f32.mrb[0].mxu0
    %v3936 = vadd.f32 0.0, %v3935
    %v3937 = vpop.f32.mrb[0].mxu0
    %3938 = vdwg.mxu0
    %v3939 = vmul.f32 %v3866, %v3936
    %v3940 = vadd.f32 %v3798, %v3939
    %v3941 = vmax.f32 %v3940, 0.0
    %s3942 = scalar_lea.vmem [#allocation2], 2432
    %v3943 = vld [vmem:[%s3942] sm:$0xff]
    %v3944 = vld [vmem:[%s3942 + $0x8] sm:$0xff]
    %v3945 = vld [vmem:[%s3942 + $0x10] sm:$0xff]
    %v3946 = vld [vmem:[%s3942 + $0x18] sm:$0xff]
    %v3947 = vld [vmem:[%s3942 + $0x20] sm:$0xff]
    %v3948 = vld [vmem:[%s3942 + $0x28] sm:$0xff]
    %v3949 = vld [vmem:[%s3942 + $0x30] sm:$0xff]
    %v3950 = vld [vmem:[%s3942 + $0x38] sm:$0xff]
    %v3951 = vld [vmem:[%s3942 + $0x40] sm:$0xff]
    %v3952 = vld [vmem:[%s3942 + $0x48] sm:$0xff]
    %v3953 = vld [vmem:[%s3942 + $0x50] sm:$0xff]
    %v3954 = vld [vmem:[%s3942 + $0x58] sm:$0xff]
    %v3955 = vld [vmem:[%s3942 + $0x60] sm:$0xff]
    %v3956 = vld [vmem:[%s3942 + $0x68] sm:$0xff]
    %v3957 = vld [vmem:[%s3942 + $0x70] sm:$0xff]
    %v3958 = vld [vmem:[%s3942 + $0x78] sm:$0xff]
    %v3959 = vlaneseq
    %v3960 = vshrl.u32 %v3959, 7
    %v3961 = vsub.s32 0, %v3960
    %v3962 = vrot.slane %v45, %v3961
    %3963 = vmatprep.subr.mxu0 0.0
    %3964 = vmatpush1.msra.mxu0 %v3943
    %3965 = vmatprep.subr.mxu0 0.0
    %3966 = vmatpush1.msra.mxu0 %v3944
    %3967 = vmatprep.subr.mxu0 0.0
    %3968 = vmatpush1.msra.mxu0 %v3945
    %3969 = vmatprep.subr.mxu0 0.0
    %3970 = vmatpush1.msra.mxu0 %v3946
    %3971 = vmatprep.subr.mxu0 0.0
    %3972 = vmatpush1.msra.mxu0 %v3947
    %3973 = vmatprep.subr.mxu0 0.0
    %3974 = vmatpush1.msra.mxu0 %v3948
    %3975 = vmatprep.subr.mxu0 0.0
    %3976 = vmatpush1.msra.mxu0 %v3949
    %3977 = vmatprep.subr.mxu0 0.0
    %3978 = vmatpush1.msra.mxu0 %v3950
    %3979 = vmatprep.subr.mxu0 0.0
    %3980 = vmatpush1.msra.mxu0 %v3951
    %3981 = vmatprep.subr.mxu0 0.0
    %3982 = vmatpush1.msra.mxu0 %v3952
    %3983 = vmatprep.subr.mxu0 0.0
    %3984 = vmatpush1.msra.mxu0 %v3953
    %3985 = vmatprep.subr.mxu0 0.0
    %3986 = vmatpush1.msra.mxu0 %v3954
    %3987 = vmatprep.subr.mxu0 0.0
    %3988 = vmatpush1.msra.mxu0 %v3955
    %3989 = vmatprep.subr.mxu0 0.0
    %3990 = vmatpush1.msra.mxu0 %v3956
    %3991 = vmatprep.subr.mxu0 0.0
    %3992 = vmatpush1.msra.mxu0 %v3957
    %3993 = vmatprep.subr.mxu0 0.0
    %3994 = vmatpush1.msra.mxu0 %v3958
    %3995 = vmatprep.subr.mxu0 0.0
    %3996 = vmatpush1.msra.mxu0 0.0
    %3997 = vmatprep.subr.mxu0 0.0
    %3998 = vmatpush1.msra.mxu0 0.0
    %3999 = vmatprep.subr.mxu0 0.0
    %4000 = vmatpush1.msra.mxu0 0.0
    %4001 = vmatprep.subr.mxu0 0.0
    %4002 = vmatpush1.msra.mxu0 0.0
    %4003 = vmatprep.subr.mxu0 0.0
    %4004 = vmatpush1.msra.mxu0 0.0
    %4005 = vmatprep.subr.mxu0 0.0
    %4006 = vmatpush1.msra.mxu0 0.0
    %4007 = vmatprep.subr.mxu0 0.0
    %4008 = vmatpush1.msra.mxu0 0.0
    %4009 = vmatprep.subr.mxu0 0.0
    %4010 = vmatpush1.msra.mxu0 0.0
    %4011 = vmatprep.subr.mxu0 0.0
    %4012 = vmatpush1.msra.mxu0 0.0
    %4013 = vmatprep.subr.mxu0 0.0
    %4014 = vmatpush1.msra.mxu0 0.0
    %4015 = vmatprep.subr.mxu0 0.0
    %4016 = vmatpush1.msra.mxu0 0.0
    %4017 = vmatprep.subr.mxu0 0.0
    %4018 = vmatpush1.msra.mxu0 0.0
    %4019 = vmatprep.subr.mxu0 0.0
    %4020 = vmatpush1.msra.mxu0 0.0
    %4021 = vmatprep.subr.mxu0 0.0
    %4022 = vmatpush1.msra.mxu0 0.0
    %4023 = vmatprep.subr.mxu0 0.0
    %4024 = vmatpush1.msra.mxu0 0.0
    %4025 = vmatprep.subr.mxu0 0.0
    %4026 = vmatpush1.msra.mxu0 0.0
    %4027 = vmatprep.mubr.f32.mxu0 0.0
    %4028 = vmatmul.mubr.f32.gmra.mrb[0].mxu0 %v3941
    %v4029 = vpop.f32.mrb[0].mxu0
    %v4030 = vadd.f32 %v3962, %v4029
    %v4031 = vpop.f32.mrb[0].mxu0
    %4032 = vdwg.mxu0
    %4033 = vmatprep.subr.mxu0 0.0
    %4034 = vmatpush1.msra.mxu0 %v1921
    %4035 = vmatprep.subr.mxu0 0.0
    %4036 = vmatpush1.msra.mxu0 %v1922
    %4037 = vmatprep.subr.mxu0 0.0
    %4038 = vmatpush1.msra.mxu0 %v1923
    %4039 = vmatprep.subr.mxu0 0.0
    %4040 = vmatpush1.msra.mxu0 %v1924
    %4041 = vmatprep.subr.mxu0 0.0
    %4042 = vmatpush1.msra.mxu0 %v1925
    %4043 = vmatprep.subr.mxu0 0.0
    %4044 = vmatpush1.msra.mxu0 %v1926
    %4045 = vmatprep.subr.mxu0 0.0
    %4046 = vmatpush1.msra.mxu0 %v1927
    %4047 = vmatprep.subr.mxu0 0.0
    %4048 = vmatpush1.msra.mxu0 %v1928
    %4049 = vmatprep.subr.mxu0 0.0
    %4050 = vmatpush1.msra.mxu0 %v1929
    %4051 = vmatprep.subr.mxu0 0.0
    %4052 = vmatpush1.msra.mxu0 %v1930
    %4053 = vmatprep.subr.mxu0 0.0
    %4054 = vmatpush1.msra.mxu0 %v1931
    %4055 = vmatprep.subr.mxu0 0.0
    %4056 = vmatpush1.msra.mxu0 %v1932
    %4057 = vmatprep.subr.mxu0 0.0
    %4058 = vmatpush1.msra.mxu0 %v1933
    %4059 = vmatprep.subr.mxu0 0.0
    %4060 = vmatpush1.msra.mxu0 %v1934
    %4061 = vmatprep.subr.mxu0 0.0
    %4062 = vmatpush1.msra.mxu0 %v1935
    %4063 = vmatprep.subr.mxu0 0.0
    %4064 = vmatpush1.msra.mxu0 %v1936
    %4065 = vmatprep.subr.mxu0 0.0
    %4066 = vmatpush1.msra.mxu0 0.0
    %4067 = vmatprep.subr.mxu0 0.0
    %4068 = vmatpush1.msra.mxu0 0.0
    %4069 = vmatprep.subr.mxu0 0.0
    %4070 = vmatpush1.msra.mxu0 0.0
    %4071 = vmatprep.subr.mxu0 0.0
    %4072 = vmatpush1.msra.mxu0 0.0
    %4073 = vmatprep.subr.mxu0 0.0
    %4074 = vmatpush1.msra.mxu0 0.0
    %4075 = vmatprep.subr.mxu0 0.0
    %4076 = vmatpush1.msra.mxu0 0.0
    %4077 = vmatprep.subr.mxu0 0.0
    %4078 = vmatpush1.msra.mxu0 0.0
    %4079 = vmatprep.subr.mxu0 0.0
    %4080 = vmatpush1.msra.mxu0 0.0
    %4081 = vmatprep.subr.mxu0 0.0
    %4082 = vmatpush1.msra.mxu0 0.0
    %4083 = vmatprep.subr.mxu0 0.0
    %4084 = vmatpush1.msra.mxu0 0.0
    %4085 = vmatprep.subr.mxu0 0.0
    %4086 = vmatpush1.msra.mxu0 0.0
    %4087 = vmatprep.subr.mxu0 0.0
    %4088 = vmatpush1.msra.mxu0 0.0
    %4089 = vmatprep.subr.mxu0 0.0
    %4090 = vmatpush1.msra.mxu0 0.0
    %4091 = vmatprep.subr.mxu0 0.0
    %4092 = vmatpush1.msra.mxu0 0.0
    %4093 = vmatprep.subr.mxu0 0.0
    %4094 = vmatpush1.msra.mxu0 0.0
    %4095 = vmatprep.subr.mxu0 0.0
    %4096 = vmatpush1.msra.mxu0 0.0
    %4097 = vmatprep.mubr.f32.mxu0 0.0
    %4098 = vmatmul.mubr.f32.gmra.mrb[0].mxu0 %v1828
    %v4099 = vpop.f32.mrb[0].mxu0
    %v4100 = vadd.f32 0.0, %v4099
    %v4101 = vpop.f32.mrb[0].mxu0
    %4102 = vdwg.mxu0
    %4103 = vmatprep.subr.mxu0 0.0
    %4104 = vmatpush1.msra.mxu0 %v2008
    %4105 = vmatprep.subr.mxu0 0.0
    %4106 = vmatpush1.msra.mxu0 %v2009
    %4107 = vmatprep.subr.mxu0 0.0
    %4108 = vmatpush1.msra.mxu0 %v2010
    %4109 = vmatprep.subr.mxu0 0.0
    %4110 = vmatpush1.msra.mxu0 %v2011
    %4111 = vmatprep.subr.mxu0 0.0
    %4112 = vmatpush1.msra.mxu0 %v2012
    %4113 = vmatprep.subr.mxu0 0.0
    %4114 = vmatpush1.msra.mxu0 %v2013
    %4115 = vmatprep.subr.mxu0 0.0
    %4116 = vmatpush1.msra.mxu0 %v2014
    %4117 = vmatprep.subr.mxu0 0.0
    %4118 = vmatpush1.msra.mxu0 %v2015
    %4119 = vmatprep.subr.mxu0 0.0
    %4120 = vmatpush1.msra.mxu0 %v2016
    %4121 = vmatprep.subr.mxu0 0.0
    %4122 = vmatpush1.msra.mxu0 %v2017
    %4123 = vmatprep.subr.mxu0 0.0
    %4124 = vmatpush1.msra.mxu0 %v2018
    %4125 = vmatprep.subr.mxu0 0.0
    %4126 = vmatpush1.msra.mxu0 %v2019
    %4127 = vmatprep.subr.mxu0 0.0
    %4128 = vmatpush1.msra.mxu0 %v2020
    %4129 = vmatprep.subr.mxu0 0.0
    %4130 = vmatpush1.msra.mxu0 %v2021
    %4131 = vmatprep.subr.mxu0 0.0
    %4132 = vmatpush1.msra.mxu0 %v2022
    %4133 = vmatprep.subr.mxu0 0.0
    %4134 = vmatpush1.msra.mxu0 %v2023
    %4135 = vmatprep.subr.mxu0 0.0
    %4136 = vmatpush1.msra.mxu0 0.0
    %4137 = vmatprep.subr.mxu0 0.0
    %4138 = vmatpush1.msra.mxu0 0.0
    %4139 = vmatprep.subr.mxu0 0.0
    %4140 = vmatpush1.msra.mxu0 0.0
    %4141 = vmatprep.subr.mxu0 0.0
    %4142 = vmatpush1.msra.mxu0 0.0
    %4143 = vmatprep.subr.mxu0 0.0
    %4144 = vmatpush1.msra.mxu0 0.0
    %4145 = vmatprep.subr.mxu0 0.0
    %4146 = vmatpush1.msra.mxu0 0.0
    %4147 = vmatprep.subr.mxu0 0.0
    %4148 = vmatpush1.msra.mxu0 0.0
    %4149 = vmatprep.subr.mxu0 0.0
    %4150 = vmatpush1.msra.mxu0 0.0
    %4151 = vmatprep.subr.mxu0 0.0
    %4152 = vmatpush1.msra.mxu0 0.0
    %4153 = vmatprep.subr.mxu0 0.0
    %4154 = vmatpush1.msra.mxu0 0.0
    %4155 = vmatprep.subr.mxu0 0.0
    %4156 = vmatpush1.msra.mxu0 0.0
    %4157 = vmatprep.subr.mxu0 0.0
    %4158 = vmatpush1.msra.mxu0 0.0
    %4159 = vmatprep.subr.mxu0 0.0
    %4160 = vmatpush1.msra.mxu0 0.0
    %4161 = vmatprep.subr.mxu0 0.0
    %4162 = vmatpush1.msra.mxu0 0.0
    %4163 = vmatprep.subr.mxu0 0.0
    %4164 = vmatpush1.msra.mxu0 0.0
    %4165 = vmatprep.subr.mxu0 0.0
    %4166 = vmatpush1.msra.mxu0 0.0
    %4167 = vmatprep.mubr.f32.mxu0 0.0
    %4168 = vmatmul.mubr.f32.gmra.mrb[0].mxu0 %v4030
    %v4169 = vpop.f32.mrb[0].mxu0
    %v4170 = vadd.f32 0.0, %v4169
    %v4171 = vpop.f32.mrb[0].mxu0
    %4172 = vdwg.mxu0
    %v4173 = vmul.f32 %v4100, %v4170
    %4174 = vmatprep.subr.mxu0 0.0
    %4175 = vmatpush1.msra.mxu0 %v2096
    %4176 = vmatprep.subr.mxu0 0.0
    %4177 = vmatpush1.msra.mxu0 %v2097
    %4178 = vmatprep.subr.mxu0 0.0
    %4179 = vmatpush1.msra.mxu0 %v2098
    %4180 = vmatprep.subr.mxu0 0.0
    %4181 = vmatpush1.msra.mxu0 %v2099
    %4182 = vmatprep.subr.mxu0 0.0
    %4183 = vmatpush1.msra.mxu0 %v2100
    %4184 = vmatprep.subr.mxu0 0.0
    %4185 = vmatpush1.msra.mxu0 %v2101
    %4186 = vmatprep.subr.mxu0 0.0
    %4187 = vmatpush1.msra.mxu0 %v2102
    %4188 = vmatprep.subr.mxu0 0.0
    %4189 = vmatpush1.msra.mxu0 %v2103
    %4190 = vmatprep.subr.mxu0 0.0
    %4191 = vmatpush1.msra.mxu0 %v2104
    %4192 = vmatprep.subr.mxu0 0.0
    %4193 = vmatpush1.msra.mxu0 %v2105
    %4194 = vmatprep.subr.mxu0 0.0
    %4195 = vmatpush1.msra.mxu0 %v2106
    %4196 = vmatprep.subr.mxu0 0.0
    %4197 = vmatpush1.msra.mxu0 %v2107
    %4198 = vmatprep.subr.mxu0 0.0
    %4199 = vmatpush1.msra.mxu0 %v2108
    %4200 = vmatprep.subr.mxu0 0.0
    %4201 = vmatpush1.msra.mxu0 %v2109
    %4202 = vmatprep.subr.mxu0 0.0
    %4203 = vmatpush1.msra.mxu0 %v2110
    %4204 = vmatprep.subr.mxu0 0.0
    %4205 = vmatpush1.msra.mxu0 %v2111
    %4206 = vmatprep.subr.mxu0 0.0
    %4207 = vmatpush1.msra.mxu0 0.0
    %4208 = vmatprep.subr.mxu0 0.0
    %4209 = vmatpush1.msra.mxu0 0.0
    %4210 = vmatprep.subr.mxu0 0.0
    %4211 = vmatpush1.msra.mxu0 0.0
    %4212 = vmatprep.subr.mxu0 0.0
    %4213 = vmatpush1.msra.mxu0 0.0
    %4214 = vmatprep.subr.mxu0 0.0
    %4215 = vmatpush1.msra.mxu0 0.0
    %4216 = vmatprep.subr.mxu0 0.0
    %4217 = vmatpush1.msra.mxu0 0.0
    %4218 = vmatprep.subr.mxu0 0.0
    %4219 = vmatpush1.msra.mxu0 0.0
    %4220 = vmatprep.subr.mxu0 0.0
    %4221 = vmatpush1.msra.mxu0 0.0
    %4222 = vmatprep.subr.mxu0 0.0
    %4223 = vmatpush1.msra.mxu0 0.0
    %4224 = vmatprep.subr.mxu0 0.0
    %4225 = vmatpush1.msra.mxu0 0.0
    %4226 = vmatprep.subr.mxu0 0.0
    %4227 = vmatpush1.msra.mxu0 0.0
    %4228 = vmatprep.subr.mxu0 0.0
    %4229 = vmatpush1.msra.mxu0 0.0
    %4230 = vmatprep.subr.mxu0 0.0
    %4231 = vmatpush1.msra.mxu0 0.0
    %4232 = vmatprep.subr.mxu0 0.0
    %4233 = vmatpush1.msra.mxu0 0.0
    %4234 = vmatprep.subr.mxu0 0.0
    %4235 = vmatpush1.msra.mxu0 0.0
    %4236 = vmatprep.subr.mxu0 0.0
    %4237 = vmatpush1.msra.mxu0 0.0
    %4238 = vmatprep.mubr.f32.mxu0 0.0
    %4239 = vmatmul.mubr.f32.gmra.mrb[0].mxu0 %v1828
    %v4240 = vpop.f32.mrb[0].mxu0
    %v4241 = vadd.f32 0.0, %v4240
    %v4242 = vpop.f32.mrb[0].mxu0
    %4243 = vdwg.mxu0
    %4244 = vmatprep.subr.mxu0 0.0
    %4245 = vmatpush1.msra.mxu0 %v2183
    %4246 = vmatprep.subr.mxu0 0.0
    %4247 = vmatpush1.msra.mxu0 %v2184
    %4248 = vmatprep.subr.mxu0 0.0
    %4249 = vmatpush1.msra.mxu0 %v2185
    %4250 = vmatprep.subr.mxu0 0.0
    %4251 = vmatpush1.msra.mxu0 %v2186
    %4252 = vmatprep.subr.mxu0 0.0
    %4253 = vmatpush1.msra.mxu0 %v2187
    %4254 = vmatprep.subr.mxu0 0.0
    %4255 = vmatpush1.msra.mxu0 %v2188
    %4256 = vmatprep.subr.mxu0 0.0
    %4257 = vmatpush1.msra.mxu0 %v2189
    %4258 = vmatprep.subr.mxu0 0.0
    %4259 = vmatpush1.msra.mxu0 %v2190
    %4260 = vmatprep.subr.mxu0 0.0
    %4261 = vmatpush1.msra.mxu0 %v2191
    %4262 = vmatprep.subr.mxu0 0.0
    %4263 = vmatpush1.msra.mxu0 %v2192
    %4264 = vmatprep.subr.mxu0 0.0
    %4265 = vmatpush1.msra.mxu0 %v2193
    %4266 = vmatprep.subr.mxu0 0.0
    %4267 = vmatpush1.msra.mxu0 %v2194
    %4268 = vmatprep.subr.mxu0 0.0
    %4269 = vmatpush1.msra.mxu0 %v2195
    %4270 = vmatprep.subr.mxu0 0.0
    %4271 = vmatpush1.msra.mxu0 %v2196
    %4272 = vmatprep.subr.mxu0 0.0
    %4273 = vmatpush1.msra.mxu0 %v2197
    %4274 = vmatprep.subr.mxu0 0.0
    %4275 = vmatpush1.msra.mxu0 %v2198
    %4276 = vmatprep.subr.mxu0 0.0
    %4277 = vmatpush1.msra.mxu0 0.0
    %4278 = vmatprep.subr.mxu0 0.0
    %4279 = vmatpush1.msra.mxu0 0.0
    %4280 = vmatprep.subr.mxu0 0.0
    %4281 = vmatpush1.msra.mxu0 0.0
    %4282 = vmatprep.subr.mxu0 0.0
    %4283 = vmatpush1.msra.mxu0 0.0
    %4284 = vmatprep.subr.mxu0 0.0
    %4285 = vmatpush1.msra.mxu0 0.0
    %4286 = vmatprep.subr.mxu0 0.0
    %4287 = vmatpush1.msra.mxu0 0.0
    %4288 = vmatprep.subr.mxu0 0.0
    %4289 = vmatpush1.msra.mxu0 0.0
    %4290 = vmatprep.subr.mxu0 0.0
    %4291 = vmatpush1.msra.mxu0 0.0
    %4292 = vmatprep.subr.mxu0 0.0
    %4293 = vmatpush1.msra.mxu0 0.0
    %4294 = vmatprep.subr.mxu0 0.0
    %4295 = vmatpush1.msra.mxu0 0.0
    %4296 = vmatprep.subr.mxu0 0.0
    %4297 = vmatpush1.msra.mxu0 0.0
    %4298 = vmatprep.subr.mxu0 0.0
    %4299 = vmatpush1.msra.mxu0 0.0
    %4300 = vmatprep.subr.mxu0 0.0
    %4301 = vmatpush1.msra.mxu0 0.0
    %4302 = vmatprep.subr.mxu0 0.0
    %4303 = vmatpush1.msra.mxu0 0.0
    %4304 = vmatprep.subr.mxu0 0.0
    %4305 = vmatpush1.msra.mxu0 0.0
    %4306 = vmatprep.subr.mxu0 0.0
    %4307 = vmatpush1.msra.mxu0 0.0
    %4308 = vmatprep.mubr.f32.mxu0 0.0
    %4309 = vmatmul.mubr.f32.gmra.mrb[0].mxu0 %v4030
    %v4310 = vpop.f32.mrb[0].mxu0
    %v4311 = vadd.f32 0.0, %v4310
    %v4312 = vpop.f32.mrb[0].mxu0
    %4313 = vdwg.mxu0
    %v4314 = vmul.f32 %v4241, %v4311
    %v4315 = vadd.f32 %v4173, %v4314
    %4316 = vmatprep.subr.mxu0 0.0
    %4317 = vmatpush1.msra.mxu0 %v2272
    %4318 = vmatprep.subr.mxu0 0.0
    %4319 = vmatpush1.msra.mxu0 %v2273
    %4320 = vmatprep.subr.mxu0 0.0
    %4321 = vmatpush1.msra.mxu0 %v2274
    %4322 = vmatprep.subr.mxu0 0.0
    %4323 = vmatpush1.msra.mxu0 %v2275
    %4324 = vmatprep.subr.mxu0 0.0
    %4325 = vmatpush1.msra.mxu0 %v2276
    %4326 = vmatprep.subr.mxu0 0.0
    %4327 = vmatpush1.msra.mxu0 %v2277
    %4328 = vmatprep.subr.mxu0 0.0
    %4329 = vmatpush1.msra.mxu0 %v2278
    %4330 = vmatprep.subr.mxu0 0.0
    %4331 = vmatpush1.msra.mxu0 %v2279
    %4332 = vmatprep.subr.mxu0 0.0
    %4333 = vmatpush1.msra.mxu0 %v2280
    %4334 = vmatprep.subr.mxu0 0.0
    %4335 = vmatpush1.msra.mxu0 %v2281
    %4336 = vmatprep.subr.mxu0 0.0
    %4337 = vmatpush1.msra.mxu0 %v2282
    %4338 = vmatprep.subr.mxu0 0.0
    %4339 = vmatpush1.msra.mxu0 %v2283
    %4340 = vmatprep.subr.mxu0 0.0
    %4341 = vmatpush1.msra.mxu0 %v2284
    %4342 = vmatprep.subr.mxu0 0.0
    %4343 = vmatpush1.msra.mxu0 %v2285
    %4344 = vmatprep.subr.mxu0 0.0
    %4345 = vmatpush1.msra.mxu0 %v2286
    %4346 = vmatprep.subr.mxu0 0.0
    %4347 = vmatpush1.msra.mxu0 %v2287
    %4348 = vmatprep.subr.mxu0 0.0
    %4349 = vmatpush1.msra.mxu0 0.0
    %4350 = vmatprep.subr.mxu0 0.0
    %4351 = vmatpush1.msra.mxu0 0.0
    %4352 = vmatprep.subr.mxu0 0.0
    %4353 = vmatpush1.msra.mxu0 0.0
    %4354 = vmatprep.subr.mxu0 0.0
    %4355 = vmatpush1.msra.mxu0 0.0
    %4356 = vmatprep.subr.mxu0 0.0
    %4357 = vmatpush1.msra.mxu0 0.0
    %4358 = vmatprep.subr.mxu0 0.0
    %4359 = vmatpush1.msra.mxu0 0.0
    %4360 = vmatprep.subr.mxu0 0.0
    %4361 = vmatpush1.msra.mxu0 0.0
    %4362 = vmatprep.subr.mxu0 0.0
    %4363 = vmatpush1.msra.mxu0 0.0
    %4364 = vmatprep.subr.mxu0 0.0
    %4365 = vmatpush1.msra.mxu0 0.0
    %4366 = vmatprep.subr.mxu0 0.0
    %4367 = vmatpush1.msra.mxu0 0.0
    %4368 = vmatprep.subr.mxu0 0.0
    %4369 = vmatpush1.msra.mxu0 0.0
    %4370 = vmatprep.subr.mxu0 0.0
    %4371 = vmatpush1.msra.mxu0 0.0
    %4372 = vmatprep.subr.mxu0 0.0
    %4373 = vmatpush1.msra.mxu0 0.0
    %4374 = vmatprep.subr.mxu0 0.0
    %4375 = vmatpush1.msra.mxu0 0.0
    %4376 = vmatprep.subr.mxu0 0.0
    %4377 = vmatpush1.msra.mxu0 0.0
    %4378 = vmatprep.subr.mxu0 0.0
    %4379 = vmatpush1.msra.mxu0 0.0
    %4380 = vmatprep.mubr.f32.mxu0 0.0
    %4381 = vmatmul.mubr.f32.gmra.mrb[0].mxu0 %v1828
    %v4382 = vpop.f32.mrb[0].mxu0
    %v4383 = vadd.f32 0.0, %v4382
    %v4384 = vpop.f32.mrb[0].mxu0
    %4385 = vdwg.mxu0
    %4386 = vmatprep.subr.mxu0 0.0
    %4387 = vmatpush1.msra.mxu0 %v2359
    %4388 = vmatprep.subr.mxu0 0.0
    %4389 = vmatpush1.msra.mxu0 %v2360
    %4390 = vmatprep.subr.mxu0 0.0
    %4391 = vmatpush1.msra.mxu0 %v2361
    %4392 = vmatprep.subr.mxu0 0.0
    %4393 = vmatpush1.msra.mxu0 %v2362
    %4394 = vmatprep.subr.mxu0 0.0
    %4395 = vmatpush1.msra.mxu0 %v2363
    %4396 = vmatprep.subr.mxu0 0.0
    %4397 = vmatpush1.msra.mxu0 %v2364
    %4398 = vmatprep.subr.mxu0 0.0
    %4399 = vmatpush1.msra.mxu0 %v2365
    %4400 = vmatprep.subr.mxu0 0.0
    %4401 = vmatpush1.msra.mxu0 %v2366
    %4402 = vmatprep.subr.mxu0 0.0
    %4403 = vmatpush1.msra.mxu0 %v2367
    %4404 = vmatprep.subr.mxu0 0.0
    %4405 = vmatpush1.msra.mxu0 %v2368
    %4406 = vmatprep.subr.mxu0 0.0
    %4407 = vmatpush1.msra.mxu0 %v2369
    %4408 = vmatprep.subr.mxu0 0.0
    %4409 = vmatpush1.msra.mxu0 %v2370
    %4410 = vmatprep.subr.mxu0 0.0
    %4411 = vmatpush1.msra.mxu0 %v2371
    %4412 = vmatprep.subr.mxu0 0.0
    %4413 = vmatpush1.msra.mxu0 %v2372
    %4414 = vmatprep.subr.mxu0 0.0
    %4415 = vmatpush1.msra.mxu0 %v2373
    %4416 = vmatprep.subr.mxu0 0.0
    %4417 = vmatpush1.msra.mxu0 %v2374
    %4418 = vmatprep.subr.mxu0 0.0
    %4419 = vmatpush1.msra.mxu0 0.0
    %4420 = vmatprep.subr.mxu0 0.0
    %4421 = vmatpush1.msra.mxu0 0.0
    %4422 = vmatprep.subr.mxu0 0.0
    %4423 = vmatpush1.msra.mxu0 0.0
    %4424 = vmatprep.subr.mxu0 0.0
    %4425 = vmatpush1.msra.mxu0 0.0
    %4426 = vmatprep.subr.mxu0 0.0
    %4427 = vmatpush1.msra.mxu0 0.0
    %4428 = vmatprep.subr.mxu0 0.0
    %4429 = vmatpush1.msra.mxu0 0.0
    %4430 = vmatprep.subr.mxu0 0.0
    %4431 = vmatpush1.msra.mxu0 0.0
    %4432 = vmatprep.subr.mxu0 0.0
    %4433 = vmatpush1.msra.mxu0 0.0
    %4434 = vmatprep.subr.mxu0 0.0
    %4435 = vmatpush1.msra.mxu0 0.0
    %4436 = vmatprep.subr.mxu0 0.0
    %4437 = vmatpush1.msra.mxu0 0.0
    %4438 = vmatprep.subr.mxu0 0.0
    %4439 = vmatpush1.msra.mxu0 0.0
    %4440 = vmatprep.subr.mxu0 0.0
    %4441 = vmatpush1.msra.mxu0 0.0
    %4442 = vmatprep.subr.mxu0 0.0
    %4443 = vmatpush1.msra.mxu0 0.0
    %4444 = vmatprep.subr.mxu0 0.0
    %4445 = vmatpush1.msra.mxu0 0.0
    %4446 = vmatprep.subr.mxu0 0.0
    %4447 = vmatpush1.msra.mxu0 0.0
    %4448 = vmatprep.subr.mxu0 0.0
    %4449 = vmatpush1.msra.mxu0 0.0
    %4450 = vmatprep.mubr.f32.mxu0 0.0
    %4451 = vmatmul.mubr.f32.gmra.mrb[0].mxu0 %v4030
    %v4452 = vpop.f32.mrb[0].mxu0
    %v4453 = vadd.f32 0.0, %v4452
    %v4454 = vpop.f32.mrb[0].mxu0
    %4455 = vdwg.mxu0
    %v4456 = vmul.f32 %v4383, %v4453
    %v4457 = vadd.f32 %v4315, %v4456
    %4458 = vmatprep.subr.mxu0 0.0
    %4459 = vmatpush1.msra.mxu0 %v2448
    %4460 = vmatprep.subr.mxu0 0.0
    %4461 = vmatpush1.msra.mxu0 %v2449
    %4462 = vmatprep.subr.mxu0 0.0
    %4463 = vmatpush1.msra.mxu0 %v2450
    %4464 = vmatprep.subr.mxu0 0.0
    %4465 = vmatpush1.msra.mxu0 %v2451
    %4466 = vmatprep.subr.mxu0 0.0
    %4467 = vmatpush1.msra.mxu0 %v2452
    %4468 = vmatprep.subr.mxu0 0.0
    %4469 = vmatpush1.msra.mxu0 %v2453
    %4470 = vmatprep.subr.mxu0 0.0
    %4471 = vmatpush1.msra.mxu0 %v2454
    %4472 = vmatprep.subr.mxu0 0.0
    %4473 = vmatpush1.msra.mxu0 %v2455
    %4474 = vmatprep.subr.mxu0 0.0
    %4475 = vmatpush1.msra.mxu0 %v2456
    %4476 = vmatprep.subr.mxu0 0.0
    %4477 = vmatpush1.msra.mxu0 %v2457
    %4478 = vmatprep.subr.mxu0 0.0
    %4479 = vmatpush1.msra.mxu0 %v2458
    %4480 = vmatprep.subr.mxu0 0.0
    %4481 = vmatpush1.msra.mxu0 %v2459
    %4482 = vmatprep.subr.mxu0 0.0
    %4483 = vmatpush1.msra.mxu0 %v2460
    %4484 = vmatprep.subr.mxu0 0.0
    %4485 = vmatpush1.msra.mxu0 %v2461
    %4486 = vmatprep.subr.mxu0 0.0
    %4487 = vmatpush1.msra.mxu0 %v2462
    %4488 = vmatprep.subr.mxu0 0.0
    %4489 = vmatpush1.msra.mxu0 %v2463
    %4490 = vmatprep.subr.mxu0 0.0
    %4491 = vmatpush1.msra.mxu0 0.0
    %4492 = vmatprep.subr.mxu0 0.0
    %4493 = vmatpush1.msra.mxu0 0.0
    %4494 = vmatprep.subr.mxu0 0.0
    %4495 = vmatpush1.msra.mxu0 0.0
    %4496 = vmatprep.subr.mxu0 0.0
    %4497 = vmatpush1.msra.mxu0 0.0
    %4498 = vmatprep.subr.mxu0 0.0
    %4499 = vmatpush1.msra.mxu0 0.0
    %4500 = vmatprep.subr.mxu0 0.0
    %4501 = vmatpush1.msra.mxu0 0.0
    %4502 = vmatprep.subr.mxu0 0.0
    %4503 = vmatpush1.msra.mxu0 0.0
    %4504 = vmatprep.subr.mxu0 0.0
    %4505 = vmatpush1.msra.mxu0 0.0
    %4506 = vmatprep.subr.mxu0 0.0
    %4507 = vmatpush1.msra.mxu0 0.0
    %4508 = vmatprep.subr.mxu0 0.0
    %4509 = vmatpush1.msra.mxu0 0.0
    %4510 = vmatprep.subr.mxu0 0.0
    %4511 = vmatpush1.msra.mxu0 0.0
    %4512 = vmatprep.subr.mxu0 0.0
    %4513 = vmatpush1.msra.mxu0 0.0
    %4514 = vmatprep.subr.mxu0 0.0
    %4515 = vmatpush1.msra.mxu0 0.0
    %4516 = vmatprep.subr.mxu0 0.0
    %4517 = vmatpush1.msra.mxu0 0.0
    %4518 = vmatprep.subr.mxu0 0.0
    %4519 = vmatpush1.msra.mxu0 0.0
    %4520 = vmatprep.subr.mxu0 0.0
    %4521 = vmatpush1.msra.mxu0 0.0
    %4522 = vmatprep.mubr.f32.mxu0 0.0
    %4523 = vmatmul.mubr.f32.gmra.mrb[0].mxu0 %v1828
    %v4524 = vpop.f32.mrb[0].mxu0
    %v4525 = vadd.f32 0.0, %v4524
    %v4526 = vpop.f32.mrb[0].mxu0
    %4527 = vdwg.mxu0
    %4528 = vmatprep.subr.mxu0 0.0
    %4529 = vmatpush1.msra.mxu0 %v2535
    %4530 = vmatprep.subr.mxu0 0.0
    %4531 = vmatpush1.msra.mxu0 %v2536
    %4532 = vmatprep.subr.mxu0 0.0
    %4533 = vmatpush1.msra.mxu0 %v2537
    %4534 = vmatprep.subr.mxu0 0.0
    %4535 = vmatpush1.msra.mxu0 %v2538
    %4536 = vmatprep.subr.mxu0 0.0
    %4537 = vmatpush1.msra.mxu0 %v2539
    %4538 = vmatprep.subr.mxu0 0.0
    %4539 = vmatpush1.msra.mxu0 %v2540
    %4540 = vmatprep.subr.mxu0 0.0
    %4541 = vmatpush1.msra.mxu0 %v2541
    %4542 = vmatprep.subr.mxu0 0.0
    %4543 = vmatpush1.msra.mxu0 %v2542
    %4544 = vmatprep.subr.mxu0 0.0
    %4545 = vmatpush1.msra.mxu0 %v2543
    %4546 = vmatprep.subr.mxu0 0.0
    %4547 = vmatpush1.msra.mxu0 %v2544
    %4548 = vmatprep.subr.mxu0 0.0
    %4549 = vmatpush1.msra.mxu0 %v2545
    %4550 = vmatprep.subr.mxu0 0.0
    %4551 = vmatpush1.msra.mxu0 %v2546
    %4552 = vmatprep.subr.mxu0 0.0
    %4553 = vmatpush1.msra.mxu0 %v2547
    %4554 = vmatprep.subr.mxu0 0.0
    %4555 = vmatpush1.msra.mxu0 %v2548
    %4556 = vmatprep.subr.mxu0 0.0
    %4557 = vmatpush1.msra.mxu0 %v2549
    %4558 = vmatprep.subr.mxu0 0.0
    %4559 = vmatpush1.msra.mxu0 %v2550
    %4560 = vmatprep.subr.mxu0 0.0
    %4561 = vmatpush1.msra.mxu0 0.0
    %4562 = vmatprep.subr.mxu0 0.0
    %4563 = vmatpush1.msra.mxu0 0.0
    %4564 = vmatprep.subr.mxu0 0.0
    %4565 = vmatpush1.msra.mxu0 0.0
    %4566 = vmatprep.subr.mxu0 0.0
    %4567 = vmatpush1.msra.mxu0 0.0
    %4568 = vmatprep.subr.mxu0 0.0
    %4569 = vmatpush1.msra.mxu0 0.0
    %4570 = vmatprep.subr.mxu0 0.0
    %4571 = vmatpush1.msra.mxu0 0.0
    %4572 = vmatprep.subr.mxu0 0.0
    %4573 = vmatpush1.msra.mxu0 0.0
    %4574 = vmatprep.subr.mxu0 0.0
    %4575 = vmatpush1.msra.mxu0 0.0
    %4576 = vmatprep.subr.mxu0 0.0
    %4577 = vmatpush1.msra.mxu0 0.0
    %4578 = vmatprep.subr.mxu0 0.0
    %4579 = vmatpush1.msra.mxu0 0.0
    %4580 = vmatprep.subr.mxu0 0.0
    %4581 = vmatpush1.msra.mxu0 0.0
    %4582 = vmatprep.subr.mxu0 0.0
    %4583 = vmatpush1.msra.mxu0 0.0
    %4584 = vmatprep.subr.mxu0 0.0
    %4585 = vmatpush1.msra.mxu0 0.0
    %4586 = vmatprep.subr.mxu0 0.0
    %4587 = vmatpush1.msra.mxu0 0.0
    %4588 = vmatprep.subr.mxu0 0.0
    %4589 = vmatpush1.msra.mxu0 0.0
    %4590 = vmatprep.subr.mxu0 0.0
    %4591 = vmatpush1.msra.mxu0 0.0
    %4592 = vmatprep.mubr.f32.mxu0 0.0
    %4593 = vmatmul.mubr.f32.gmra.mrb[0].mxu0 %v4030
    %v4594 = vpop.f32.mrb[0].mxu0
    %v4595 = vadd.f32 0.0, %v4594
    %v4596 = vpop.f32.mrb[0].mxu0
    %4597 = vdwg.mxu0
    %v4598 = vmul.f32 %v4525, %v4595
    %v4599 = vadd.f32 %v4457, %v4598
    %v4600 = vmax.f32 %v4599, 0.0
    %s4601 = scalar_lea.vmem [#allocation2], 2560
    %v4602 = vld [vmem:[%s4601] sm:$0xff]
    %v4603 = vld [vmem:[%s4601 + $0x8] sm:$0xff]
    %v4604 = vld [vmem:[%s4601 + $0x10] sm:$0xff]
    %v4605 = vld [vmem:[%s4601 + $0x18] sm:$0xff]
    %v4606 = vld [vmem:[%s4601 + $0x20] sm:$0xff]
    %v4607 = vld [vmem:[%s4601 + $0x28] sm:$0xff]
    %v4608 = vld [vmem:[%s4601 + $0x30] sm:$0xff]
    %v4609 = vld [vmem:[%s4601 + $0x38] sm:$0xff]
    %v4610 = vld [vmem:[%s4601 + $0x40] sm:$0xff]
    %v4611 = vld [vmem:[%s4601 + $0x48] sm:$0xff]
    %v4612 = vld [vmem:[%s4601 + $0x50] sm:$0xff]
    %v4613 = vld [vmem:[%s4601 + $0x58] sm:$0xff]
    %v4614 = vld [vmem:[%s4601 + $0x60] sm:$0xff]
    %v4615 = vld [vmem:[%s4601 + $0x68] sm:$0xff]
    %v4616 = vld [vmem:[%s4601 + $0x70] sm:$0xff]
    %v4617 = vld [vmem:[%s4601 + $0x78] sm:$0xff]
    %v4618 = vlaneseq
    %v4619 = vshrl.u32 %v4618, 7
    %v4620 = vsub.s32 1, %v4619
    %v4621 = vrot.slane %v45, %v4620
    %4622 = vmatprep.subr.mxu0 0.0
    %4623 = vmatpush1.msra.mxu0 %v4602
    %4624 = vmatprep.subr.mxu0 0.0
    %4625 = vmatpush1.msra.mxu0 %v4603
    %4626 = vmatprep.subr.mxu0 0.0
    %4627 = vmatpush1.msra.mxu0 %v4604
    %4628 = vmatprep.subr.mxu0 0.0
    %4629 = vmatpush1.msra.mxu0 %v4605
    %4630 = vmatprep.subr.mxu0 0.0
    %4631 = vmatpush1.msra.mxu0 %v4606
    %4632 = vmatprep.subr.mxu0 0.0
    %4633 = vmatpush1.msra.mxu0 %v4607
    %4634 = vmatprep.subr.mxu0 0.0
    %4635 = vmatpush1.msra.mxu0 %v4608
    %4636 = vmatprep.subr.mxu0 0.0
    %4637 = vmatpush1.msra.mxu0 %v4609
    %4638 = vmatprep.subr.mxu0 0.0
    %4639 = vmatpush1.msra.mxu0 %v4610
    %4640 = vmatprep.subr.mxu0 0.0
    %4641 = vmatpush1.msra.mxu0 %v4611
    %4642 = vmatprep.subr.mxu0 0.0
    %4643 = vmatpush1.msra.mxu0 %v4612
    %4644 = vmatprep.subr.mxu0 0.0
    %4645 = vmatpush1.msra.mxu0 %v4613
    %4646 = vmatprep.subr.mxu0 0.0
    %4647 = vmatpush1.msra.mxu0 %v4614
    %4648 = vmatprep.subr.mxu0 0.0
    %4649 = vmatpush1.msra.mxu0 %v4615
    %4650 = vmatprep.subr.mxu0 0.0
    %4651 = vmatpush1.msra.mxu0 %v4616
    %4652 = vmatprep.subr.mxu0 0.0
    %4653 = vmatpush1.msra.mxu0 %v4617
    %4654 = vmatprep.subr.mxu0 0.0
    %4655 = vmatpush1.msra.mxu0 0.0
    %4656 = vmatprep.subr.mxu0 0.0
    %4657 = vmatpush1.msra.mxu0 0.0
    %4658 = vmatprep.subr.mxu0 0.0
    %4659 = vmatpush1.msra.mxu0 0.0
    %4660 = vmatprep.subr.mxu0 0.0
    %4661 = vmatpush1.msra.mxu0 0.0
    %4662 = vmatprep.subr.mxu0 0.0
    %4663 = vmatpush1.msra.mxu0 0.0
    %4664 = vmatprep.subr.mxu0 0.0
    %4665 = vmatpush1.msra.mxu0 0.0
    %4666 = vmatprep.subr.mxu0 0.0
    %4667 = vmatpush1.msra.mxu0 0.0
    %4668 = vmatprep.subr.mxu0 0.0
    %4669 = vmatpush1.msra.mxu0 0.0
    %4670 = vmatprep.subr.mxu0 0.0
    %4671 = vmatpush1.msra.mxu0 0.0
    %4672 = vmatprep.subr.mxu0 0.0
    %4673 = vmatpush1.msra.mxu0 0.0
    %4674 = vmatprep.subr.mxu0 0.0
    %4675 = vmatpush1.msra.mxu0 0.0
    %4676 = vmatprep.subr.mxu0 0.0
    %4677 = vmatpush1.msra.mxu0 0.0
    %4678 = vmatprep.subr.mxu0 0.0
    %4679 = vmatpush1.msra.mxu0 0.0
    %4680 = vmatprep.subr.mxu0 0.0
    %4681 = vmatpush1.msra.mxu0 0.0
    %4682 = vmatprep.subr.mxu0 0.0
    %4683 = vmatpush1.msra.mxu0 0.0
    %4684 = vmatprep.subr.mxu0 0.0
    %4685 = vmatpush1.msra.mxu0 0.0
    %4686 = vmatprep.mubr.f32.mxu0 0.0
    %4687 = vmatmul.mubr.f32.gmra.mrb[0].mxu0 %v4600
    %v4688 = vpop.f32.mrb[0].mxu0
    %v4689 = vadd.f32 %v4621, %v4688
    %v4690 = vpop.f32.mrb[0].mxu0
    %4691 = vdwg.mxu0
    %4692 = vst [vmem:[#allocation7] sm:$0xff] %v4689
    // Predicated region
    $region22: #{softnet_forward.1} parent=1 // pred_check
      _
    $region23: #{softnet_forward.1} parent=1 // pred_check_branch
      %4694 = sbr.rel (0) target = $region25
    $region24: #{softnet_forward.1} parent=1 // pred_region
      %s4696 = ssub.s32 128, 128
      %4697 = vsyncadd [#allocation4], %s4696
      %s4699 = sshll.u32 [#allocation7], 4
      %s4700 = int_to_ptr.vmem [resolvable:$true] %s4699
      %4702 = dma.vmem_to_hbm [thread:$0]  %s4700, 128, %s3, [#allocation4]
    $region25: #{softnet_forward.1} parent=1 // pred_fallthru
      _
    // Predicated region
    $region26: #{softnet_forward.1} parent=1 // pred_check
      _
    $region27: #{softnet_forward.1} parent=1 // pred_check_branch
      %4704 = sbr.rel (0) target = $region29
    $region28: #{softnet_forward.1} parent=1 // pred_region
      %4705 = dma.done [#allocation4], 128
    $region29: #{softnet_forward.1} parent=1 // pred_fallthru
      _
    %4706 = vsyncpa [#allocation3], 1
    %4707 = vsyncpa [#allocation6], 1
    %4708 = vsyncpa [#allocation4], 1

</llo_original>
